<compile_context>
chip_gen: v6e
topology: v6e:2x2x1
jax: 0.10.0
libtpu: 0.0.40
codegen_flags: <defaults>
</compile_context>

<pallas_src>
import functools

import jax
import jax.numpy as jnp
from jax.experimental import pallas as pl
from jax.experimental.pallas import tpu as pltpu


# ----------------------------- in-kernel helpers -----------------------------

def _layer_norm(h, w, b, eps=1e-5):
    mu = jnp.mean(h, axis=-1, keepdims=True)
    var = jnp.mean((h - mu) ** 2, axis=-1, keepdims=True)
    return (h - mu) * jax.lax.rsqrt(var + eps) * w + b


def _gelu_tanh(x):
    # TODO(synk): torch F.gelu default is exact erf-GELU; tanh approximation used here
    # (erf lowering on Mosaic is not guaranteed).
    c = 0.7978845608028654  # sqrt(2/pi)
    return 0.5 * x * (1.0 + jnp.tanh(c * (x + 0.044715 * x * x * x)))


def _qkt(qh, kh):
    # (HW, Dh) x (HW, Dh) -> (HW, HW), contracting the head dim (no explicit transpose).
    return jax.lax.dot_general(
        qh, kh, (((1,), (1,)), ((), ())), preferred_element_type=jnp.float32)


# --------------------------------- fused kernel -------------------------------

def _fused_kernel(x_ref, ctx_ref,
                  gnw_ref, gnb_ref, win_ref, bin_ref,
                  ln1w_ref, ln1b_ref, wq1_ref, wk1_ref, wv1_ref, wo1_ref, bo1_ref,
                  ln2w_ref, ln2b_ref, wq2_ref, wk2_ref, wv2_ref, wo2_ref, bo2_ref,
                  ln3w_ref, ln3b_ref, wg_ref, bg_ref, wff_ref, bff_ref,
                  wout_ref, bout_ref,
                  o_ref, *, n_heads, d_head, depth, num_groups, gn_eps):
    """GroupNorm + proj_in + depth x DualAttnetionBlock + proj_out + residual,
    for one batch element."""
    scale = d_head ** -0.5
    x_in = x_ref[0].astype(jnp.float32)                        # (HW, C)
    HW, C = x_in.shape
    inner = win_ref.shape[1]

    # ---------------- GroupNorm (Normalize, eps=1e-6) + proj_in ----------------
    cg = C // num_groups
    if cg == 1:                                                # group == single channel
        mu = jnp.mean(x_in, axis=0, keepdims=True)
        var = jnp.mean((x_in - mu) ** 2, axis=0, keepdims=True)
        xn = (x_in - mu) * jax.lax.rsqrt(var + gn_eps)
    else:
        # group stats via static channel-range slices (no lane-splitting reshape)
        n_elem = float(HW * cg)
        parts = []
        for g in range(num_groups):
            xg = x_in[:, g * cg:(g + 1) * cg]
            mu = jnp.sum(xg) / n_elem
            var = jnp.sum((xg - mu) ** 2) / n_elem
            parts.append((xg - mu) * jax.lax.rsqrt(var + gn_eps))
        xn = jnp.concatenate(parts, axis=-1)
    xn = xn * gnw_ref[...] + gnb_ref[...]
    h = jnp.dot(xn, win_ref[...], preferred_element_type=jnp.float32) + bin_ref[...]

    # context loaded + cast exactly once, all views; single flat view for K/V matmuls
    ctx = ctx_ref[0].astype(jnp.float32)                       # (D, HW, Cctx)
    D, _, Cctx = ctx.shape
    ctx_flat = ctx.reshape(D * HW, Cctx)

    for d in range(depth):
        # -------- attn1: multi-head self attention + residual --------
        h1 = _layer_norm(h, ln1w_ref[d], ln1b_ref[d])
        q = jnp.dot(h1, wq1_ref[d], preferred_element_type=jnp.float32)
        k = jnp.dot(h1, wk1_ref[d], preferred_element_type=jnp.float32)
        v = jnp.dot(h1, wv1_ref[d], preferred_element_type=jnp.float32)
        heads = []
        for hh in range(n_heads):
            sl = slice(hh * d_head, (hh + 1) * d_head)
            sim = _qkt(q[:, sl], k[:, sl]) * scale             # (HW, HW)
            sim = sim - jnp.max(sim, axis=-1, keepdims=True)
            p = jnp.exp(sim)
            p = p * pl.reciprocal(jnp.sum(p, axis=-1, keepdims=True), approx=True)
            heads.append(jnp.dot(p, v[:, sl], preferred_element_type=jnp.float32))
        attn1 = jnp.concatenate(heads, axis=-1)                # (HW, inner)
        # ONE full-width output projection for all heads.
        h = jnp.dot(attn1, wo1_ref[d], preferred_element_type=jnp.float32) \
            + bo1_ref[d] + h

        # ---- attn2: per-pixel (query length 1) cross attention over views + residual ----
        h2 = _layer_norm(h, ln2w_ref[d], ln2b_ref[d])
        q2 = jnp.dot(h2, wq2_ref[d], preferred_element_type=jnp.float32)
        # K/V for ALL views in one matmul each.
        k2 = jnp.dot(ctx_flat, wk2_ref[d],
                     preferred_element_type=jnp.float32).reshape(D, HW, inner)
        v2 = jnp.dot(ctx_flat, wv2_ref[d],
                     preferred_element_type=jnp.float32).reshape(D, HW, inner)
        heads = []
        for hh in range(n_heads):
            sl = slice(hh * d_head, (hh + 1) * d_head)
            qh = q2[:, sl]                                     # (HW, Dh)
            kh = k2[:, :, sl]                                  # (D, HW, Dh)
            vh = v2[:, :, sl]                                  # (D, HW, Dh)
            sims = jnp.sum(qh[None] * kh, axis=-1, keepdims=True) * scale  # (D, HW, 1)
            m = jnp.max(sims, axis=0, keepdims=True)
            p = jnp.exp(sims - m)
            p = p * pl.reciprocal(jnp.sum(p, axis=0, keepdims=True), approx=True)
            heads.append(jnp.sum(p * vh, axis=0))              # (HW, Dh)
        attn2 = jnp.concatenate(heads, axis=-1)                # (HW, inner)
        h = jnp.dot(attn2, wo2_ref[d], preferred_element_type=jnp.float32) \
            + bo2_ref[d] + h

        # -------- ff: GEGLU feed-forward + residual --------
        h3 = _layer_norm(h, ln3w_ref[d], ln3b_ref[d])
        proj = jnp.dot(h3, wg_ref[d], preferred_element_type=jnp.float32) + bg_ref[d]
        ff_inner = wff_ref.shape[1]
        a = proj[:, :ff_inner]
        gate = proj[:, ff_inner:]
        geglu = a * _gelu_tanh(gate)
        h = jnp.dot(geglu, wff_ref[d], preferred_element_type=jnp.float32) \
            + bff_ref[d] + h

    # ---------------- proj_out + residual with module input ----------------
    y = jnp.dot(h, wout_ref[...], preferred_element_type=jnp.float32) + bout_ref[...]
    o_ref[0] = (y + x_in).astype(o_ref.dtype)


# ------------------------------ pallas_call glue ------------------------------

_WEIGHT_ORDER = [
    "gn_w", "gn_b", "w_in", "b_in",
    "ln1_w", "ln1_b", "wq1", "wk1", "wv1", "wo1", "bo1",
    "ln2_w", "ln2_b", "wq2", "wk2", "wv2", "wo2", "bo2",
    "ln3_w", "ln3_b", "wg", "bg", "wff", "bff",
    "w_out", "b_out",
]


def _rep_spec(shape):
    nd = len(shape)
    return pl.BlockSpec(shape, lambda b, _nd=nd: (0,) * _nd)


def _run_fused(x_cl, ctx, params, *, n_heads, d_head, num_groups, gn_eps=1e-6):
    B, HW, C = x_cl.shape
    _, D, _, Cctx = ctx.shape
    depth = params["wq1"].shape[0]
    weights = [params[name] for name in _WEIGHT_ORDER]
    kern = functools.partial(_fused_kernel, n_heads=n_heads, d_head=d_head,
                             depth=depth, num_groups=num_groups, gn_eps=gn_eps)
    in_specs = ([pl.BlockSpec((1, HW, C), lambda b: (b, 0, 0)),
                 pl.BlockSpec((1, D, HW, Cctx), lambda b: (b, 0, 0, 0))]
                + [_rep_spec(w.shape) for w in weights])
    return pl.pallas_call(
        kern,
        out_shape=jax.ShapeDtypeStruct((B, HW, C), jnp.float32),
        grid=(B,),
        in_specs=in_specs,
        out_specs=pl.BlockSpec((1, HW, C), lambda b: (b, 0, 0)),
        compiler_params=pltpu.CompilerParams(
            dimension_semantics=("parallel",),
            vmem_limit_bytes=64 * 1024 * 1024),
    )(x_cl, ctx, *weights)


def view_aligned_feature_transformer(x_nchw, context_list, params, *,
                                     n_heads, d_head, image_size, num_groups=32):
    """Forward pass of ViewAlignedFeatureTransformer (use_linear=True path)."""
    B, C, H, W = x_nchw.shape
    HW = H * W
    level_mapper = {image_size: 0, image_size // 2: 1,
                    image_size // 4: 2, image_size // 8: 3}
    ctx = context_list[level_mapper[H]]                           # (B, H, W, D, Cctx)
    _, _, _, D, Cctx = ctx.shape
    # 'b h w d c' -> 'b (h w) d c' -> kernel layout (B, D, HW, Cctx)
    ctx = jnp.transpose(ctx.reshape(B, HW, D, Cctx), (0, 2, 1, 3))
    # NCHW -> channels-last (B, HW, C)
    x_cl = jnp.transpose(x_nchw, (0, 2, 3, 1)).reshape(B, HW, C)

    # GroupNorm eps=1e-6 matches ldm/diffusers Normalize (torch GroupNorm default is 1e-5).
    y = _run_fused(x_cl, ctx, params, n_heads=n_heads, d_head=d_head,
                   num_groups=num_groups, gn_eps=1e-6)
    return jnp.transpose(y.reshape(B, H, W, C), (0, 3, 1, 2))     # back to NCHW


# ------------------------------- parameter init -------------------------------

def init_params(key, *, in_channels, n_heads, d_head, depth, context_dim):
    inner = n_heads * d_head
    assert inner == in_channels, "reference forward requires inner_dim == in_channels"
    ff_inner = 4 * inner

    def nrm(k, shape):
        return 0.02 * jax.random.normal(k, shape, jnp.float32)

    keys = iter(jax.random.split(key, 32))
    params = {
        "gn_w": jnp.ones((1, in_channels), jnp.float32),
        "gn_b": jnp.zeros((1, in_channels), jnp.float32),
        "w_in": nrm(next(keys), (in_channels, inner)),
        "b_in": jnp.zeros((1, inner), jnp.float32),
        # NOTE: reference wraps proj_out in zero_module (zero init); deterministic
        # random init is used here so the full compute path affects the output.
        "w_out": nrm(next(keys), (inner, in_channels)),
        "b_out": jnp.zeros((1, in_channels), jnp.float32),
        # Per-block weights stacked along a leading `depth` axis.
        "ln1_w": jnp.ones((depth, 1, inner), jnp.float32),
        "ln1_b": jnp.zeros((depth, 1, inner), jnp.float32),
        "wq1": nrm(next(keys), (depth, inner, inner)),
        "wk1": nrm(next(keys), (depth, inner, inner)),
        "wv1": nrm(next(keys), (depth, inner, inner)),
        "wo1": nrm(next(keys), (depth, inner, inner)),
        "bo1": jnp.zeros((depth, 1, inner), jnp.float32),
        "ln2_w": jnp.ones((depth, 1, inner), jnp.float32),
        "ln2_b": jnp.zeros((depth, 1, inner), jnp.float32),
        "wq2": nrm(next(keys), (depth, inner, inner)),
        "wk2": nrm(next(keys), (depth, context_dim, inner)),
        "wv2": nrm(next(keys), (depth, context_dim, inner)),
        "wo2": nrm(next(keys), (depth, inner, inner)),
        "bo2": jnp.zeros((depth, 1, inner), jnp.float32),
        "ln3_w": jnp.ones((depth, 1, inner), jnp.float32),
        "ln3_b": jnp.zeros((depth, 1, inner), jnp.float32),
        "wg": nrm(next(keys), (depth, inner, 2 * ff_inner)),   # GEGLU proj (value | gate)
        "bg": jnp.zeros((depth, 1, 2 * ff_inner), jnp.float32),
        "wff": nrm(next(keys), (depth, ff_inner, inner)),
        "bff": jnp.zeros((depth, 1, inner), jnp.float32),
    }
    return params


# ------------------------------------ main ------------------------------------

if __name__ == "__main__":
    B, C, H, W = 2, 32, 8, 8          # in_channels = 32
    n_heads, d_head, depth = 2, 16, 1  # inner_dim = 32
    D_views, Cctx = 4, 32
    image_size = 8                     # level_mapper[H] == 0

    key = jax.random.PRNGKey(0)
    kx, kc, kp = jax.random.split(key, 3)
    x = jax.random.normal(kx, (B, C, H, W), jnp.float32)
    context_level0 = jax.random.normal(kc, (B, H, W, D_views, Cctx), jnp.float32)
    context = [context_level0]         # list indexed by resolution level

    params = init_params(kp, in_channels=C, n_heads=n_heads, d_head=d_head,
                         depth=depth, context_dim=Cctx)

    out = view_aligned_feature_transformer(
        x, context, params, n_heads=n_heads, d_head=d_head,
        image_size=image_size, num_groups=32)
    out = jax.block_until_ready(out)
    assert out.shape == (B, C, H, W) and out.dtype == jnp.float32
    print("KERNEL_OK")
</pallas_src>

<mosaic_0001>
module attributes {stable_mosaic.version = 11 : i64} {
  func.func @_fused_kernel(%arg0: i32, %arg1: memref<1x64x32xf32, #tpu.memory_space<vmem>>, %arg2: memref<1x4x64x32xf32, #tpu.memory_space<vmem>>, %arg3: memref<1x32xf32, #tpu.memory_space<vmem>>, %arg4: memref<1x32xf32, #tpu.memory_space<vmem>>, %arg5: memref<32x32xf32, #tpu.memory_space<vmem>>, %arg6: memref<1x32xf32, #tpu.memory_space<vmem>>, %arg7: memref<1x1x32xf32, #tpu.memory_space<vmem>>, %arg8: memref<1x1x32xf32, #tpu.memory_space<vmem>>, %arg9: memref<1x32x32xf32, #tpu.memory_space<vmem>>, %arg10: memref<1x32x32xf32, #tpu.memory_space<vmem>>, %arg11: memref<1x32x32xf32, #tpu.memory_space<vmem>>, %arg12: memref<1x32x32xf32, #tpu.memory_space<vmem>>, %arg13: memref<1x1x32xf32, #tpu.memory_space<vmem>>, %arg14: memref<1x1x32xf32, #tpu.memory_space<vmem>>, %arg15: memref<1x1x32xf32, #tpu.memory_space<vmem>>, %arg16: memref<1x32x32xf32, #tpu.memory_space<vmem>>, %arg17: memref<1x32x32xf32, #tpu.memory_space<vmem>>, %arg18: memref<1x32x32xf32, #tpu.memory_space<vmem>>, %arg19: memref<1x32x32xf32, #tpu.memory_space<vmem>>, %arg20: memref<1x1x32xf32, #tpu.memory_space<vmem>>, %arg21: memref<1x1x32xf32, #tpu.memory_space<vmem>>, %arg22: memref<1x1x32xf32, #tpu.memory_space<vmem>>, %arg23: memref<1x32x256xf32, #tpu.memory_space<vmem>>, %arg24: memref<1x1x256xf32, #tpu.memory_space<vmem>>, %arg25: memref<1x128x32xf32, #tpu.memory_space<vmem>>, %arg26: memref<1x1x32xf32, #tpu.memory_space<vmem>>, %arg27: memref<32x32xf32, #tpu.memory_space<vmem>>, %arg28: memref<1x32xf32, #tpu.memory_space<vmem>>, %arg29: memref<1x64x32xf32, #tpu.memory_space<vmem>>) attributes {dimension_semantics = [#tpu.dimension_semantics<parallel>], iteration_bounds = array<i64: 2>, scalar_prefetch = 0 : i64, scratch_operands = 0 : i64, tpu.core_type = #tpu.core_type<tc>, window_params = [{transform_indices = @transform_0, window_bounds = array<i64: 1, 64, 32>}, {transform_indices = @transform_1, window_bounds = array<i64: 1, 4, 64, 32>}, {pipeline_mode = #tpu.pipeline_mode<synchronous>, transform_indices = @transform_2, window_bounds = array<i64: 1, 32>}, {pipeline_mode = #tpu.pipeline_mode<synchronous>, transform_indices = @transform_3, window_bounds = array<i64: 1, 32>}, {pipeline_mode = #tpu.pipeline_mode<synchronous>, transform_indices = @transform_4, window_bounds = array<i64: 32, 32>}, {pipeline_mode = #tpu.pipeline_mode<synchronous>, transform_indices = @transform_5, window_bounds = array<i64: 1, 32>}, {pipeline_mode = #tpu.pipeline_mode<synchronous>, transform_indices = @transform_6, window_bounds = array<i64: 1, 1, 32>}, {pipeline_mode = #tpu.pipeline_mode<synchronous>, transform_indices = @transform_7, window_bounds = array<i64: 1, 1, 32>}, {pipeline_mode = #tpu.pipeline_mode<synchronous>, transform_indices = @transform_8, window_bounds = array<i64: 1, 32, 32>}, {pipeline_mode = #tpu.pipeline_mode<synchronous>, transform_indices = @transform_9, window_bounds = array<i64: 1, 32, 32>}, {pipeline_mode = #tpu.pipeline_mode<synchronous>, transform_indices = @transform_10, window_bounds = array<i64: 1, 32, 32>}, {pipeline_mode = #tpu.pipeline_mode<synchronous>, transform_indices = @transform_11, window_bounds = array<i64: 1, 32, 32>}, {pipeline_mode = #tpu.pipeline_mode<synchronous>, transform_indices = @transform_12, window_bounds = array<i64: 1, 1, 32>}, {pipeline_mode = #tpu.pipeline_mode<synchronous>, transform_indices = @transform_13, window_bounds = array<i64: 1, 1, 32>}, {pipeline_mode = #tpu.pipeline_mode<synchronous>, transform_indices = @transform_14, window_bounds = array<i64: 1, 1, 32>}, {pipeline_mode = #tpu.pipeline_mode<synchronous>, transform_indices = @transform_15, window_bounds = array<i64: 1, 32, 32>}, {pipeline_mode = #tpu.pipeline_mode<synchronous>, transform_indices = @transform_16, window_bounds = array<i64: 1, 32, 32>}, {pipeline_mode = #tpu.pipeline_mode<synchronous>, transform_indices = @transform_17, window_bounds = array<i64: 1, 32, 32>}, {pipeline_mode = #tpu.pipeline_mode<synchronous>, transform_indices = @transform_18, window_bounds = array<i64: 1, 32, 32>}, {pipeline_mode = #tpu.pipeline_mode<synchronous>, transform_indices = @transform_19, window_bounds = array<i64: 1, 1, 32>}, {pipeline_mode = #tpu.pipeline_mode<synchronous>, transform_indices = @transform_20, window_bounds = array<i64: 1, 1, 32>}, {pipeline_mode = #tpu.pipeline_mode<synchronous>, transform_indices = @transform_21, window_bounds = array<i64: 1, 1, 32>}, {pipeline_mode = #tpu.pipeline_mode<synchronous>, transform_indices = @transform_22, window_bounds = array<i64: 1, 32, 256>}, {pipeline_mode = #tpu.pipeline_mode<synchronous>, transform_indices = @transform_23, window_bounds = array<i64: 1, 1, 256>}, {pipeline_mode = #tpu.pipeline_mode<synchronous>, transform_indices = @transform_24, window_bounds = array<i64: 1, 128, 32>}, {pipeline_mode = #tpu.pipeline_mode<synchronous>, transform_indices = @transform_25, window_bounds = array<i64: 1, 1, 32>}, {pipeline_mode = #tpu.pipeline_mode<synchronous>, transform_indices = @transform_26, window_bounds = array<i64: 32, 32>}, {pipeline_mode = #tpu.pipeline_mode<synchronous>, transform_indices = @transform_27, window_bounds = array<i64: 1, 32>}, {transform_indices = @transform_28, window_bounds = array<i64: 1, 64, 32>}]} {
    %c0 = arith.constant 0 : index
    %c0_0 = arith.constant 0 : index
    %c0_1 = arith.constant 0 : index
    %0 = vector.load %arg1[%c0, %c0_0, %c0_1] : memref<1x64x32xf32, #tpu.memory_space<vmem>>, vector<1x64x32xf32>
    %1 = vector.shape_cast %0 : vector<1x64x32xf32> to vector<64x32xf32>
    %cst = arith.constant dense<0.000000e+00> : vector<32xf32>
    %2 = vector.multi_reduction <add>, %1, %cst [0] : vector<64x32xf32> to vector<32xf32>
    %3 = vector.shape_cast %2 : vector<32xf32> to vector<1x32xf32>
    %cst_2 = arith.constant 6.400000e+01 : f32
    %4 = vector.broadcast %cst_2 : f32 to vector<1x32xf32>
    %5 = arith.divf %3, %4 : vector<1x32xf32>
    %6 = vector.broadcast %5 : vector<1x32xf32> to vector<64x32xf32>
    %7 = arith.subf %1, %6 : vector<64x32xf32>
    %8 = arith.mulf %7, %7 : vector<64x32xf32>
    %cst_3 = arith.constant dense<0.000000e+00> : vector<32xf32>
    %9 = vector.multi_reduction <add>, %8, %cst_3 [0] : vector<64x32xf32> to vector<32xf32>
    %10 = vector.shape_cast %9 : vector<32xf32> to vector<1x32xf32>
    %cst_4 = arith.constant 6.400000e+01 : f32
    %11 = vector.broadcast %cst_4 : f32 to vector<1x32xf32>
    %12 = arith.divf %10, %11 : vector<1x32xf32>
    %13 = vector.broadcast %5 : vector<1x32xf32> to vector<64x32xf32>
    %14 = arith.subf %1, %13 : vector<64x32xf32>
    %cst_5 = arith.constant 9.99999997E-7 : f32
    %15 = vector.broadcast %cst_5 : f32 to vector<1x32xf32>
    %16 = arith.addf %12, %15 : vector<1x32xf32>
    %17 = math.rsqrt %16 : vector<1x32xf32>
    %18 = vector.broadcast %17 : vector<1x32xf32> to vector<64x32xf32>
    %19 = arith.mulf %14, %18 : vector<64x32xf32>
    %c0_6 = arith.constant 0 : index
    %c0_7 = arith.constant 0 : index
    %20 = vector.load %arg3[%c0_6, %c0_7] : memref<1x32xf32, #tpu.memory_space<vmem>>, vector<1x32xf32>
    %21 = vector.broadcast %20 : vector<1x32xf32> to vector<64x32xf32>
    %22 = arith.mulf %19, %21 : vector<64x32xf32>
    %c0_8 = arith.constant 0 : index
    %c0_9 = arith.constant 0 : index
    %23 = vector.load %arg4[%c0_8, %c0_9] : memref<1x32xf32, #tpu.memory_space<vmem>>, vector<1x32xf32>
    %24 = vector.broadcast %23 : vector<1x32xf32> to vector<64x32xf32>
    %25 = arith.addf %22, %24 : vector<64x32xf32>
    %c0_10 = arith.constant 0 : index
    %c0_11 = arith.constant 0 : index
    %26 = vector.load %arg5[%c0_10, %c0_11] : memref<32x32xf32, #tpu.memory_space<vmem>>, vector<32x32xf32>
    %cst_12 = arith.constant dense<0.000000e+00> : vector<64x32xf32>
    %27 = tpu.matmul %25, %26, %cst_12 {dimension_numbers = #tpu.dot_dimension_numbers<[1], [0], [0], [1], [0, 0, 1, 1], [], []>} : vector<64x32xf32>, vector<32x32xf32>, vector<64x32xf32> -> vector<64x32xf32>
    %c0_13 = arith.constant 0 : index
    %c0_14 = arith.constant 0 : index
    %28 = vector.load %arg6[%c0_13, %c0_14] : memref<1x32xf32, #tpu.memory_space<vmem>>, vector<1x32xf32>
    %29 = vector.broadcast %28 : vector<1x32xf32> to vector<64x32xf32>
    %30 = arith.addf %27, %29 : vector<64x32xf32>
    %c0_15 = arith.constant 0 : index
    %c0_16 = arith.constant 0 : index
    %c0_17 = arith.constant 0 : index
    %c0_18 = arith.constant 0 : index
    %31 = vector.load %arg2[%c0_15, %c0_16, %c0_17, %c0_18] : memref<1x4x64x32xf32, #tpu.memory_space<vmem>>, vector<1x4x64x32xf32>
    %32 = vector.shape_cast %31 : vector<1x4x64x32xf32> to vector<4x64x32xf32>
    %33 = vector.shape_cast %32 : vector<4x64x32xf32> to vector<256x32xf32>
    %c0_19 = arith.constant 0 : index
    %c0_20 = arith.constant 0 : index
    %c0_21 = arith.constant 0 : index
    %34 = vector.load %arg7[%c0_19, %c0_20, %c0_21] : memref<1x1x32xf32, #tpu.memory_space<vmem>>, vector<1x1x32xf32>
    %35 = vector.shape_cast %34 : vector<1x1x32xf32> to vector<1x32xf32>
    %c0_22 = arith.constant 0 : index
    %c0_23 = arith.constant 0 : index
    %c0_24 = arith.constant 0 : index
    %36 = vector.load %arg8[%c0_22, %c0_23, %c0_24] : memref<1x1x32xf32, #tpu.memory_space<vmem>>, vector<1x1x32xf32>
    %37 = vector.shape_cast %36 : vector<1x1x32xf32> to vector<1x32xf32>
    %cst_25 = arith.constant dense<0.000000e+00> : vector<64xf32>
    %38 = vector.multi_reduction <add>, %30, %cst_25 [1] : vector<64x32xf32> to vector<64xf32>
    %39 = vector.shape_cast %38 : vector<64xf32> to vector<64x1xf32>
    %cst_26 = arith.constant 3.200000e+01 : f32
    %40 = vector.broadcast %cst_26 : f32 to vector<64x1xf32>
    %41 = arith.divf %39, %40 : vector<64x1xf32>
    %42 = vector.broadcast %41 : vector<64x1xf32> to vector<64x32xf32>
    %43 = arith.subf %30, %42 : vector<64x32xf32>
    %44 = arith.mulf %43, %43 : vector<64x32xf32>
    %cst_27 = arith.constant dense<0.000000e+00> : vector<64xf32>
    %45 = vector.multi_reduction <add>, %44, %cst_27 [1] : vector<64x32xf32> to vector<64xf32>
    %46 = vector.shape_cast %45 : vector<64xf32> to vector<64x1xf32>
    %cst_28 = arith.constant 3.200000e+01 : f32
    %47 = vector.broadcast %cst_28 : f32 to vector<64x1xf32>
    %48 = arith.divf %46, %47 : vector<64x1xf32>
    %49 = vector.broadcast %41 : vector<64x1xf32> to vector<64x32xf32>
    %50 = arith.subf %30, %49 : vector<64x32xf32>
    %cst_29 = arith.constant 9.99999974E-6 : f32
    %51 = vector.broadcast %cst_29 : f32 to vector<64x1xf32>
    %52 = arith.addf %48, %51 : vector<64x1xf32>
    %53 = math.rsqrt %52 : vector<64x1xf32>
    %54 = vector.broadcast %53 : vector<64x1xf32> to vector<64x32xf32>
    %55 = arith.mulf %50, %54 : vector<64x32xf32>
    %56 = vector.broadcast %35 : vector<1x32xf32> to vector<64x32xf32>
    %57 = arith.mulf %55, %56 : vector<64x32xf32>
    %58 = vector.broadcast %37 : vector<1x32xf32> to vector<64x32xf32>
    %59 = arith.addf %57, %58 : vector<64x32xf32>
    %c0_30 = arith.constant 0 : index
    %c0_31 = arith.constant 0 : index
    %c0_32 = arith.constant 0 : index
    %60 = vector.load %arg9[%c0_30, %c0_31, %c0_32] : memref<1x32x32xf32, #tpu.memory_space<vmem>>, vector<1x32x32xf32>
    %61 = vector.shape_cast %60 : vector<1x32x32xf32> to vector<32x32xf32>
    %cst_33 = arith.constant dense<0.000000e+00> : vector<64x32xf32>
    %62 = tpu.matmul %59, %61, %cst_33 {dimension_numbers = #tpu.dot_dimension_numbers<[1], [0], [0], [1], [0, 0, 1, 1], [], []>} : vector<64x32xf32>, vector<32x32xf32>, vector<64x32xf32> -> vector<64x32xf32>
    %c0_34 = arith.constant 0 : index
    %c0_35 = arith.constant 0 : index
    %c0_36 = arith.constant 0 : index
    %63 = vector.load %arg10[%c0_34, %c0_35, %c0_36] : memref<1x32x32xf32, #tpu.memory_space<vmem>>, vector<1x32x32xf32>
    %64 = vector.shape_cast %63 : vector<1x32x32xf32> to vector<32x32xf32>
    %cst_37 = arith.constant dense<0.000000e+00> : vector<64x32xf32>
    %65 = tpu.matmul %59, %64, %cst_37 {dimension_numbers = #tpu.dot_dimension_numbers<[1], [0], [0], [1], [0, 0, 1, 1], [], []>} : vector<64x32xf32>, vector<32x32xf32>, vector<64x32xf32> -> vector<64x32xf32>
    %c0_38 = arith.constant 0 : index
    %c0_39 = arith.constant 0 : index
    %c0_40 = arith.constant 0 : index
    %66 = vector.load %arg11[%c0_38, %c0_39, %c0_40] : memref<1x32x32xf32, #tpu.memory_space<vmem>>, vector<1x32x32xf32>
    %67 = vector.shape_cast %66 : vector<1x32x32xf32> to vector<32x32xf32>
    %cst_41 = arith.constant dense<0.000000e+00> : vector<64x32xf32>
    %68 = tpu.matmul %59, %67, %cst_41 {dimension_numbers = #tpu.dot_dimension_numbers<[1], [0], [0], [1], [0, 0, 1, 1], [], []>} : vector<64x32xf32>, vector<32x32xf32>, vector<64x32xf32> -> vector<64x32xf32>
    %69 = vector.extract_strided_slice %62 {offsets = [0, 0], sizes = [64, 16], strides = [1, 1]} : vector<64x32xf32> to vector<64x16xf32>
    %70 = vector.extract_strided_slice %65 {offsets = [0, 0], sizes = [64, 16], strides = [1, 1]} : vector<64x32xf32> to vector<64x16xf32>
    %cst_42 = arith.constant dense<0.000000e+00> : vector<64x64xf32>
    %71 = tpu.matmul %69, %70, %cst_42 {dimension_numbers = #tpu.dot_dimension_numbers<[1], [1], [0], [0], [0, 0, 1, 0], [], []>} : vector<64x16xf32>, vector<64x16xf32>, vector<64x64xf32> -> vector<64x64xf32>
    %cst_43 = arith.constant 2.500000e-01 : f32
    %72 = vector.broadcast %cst_43 : f32 to vector<64x64xf32>
    %73 = arith.mulf %71, %72 : vector<64x64xf32>
    %cst_44 = arith.constant dense<0xFF800000> : vector<64xf32>
    %74 = vector.multi_reduction <maximumf>, %73, %cst_44 [1] : vector<64x64xf32> to vector<64xf32>
    %75 = vector.shape_cast %74 : vector<64xf32> to vector<64x1xf32>
    %76 = vector.broadcast %75 : vector<64x1xf32> to vector<64x64xf32>
    %77 = arith.subf %73, %76 : vector<64x64xf32>
    %78 = math.exp %77 : vector<64x64xf32>
    %cst_45 = arith.constant dense<0.000000e+00> : vector<64xf32>
    %79 = vector.multi_reduction <add>, %78, %cst_45 [1] : vector<64x64xf32> to vector<64xf32>
    %80 = vector.shape_cast %79 : vector<64xf32> to vector<64x1xf32>
    %81 = tpu.reciprocal %80 {approx = true} : vector<64x1xf32> -> vector<64x1xf32>
    %82 = vector.broadcast %81 : vector<64x1xf32> to vector<64x64xf32>
    %83 = arith.mulf %78, %82 : vector<64x64xf32>
    %84 = vector.extract_strided_slice %68 {offsets = [0, 0], sizes = [64, 16], strides = [1, 1]} : vector<64x32xf32> to vector<64x16xf32>
    %cst_46 = arith.constant dense<0.000000e+00> : vector<64x16xf32>
    %85 = tpu.matmul %83, %84, %cst_46 {dimension_numbers = #tpu.dot_dimension_numbers<[1], [0], [0], [1], [0, 0, 1, 1], [], []>} : vector<64x64xf32>, vector<64x16xf32>, vector<64x16xf32> -> vector<64x16xf32>
    %86 = vector.extract_strided_slice %62 {offsets = [0, 16], sizes = [64, 16], strides = [1, 1]} : vector<64x32xf32> to vector<64x16xf32>
    %87 = vector.extract_strided_slice %65 {offsets = [0, 16], sizes = [64, 16], strides = [1, 1]} : vector<64x32xf32> to vector<64x16xf32>
    %cst_47 = arith.constant dense<0.000000e+00> : vector<64x64xf32>
    %88 = tpu.matmul %86, %87, %cst_47 {dimension_numbers = #tpu.dot_dimension_numbers<[1], [1], [0], [0], [0, 0, 1, 0], [], []>} : vector<64x16xf32>, vector<64x16xf32>, vector<64x64xf32> -> vector<64x64xf32>
    %cst_48 = arith.constant 2.500000e-01 : f32
    %89 = vector.broadcast %cst_48 : f32 to vector<64x64xf32>
    %90 = arith.mulf %88, %89 : vector<64x64xf32>
    %cst_49 = arith.constant dense<0xFF800000> : vector<64xf32>
    %91 = vector.multi_reduction <maximumf>, %90, %cst_49 [1] : vector<64x64xf32> to vector<64xf32>
    %92 = vector.shape_cast %91 : vector<64xf32> to vector<64x1xf32>
    %93 = vector.broadcast %92 : vector<64x1xf32> to vector<64x64xf32>
    %94 = arith.subf %90, %93 : vector<64x64xf32>
    %95 = math.exp %94 : vector<64x64xf32>
    %cst_50 = arith.constant dense<0.000000e+00> : vector<64xf32>
    %96 = vector.multi_reduction <add>, %95, %cst_50 [1] : vector<64x64xf32> to vector<64xf32>
    %97 = vector.shape_cast %96 : vector<64xf32> to vector<64x1xf32>
    %98 = tpu.reciprocal %97 {approx = true} : vector<64x1xf32> -> vector<64x1xf32>
    %99 = vector.broadcast %98 : vector<64x1xf32> to vector<64x64xf32>
    %100 = arith.mulf %95, %99 : vector<64x64xf32>
    %101 = vector.extract_strided_slice %68 {offsets = [0, 16], sizes = [64, 16], strides = [1, 1]} : vector<64x32xf32> to vector<64x16xf32>
    %cst_51 = arith.constant dense<0.000000e+00> : vector<64x16xf32>
    %102 = tpu.matmul %100, %101, %cst_51 {dimension_numbers = #tpu.dot_dimension_numbers<[1], [0], [0], [1], [0, 0, 1, 1], [], []>} : vector<64x64xf32>, vector<64x16xf32>, vector<64x16xf32> -> vector<64x16xf32>
    %103 = tpu.concatenate %85, %102 in 1 : vector<64x16xf32>, vector<64x16xf32> -> vector<64x32xf32>
    %c0_52 = arith.constant 0 : index
    %c0_53 = arith.constant 0 : index
    %c0_54 = arith.constant 0 : index
    %104 = vector.load %arg12[%c0_52, %c0_53, %c0_54] : memref<1x32x32xf32, #tpu.memory_space<vmem>>, vector<1x32x32xf32>
    %105 = vector.shape_cast %104 : vector<1x32x32xf32> to vector<32x32xf32>
    %cst_55 = arith.constant dense<0.000000e+00> : vector<64x32xf32>
    %106 = tpu.matmul %103, %105, %cst_55 {dimension_numbers = #tpu.dot_dimension_numbers<[1], [0], [0], [1], [0, 0, 1, 1], [], []>} : vector<64x32xf32>, vector<32x32xf32>, vector<64x32xf32> -> vector<64x32xf32>
    %c0_56 = arith.constant 0 : index
    %c0_57 = arith.constant 0 : index
    %c0_58 = arith.constant 0 : index
    %107 = vector.load %arg13[%c0_56, %c0_57, %c0_58] : memref<1x1x32xf32, #tpu.memory_space<vmem>>, vector<1x1x32xf32>
    %108 = vector.shape_cast %107 : vector<1x1x32xf32> to vector<1x32xf32>
    %109 = vector.broadcast %108 : vector<1x32xf32> to vector<64x32xf32>
    %110 = arith.addf %106, %109 : vector<64x32xf32>
    %111 = arith.addf %110, %30 : vector<64x32xf32>
    %c0_59 = arith.constant 0 : index
    %c0_60 = arith.constant 0 : index
    %c0_61 = arith.constant 0 : index
    %112 = vector.load %arg14[%c0_59, %c0_60, %c0_61] : memref<1x1x32xf32, #tpu.memory_space<vmem>>, vector<1x1x32xf32>
    %113 = vector.shape_cast %112 : vector<1x1x32xf32> to vector<1x32xf32>
    %c0_62 = arith.constant 0 : index
    %c0_63 = arith.constant 0 : index
    %c0_64 = arith.constant 0 : index
    %114 = vector.load %arg15[%c0_62, %c0_63, %c0_64] : memref<1x1x32xf32, #tpu.memory_space<vmem>>, vector<1x1x32xf32>
    %115 = vector.shape_cast %114 : vector<1x1x32xf32> to vector<1x32xf32>
    %cst_65 = arith.constant dense<0.000000e+00> : vector<64xf32>
    %116 = vector.multi_reduction <add>, %111, %cst_65 [1] : vector<64x32xf32> to vector<64xf32>
    %117 = vector.shape_cast %116 : vector<64xf32> to vector<64x1xf32>
    %cst_66 = arith.constant 3.200000e+01 : f32
    %118 = vector.broadcast %cst_66 : f32 to vector<64x1xf32>
    %119 = arith.divf %117, %118 : vector<64x1xf32>
    %120 = vector.broadcast %119 : vector<64x1xf32> to vector<64x32xf32>
    %121 = arith.subf %111, %120 : vector<64x32xf32>
    %122 = arith.mulf %121, %121 : vector<64x32xf32>
    %cst_67 = arith.constant dense<0.000000e+00> : vector<64xf32>
    %123 = vector.multi_reduction <add>, %122, %cst_67 [1] : vector<64x32xf32> to vector<64xf32>
    %124 = vector.shape_cast %123 : vector<64xf32> to vector<64x1xf32>
    %cst_68 = arith.constant 3.200000e+01 : f32
    %125 = vector.broadcast %cst_68 : f32 to vector<64x1xf32>
    %126 = arith.divf %124, %125 : vector<64x1xf32>
    %127 = vector.broadcast %119 : vector<64x1xf32> to vector<64x32xf32>
    %128 = arith.subf %111, %127 : vector<64x32xf32>
    %cst_69 = arith.constant 9.99999974E-6 : f32
    %129 = vector.broadcast %cst_69 : f32 to vector<64x1xf32>
    %130 = arith.addf %126, %129 : vector<64x1xf32>
    %131 = math.rsqrt %130 : vector<64x1xf32>
    %132 = vector.broadcast %131 : vector<64x1xf32> to vector<64x32xf32>
    %133 = arith.mulf %128, %132 : vector<64x32xf32>
    %134 = vector.broadcast %113 : vector<1x32xf32> to vector<64x32xf32>
    %135 = arith.mulf %133, %134 : vector<64x32xf32>
    %136 = vector.broadcast %115 : vector<1x32xf32> to vector<64x32xf32>
    %137 = arith.addf %135, %136 : vector<64x32xf32>
    %c0_70 = arith.constant 0 : index
    %c0_71 = arith.constant 0 : index
    %c0_72 = arith.constant 0 : index
    %138 = vector.load %arg16[%c0_70, %c0_71, %c0_72] : memref<1x32x32xf32, #tpu.memory_space<vmem>>, vector<1x32x32xf32>
    %139 = vector.shape_cast %138 : vector<1x32x32xf32> to vector<32x32xf32>
    %cst_73 = arith.constant dense<0.000000e+00> : vector<64x32xf32>
    %140 = tpu.matmul %137, %139, %cst_73 {dimension_numbers = #tpu.dot_dimension_numbers<[1], [0], [0], [1], [0, 0, 1, 1], [], []>} : vector<64x32xf32>, vector<32x32xf32>, vector<64x32xf32> -> vector<64x32xf32>
    %c0_74 = arith.constant 0 : index
    %c0_75 = arith.constant 0 : index
    %c0_76 = arith.constant 0 : index
    %141 = vector.load %arg17[%c0_74, %c0_75, %c0_76] : memref<1x32x32xf32, #tpu.memory_space<vmem>>, vector<1x32x32xf32>
    %142 = vector.shape_cast %141 : vector<1x32x32xf32> to vector<32x32xf32>
    %cst_77 = arith.constant dense<0.000000e+00> : vector<256x32xf32>
    %143 = tpu.matmul %33, %142, %cst_77 {dimension_numbers = #tpu.dot_dimension_numbers<[1], [0], [0], [1], [0, 0, 1, 1], [], []>} : vector<256x32xf32>, vector<32x32xf32>, vector<256x32xf32> -> vector<256x32xf32>
    %144 = vector.shape_cast %143 : vector<256x32xf32> to vector<4x64x32xf32>
    %c0_78 = arith.constant 0 : index
    %c0_79 = arith.constant 0 : index
    %c0_80 = arith.constant 0 : index
    %145 = vector.load %arg18[%c0_78, %c0_79, %c0_80] : memref<1x32x32xf32, #tpu.memory_space<vmem>>, vector<1x32x32xf32>
    %146 = vector.shape_cast %145 : vector<1x32x32xf32> to vector<32x32xf32>
    %cst_81 = arith.constant dense<0.000000e+00> : vector<256x32xf32>
    %147 = tpu.matmul %33, %146, %cst_81 {dimension_numbers = #tpu.dot_dimension_numbers<[1], [0], [0], [1], [0, 0, 1, 1], [], []>} : vector<256x32xf32>, vector<32x32xf32>, vector<256x32xf32> -> vector<256x32xf32>
    %148 = vector.shape_cast %147 : vector<256x32xf32> to vector<4x64x32xf32>
    %149 = vector.extract_strided_slice %140 {offsets = [0, 0], sizes = [64, 16], strides = [1, 1]} : vector<64x32xf32> to vector<64x16xf32>
    %150 = vector.extract_strided_slice %144 {offsets = [0, 0, 0], sizes = [4, 64, 16], strides = [1, 1, 1]} : vector<4x64x32xf32> to vector<4x64x16xf32>
    %151 = vector.extract_strided_slice %148 {offsets = [0, 0, 0], sizes = [4, 64, 16], strides = [1, 1, 1]} : vector<4x64x32xf32> to vector<4x64x16xf32>
    %152 = vector.shape_cast %149 : vector<64x16xf32> to vector<1x64x16xf32>
    %153 = vector.broadcast %152 : vector<1x64x16xf32> to vector<4x64x16xf32>
    %154 = arith.mulf %153, %150 : vector<4x64x16xf32>
    %cst_82 = arith.constant dense<0.000000e+00> : vector<4x64xf32>
    %155 = vector.multi_reduction <add>, %154, %cst_82 [2] : vector<4x64x16xf32> to vector<4x64xf32>
    %156 = vector.shape_cast %155 : vector<4x64xf32> to vector<4x64x1xf32>
    %cst_83 = arith.constant 2.500000e-01 : f32
    %157 = vector.broadcast %cst_83 : f32 to vector<4x64x1xf32>
    %158 = arith.mulf %156, %157 : vector<4x64x1xf32>
    %cst_84 = arith.constant dense<0xFF800000> : vector<64x1xf32>
    %159 = vector.multi_reduction <maximumf>, %158, %cst_84 [0] : vector<4x64x1xf32> to vector<64x1xf32>
    %160 = vector.shape_cast %159 : vector<64x1xf32> to vector<1x64x1xf32>
    %161 = vector.broadcast %160 : vector<1x64x1xf32> to vector<4x64x1xf32>
    %162 = arith.subf %158, %161 : vector<4x64x1xf32>
    %163 = math.exp %162 : vector<4x64x1xf32>
    %cst_85 = arith.constant dense<0.000000e+00> : vector<64x1xf32>
    %164 = vector.multi_reduction <add>, %163, %cst_85 [0] : vector<4x64x1xf32> to vector<64x1xf32>
    %165 = vector.shape_cast %164 : vector<64x1xf32> to vector<1x64x1xf32>
    %166 = tpu.reciprocal %165 {approx = true} : vector<1x64x1xf32> -> vector<1x64x1xf32>
    %167 = vector.broadcast %166 : vector<1x64x1xf32> to vector<4x64x1xf32>
    %168 = arith.mulf %163, %167 : vector<4x64x1xf32>
    %169 = vector.broadcast %168 : vector<4x64x1xf32> to vector<4x64x16xf32>
    %170 = arith.mulf %169, %151 : vector<4x64x16xf32>
    %cst_86 = arith.constant dense<0.000000e+00> : vector<64x16xf32>
    %171 = vector.multi_reduction <add>, %170, %cst_86 [0] : vector<4x64x16xf32> to vector<64x16xf32>
    %172 = vector.extract_strided_slice %140 {offsets = [0, 16], sizes = [64, 16], strides = [1, 1]} : vector<64x32xf32> to vector<64x16xf32>
    %173 = vector.extract_strided_slice %144 {offsets = [0, 0, 16], sizes = [4, 64, 16], strides = [1, 1, 1]} : vector<4x64x32xf32> to vector<4x64x16xf32>
    %174 = vector.extract_strided_slice %148 {offsets = [0, 0, 16], sizes = [4, 64, 16], strides = [1, 1, 1]} : vector<4x64x32xf32> to vector<4x64x16xf32>
    %175 = vector.shape_cast %172 : vector<64x16xf32> to vector<1x64x16xf32>
    %176 = vector.broadcast %175 : vector<1x64x16xf32> to vector<4x64x16xf32>
    %177 = arith.mulf %176, %173 : vector<4x64x16xf32>
    %cst_87 = arith.constant dense<0.000000e+00> : vector<4x64xf32>
    %178 = vector.multi_reduction <add>, %177, %cst_87 [2] : vector<4x64x16xf32> to vector<4x64xf32>
    %179 = vector.shape_cast %178 : vector<4x64xf32> to vector<4x64x1xf32>
    %cst_88 = arith.constant 2.500000e-01 : f32
    %180 = vector.broadcast %cst_88 : f32 to vector<4x64x1xf32>
    %181 = arith.mulf %179, %180 : vector<4x64x1xf32>
    %cst_89 = arith.constant dense<0xFF800000> : vector<64x1xf32>
    %182 = vector.multi_reduction <maximumf>, %181, %cst_89 [0] : vector<4x64x1xf32> to vector<64x1xf32>
    %183 = vector.shape_cast %182 : vector<64x1xf32> to vector<1x64x1xf32>
    %184 = vector.broadcast %183 : vector<1x64x1xf32> to vector<4x64x1xf32>
    %185 = arith.subf %181, %184 : vector<4x64x1xf32>
    %186 = math.exp %185 : vector<4x64x1xf32>
    %cst_90 = arith.constant dense<0.000000e+00> : vector<64x1xf32>
    %187 = vector.multi_reduction <add>, %186, %cst_90 [0] : vector<4x64x1xf32> to vector<64x1xf32>
    %188 = vector.shape_cast %187 : vector<64x1xf32> to vector<1x64x1xf32>
    %189 = tpu.reciprocal %188 {approx = true} : vector<1x64x1xf32> -> vector<1x64x1xf32>
    %190 = vector.broadcast %189 : vector<1x64x1xf32> to vector<4x64x1xf32>
    %191 = arith.mulf %186, %190 : vector<4x64x1xf32>
    %192 = vector.broadcast %191 : vector<4x64x1xf32> to vector<4x64x16xf32>
    %193 = arith.mulf %192, %174 : vector<4x64x16xf32>
    %cst_91 = arith.constant dense<0.000000e+00> : vector<64x16xf32>
    %194 = vector.multi_reduction <add>, %193, %cst_91 [0] : vector<4x64x16xf32> to vector<64x16xf32>
    %195 = tpu.concatenate %171, %194 in 1 : vector<64x16xf32>, vector<64x16xf32> -> vector<64x32xf32>
    %c0_92 = arith.constant 0 : index
    %c0_93 = arith.constant 0 : index
    %c0_94 = arith.constant 0 : index
    %196 = vector.load %arg19[%c0_92, %c0_93, %c0_94] : memref<1x32x32xf32, #tpu.memory_space<vmem>>, vector<1x32x32xf32>
    %197 = vector.shape_cast %196 : vector<1x32x32xf32> to vector<32x32xf32>
    %cst_95 = arith.constant dense<0.000000e+00> : vector<64x32xf32>
    %198 = tpu.matmul %195, %197, %cst_95 {dimension_numbers = #tpu.dot_dimension_numbers<[1], [0], [0], [1], [0, 0, 1, 1], [], []>} : vector<64x32xf32>, vector<32x32xf32>, vector<64x32xf32> -> vector<64x32xf32>
    %c0_96 = arith.constant 0 : index
    %c0_97 = arith.constant 0 : index
    %c0_98 = arith.constant 0 : index
    %199 = vector.load %arg20[%c0_96, %c0_97, %c0_98] : memref<1x1x32xf32, #tpu.memory_space<vmem>>, vector<1x1x32xf32>
    %200 = vector.shape_cast %199 : vector<1x1x32xf32> to vector<1x32xf32>
    %201 = vector.broadcast %200 : vector<1x32xf32> to vector<64x32xf32>
    %202 = arith.addf %198, %201 : vector<64x32xf32>
    %203 = arith.addf %202, %111 : vector<64x32xf32>
    %c0_99 = arith.constant 0 : index
    %c0_100 = arith.constant 0 : index
    %c0_101 = arith.constant 0 : index
    %204 = vector.load %arg21[%c0_99, %c0_100, %c0_101] : memref<1x1x32xf32, #tpu.memory_space<vmem>>, vector<1x1x32xf32>
    %205 = vector.shape_cast %204 : vector<1x1x32xf32> to vector<1x32xf32>
    %c0_102 = arith.constant 0 : index
    %c0_103 = arith.constant 0 : index
    %c0_104 = arith.constant 0 : index
    %206 = vector.load %arg22[%c0_102, %c0_103, %c0_104] : memref<1x1x32xf32, #tpu.memory_space<vmem>>, vector<1x1x32xf32>
    %207 = vector.shape_cast %206 : vector<1x1x32xf32> to vector<1x32xf32>
    %cst_105 = arith.constant dense<0.000000e+00> : vector<64xf32>
    %208 = vector.multi_reduction <add>, %203, %cst_105 [1] : vector<64x32xf32> to vector<64xf32>
    %209 = vector.shape_cast %208 : vector<64xf32> to vector<64x1xf32>
    %cst_106 = arith.constant 3.200000e+01 : f32
    %210 = vector.broadcast %cst_106 : f32 to vector<64x1xf32>
    %211 = arith.divf %209, %210 : vector<64x1xf32>
    %212 = vector.broadcast %211 : vector<64x1xf32> to vector<64x32xf32>
    %213 = arith.subf %203, %212 : vector<64x32xf32>
    %214 = arith.mulf %213, %213 : vector<64x32xf32>
    %cst_107 = arith.constant dense<0.000000e+00> : vector<64xf32>
    %215 = vector.multi_reduction <add>, %214, %cst_107 [1] : vector<64x32xf32> to vector<64xf32>
    %216 = vector.shape_cast %215 : vector<64xf32> to vector<64x1xf32>
    %cst_108 = arith.constant 3.200000e+01 : f32
    %217 = vector.broadcast %cst_108 : f32 to vector<64x1xf32>
    %218 = arith.divf %216, %217 : vector<64x1xf32>
    %219 = vector.broadcast %211 : vector<64x1xf32> to vector<64x32xf32>
    %220 = arith.subf %203, %219 : vector<64x32xf32>
    %cst_109 = arith.constant 9.99999974E-6 : f32
    %221 = vector.broadcast %cst_109 : f32 to vector<64x1xf32>
    %222 = arith.addf %218, %221 : vector<64x1xf32>
    %223 = math.rsqrt %222 : vector<64x1xf32>
    %224 = vector.broadcast %223 : vector<64x1xf32> to vector<64x32xf32>
    %225 = arith.mulf %220, %224 : vector<64x32xf32>
    %226 = vector.broadcast %205 : vector<1x32xf32> to vector<64x32xf32>
    %227 = arith.mulf %225, %226 : vector<64x32xf32>
    %228 = vector.broadcast %207 : vector<1x32xf32> to vector<64x32xf32>
    %229 = arith.addf %227, %228 : vector<64x32xf32>
    %c0_110 = arith.constant 0 : index
    %c0_111 = arith.constant 0 : index
    %c0_112 = arith.constant 0 : index
    %230 = vector.load %arg23[%c0_110, %c0_111, %c0_112] : memref<1x32x256xf32, #tpu.memory_space<vmem>>, vector<1x32x256xf32>
    %231 = vector.shape_cast %230 : vector<1x32x256xf32> to vector<32x256xf32>
    %cst_113 = arith.constant dense<0.000000e+00> : vector<64x256xf32>
    %232 = tpu.matmul %229, %231, %cst_113 {dimension_numbers = #tpu.dot_dimension_numbers<[1], [0], [0], [1], [0, 0, 1, 1], [], []>} : vector<64x32xf32>, vector<32x256xf32>, vector<64x256xf32> -> vector<64x256xf32>
    %c0_114 = arith.constant 0 : index
    %c0_115 = arith.constant 0 : index
    %c0_116 = arith.constant 0 : index
    %233 = vector.load %arg24[%c0_114, %c0_115, %c0_116] : memref<1x1x256xf32, #tpu.memory_space<vmem>>, vector<1x1x256xf32>
    %234 = vector.shape_cast %233 : vector<1x1x256xf32> to vector<1x256xf32>
    %235 = vector.broadcast %234 : vector<1x256xf32> to vector<64x256xf32>
    %236 = arith.addf %232, %235 : vector<64x256xf32>
    %237 = vector.extract_strided_slice %236 {offsets = [0, 0], sizes = [64, 128], strides = [1, 1]} : vector<64x256xf32> to vector<64x128xf32>
    %238 = vector.extract_strided_slice %236 {offsets = [0, 128], sizes = [64, 128], strides = [1, 1]} : vector<64x256xf32> to vector<64x128xf32>
    %cst_117 = arith.constant 5.000000e-01 : f32
    %239 = vector.broadcast %cst_117 : f32 to vector<64x128xf32>
    %240 = arith.mulf %239, %238 : vector<64x128xf32>
    %cst_118 = arith.constant 4.471500e-02 : f32
    %241 = vector.broadcast %cst_118 : f32 to vector<64x128xf32>
    %242 = arith.mulf %241, %238 : vector<64x128xf32>
    %243 = arith.mulf %242, %238 : vector<64x128xf32>
    %244 = arith.mulf %243, %238 : vector<64x128xf32>
    %245 = arith.addf %238, %244 : vector<64x128xf32>
    %cst_119 = arith.constant 0.797884583 : f32
    %246 = vector.broadcast %cst_119 : f32 to vector<64x128xf32>
    %247 = arith.mulf %246, %245 : vector<64x128xf32>
    %248 = math.tanh %247 : vector<64x128xf32>
    %cst_120 = arith.constant 1.000000e+00 : f32
    %249 = vector.broadcast %cst_120 : f32 to vector<64x128xf32>
    %250 = arith.addf %249, %248 : vector<64x128xf32>
    %251 = arith.mulf %240, %250 : vector<64x128xf32>
    %252 = arith.mulf %237, %251 : vector<64x128xf32>
    %c0_121 = arith.constant 0 : index
    %c0_122 = arith.constant 0 : index
    %c0_123 = arith.constant 0 : index
    %253 = vector.load %arg25[%c0_121, %c0_122, %c0_123] : memref<1x128x32xf32, #tpu.memory_space<vmem>>, vector<1x128x32xf32>
    %254 = vector.shape_cast %253 : vector<1x128x32xf32> to vector<128x32xf32>
    %cst_124 = arith.constant dense<0.000000e+00> : vector<64x32xf32>
    %255 = tpu.matmul %252, %254, %cst_124 {dimension_numbers = #tpu.dot_dimension_numbers<[1], [0], [0], [1], [0, 0, 1, 1], [], []>} : vector<64x128xf32>, vector<128x32xf32>, vector<64x32xf32> -> vector<64x32xf32>
    %c0_125 = arith.constant 0 : index
    %c0_126 = arith.constant 0 : index
    %c0_127 = arith.constant 0 : index
    %256 = vector.load %arg26[%c0_125, %c0_126, %c0_127] : memref<1x1x32xf32, #tpu.memory_space<vmem>>, vector<1x1x32xf32>
    %257 = vector.shape_cast %256 : vector<1x1x32xf32> to vector<1x32xf32>
    %258 = vector.broadcast %257 : vector<1x32xf32> to vector<64x32xf32>
    %259 = arith.addf %255, %258 : vector<64x32xf32>
    %260 = arith.addf %259, %203 : vector<64x32xf32>
    %c0_128 = arith.constant 0 : index
    %c0_129 = arith.constant 0 : index
    %261 = vector.load %arg27[%c0_128, %c0_129] : memref<32x32xf32, #tpu.memory_space<vmem>>, vector<32x32xf32>
    %cst_130 = arith.constant dense<0.000000e+00> : vector<64x32xf32>
    %262 = tpu.matmul %260, %261, %cst_130 {dimension_numbers = #tpu.dot_dimension_numbers<[1], [0], [0], [1], [0, 0, 1, 1], [], []>} : vector<64x32xf32>, vector<32x32xf32>, vector<64x32xf32> -> vector<64x32xf32>
    %c0_131 = arith.constant 0 : index
    %c0_132 = arith.constant 0 : index
    %263 = vector.load %arg28[%c0_131, %c0_132] : memref<1x32xf32, #tpu.memory_space<vmem>>, vector<1x32xf32>
    %264 = vector.broadcast %263 : vector<1x32xf32> to vector<64x32xf32>
    %265 = arith.addf %262, %264 : vector<64x32xf32>
    %266 = arith.addf %265, %1 : vector<64x32xf32>
    %c0_133 = arith.constant 0 : index
    %c0_134 = arith.constant 0 : index
    %c0_135 = arith.constant 0 : index
    %267 = vector.load %arg29[%c0_133, %c0_134, %c0_135] : memref<1x64x32xf32, #tpu.memory_space<vmem>>, vector<1x64x32xf32>
    %268 = vector.shape_cast %267 : vector<1x64x32xf32> to vector<64x32xf32>
    %269 = vector.shape_cast %266 : vector<64x32xf32> to vector<1x64x32xf32>
    tpu.vector_store %arg29[%c0_133, %c0_134, %c0_135], %269 {strides = array<i32>} : memref<1x64x32xf32, #tpu.memory_space<vmem>>, vector<1x64x32xf32>,
    return
  }
  func.func @transform_0(%arg0: i32) -> (i32, i32, i32) {
    %c0_i32 = arith.constant 0 : i32
    %c0_i32_0 = arith.constant 0 : i32
    %c0_i32_1 = arith.constant 0 : i32
    return %arg0, %c0_i32, %c0_i32_0 : i32, i32, i32
  }
  func.func @transform_1(%arg0: i32) -> (i32, i32, i32, i32) {
    %c0_i32 = arith.constant 0 : i32
    %c0_i32_0 = arith.constant 0 : i32
    %c0_i32_1 = arith.constant 0 : i32
    %c0_i32_2 = arith.constant 0 : i32
    return %arg0, %c0_i32, %c0_i32_0, %c0_i32_1 : i32, i32, i32, i32
  }
  func.func @transform_2(%arg0: i32) -> (i32, i32) {
    %c0_i32 = arith.constant 0 : i32
    %c0_i32_0 = arith.constant 0 : i32
    %c0_i32_1 = arith.constant 0 : i32
    return %c0_i32, %c0_i32_0 : i32, i32
  }
  func.func @transform_3(%arg0: i32) -> (i32, i32) {
    %c0_i32 = arith.constant 0 : i32
    %c0_i32_0 = arith.constant 0 : i32
    %c0_i32_1 = arith.constant 0 : i32
    return %c0_i32, %c0_i32_0 : i32, i32
  }
  func.func @transform_4(%arg0: i32) -> (i32, i32) {
    %c0_i32 = arith.constant 0 : i32
    %c0_i32_0 = arith.constant 0 : i32
    %c0_i32_1 = arith.constant 0 : i32
    return %c0_i32, %c0_i32_0 : i32, i32
  }
  func.func @transform_5(%arg0: i32) -> (i32, i32) {
    %c0_i32 = arith.constant 0 : i32
    %c0_i32_0 = arith.constant 0 : i32
    %c0_i32_1 = arith.constant 0 : i32
    return %c0_i32, %c0_i32_0 : i32, i32
  }
  func.func @transform_6(%arg0: i32) -> (i32, i32, i32) {
    %c0_i32 = arith.constant 0 : i32
    %c0_i32_0 = arith.constant 0 : i32
    %c0_i32_1 = arith.constant 0 : i32
    %c0_i32_2 = arith.constant 0 : i32
    return %c0_i32, %c0_i32_0, %c0_i32_1 : i32, i32, i32
  }
  func.func @transform_7(%arg0: i32) -> (i32, i32, i32) {
    %c0_i32 = arith.constant 0 : i32
    %c0_i32_0 = arith.constant 0 : i32
    %c0_i32_1 = arith.constant 0 : i32
    %c0_i32_2 = arith.constant 0 : i32
    return %c0_i32, %c0_i32_0, %c0_i32_1 : i32, i32, i32
  }
  func.func @transform_8(%arg0: i32) -> (i32, i32, i32) {
    %c0_i32 = arith.constant 0 : i32
    %c0_i32_0 = arith.constant 0 : i32
    %c0_i32_1 = arith.constant 0 : i32
    %c0_i32_2 = arith.constant 0 : i32
    return %c0_i32, %c0_i32_0, %c0_i32_1 : i32, i32, i32
  }
  func.func @transform_9(%arg0: i32) -> (i32, i32, i32) {
    %c0_i32 = arith.constant 0 : i32
    %c0_i32_0 = arith.constant 0 : i32
    %c0_i32_1 = arith.constant 0 : i32
    %c0_i32_2 = arith.constant 0 : i32
    return %c0_i32, %c0_i32_0, %c0_i32_1 : i32, i32, i32
  }
  func.func @transform_10(%arg0: i32) -> (i32, i32, i32) {
    %c0_i32 = arith.constant 0 : i32
    %c0_i32_0 = arith.constant 0 : i32
    %c0_i32_1 = arith.constant 0 : i32
    %c0_i32_2 = arith.constant 0 : i32
    return %c0_i32, %c0_i32_0, %c0_i32_1 : i32, i32, i32
  }
  func.func @transform_11(%arg0: i32) -> (i32, i32, i32) {
    %c0_i32 = arith.constant 0 : i32
    %c0_i32_0 = arith.constant 0 : i32
    %c0_i32_1 = arith.constant 0 : i32
    %c0_i32_2 = arith.constant 0 : i32
    return %c0_i32, %c0_i32_0, %c0_i32_1 : i32, i32, i32
  }
  func.func @transform_12(%arg0: i32) -> (i32, i32, i32) {
    %c0_i32 = arith.constant 0 : i32
    %c0_i32_0 = arith.constant 0 : i32
    %c0_i32_1 = arith.constant 0 : i32
    %c0_i32_2 = arith.constant 0 : i32
    return %c0_i32, %c0_i32_0, %c0_i32_1 : i32, i32, i32
  }
  func.func @transform_13(%arg0: i32) -> (i32, i32, i32) {
    %c0_i32 = arith.constant 0 : i32
    %c0_i32_0 = arith.constant 0 : i32
    %c0_i32_1 = arith.constant 0 : i32
    %c0_i32_2 = arith.constant 0 : i32
    return %c0_i32, %c0_i32_0, %c0_i32_1 : i32, i32, i32
  }
  func.func @transform_14(%arg0: i32) -> (i32, i32, i32) {
    %c0_i32 = arith.constant 0 : i32
    %c0_i32_0 = arith.constant 0 : i32
    %c0_i32_1 = arith.constant 0 : i32
    %c0_i32_2 = arith.constant 0 : i32
    return %c0_i32, %c0_i32_0, %c0_i32_1 : i32, i32, i32
  }
  func.func @transform_15(%arg0: i32) -> (i32, i32, i32) {
    %c0_i32 = arith.constant 0 : i32
    %c0_i32_0 = arith.constant 0 : i32
    %c0_i32_1 = arith.constant 0 : i32
    %c0_i32_2 = arith.constant 0 : i32
    return %c0_i32, %c0_i32_0, %c0_i32_1 : i32, i32, i32
  }
  func.func @transform_16(%arg0: i32) -> (i32, i32, i32) {
    %c0_i32 = arith.constant 0 : i32
    %c0_i32_0 = arith.constant 0 : i32
    %c0_i32_1 = arith.constant 0 : i32
    %c0_i32_2 = arith.constant 0 : i32
    return %c0_i32, %c0_i32_0, %c0_i32_1 : i32, i32, i32
  }
  func.func @transform_17(%arg0: i32) -> (i32, i32, i32) {
    %c0_i32 = arith.constant 0 : i32
    %c0_i32_0 = arith.constant 0 : i32
    %c0_i32_1 = arith.constant 0 : i32
    %c0_i32_2 = arith.constant 0 : i32
    return %c0_i32, %c0_i32_0, %c0_i32_1 : i32, i32, i32
  }
  func.func @transform_18(%arg0: i32) -> (i32, i32, i32) {
    %c0_i32 = arith.constant 0 : i32
    %c0_i32_0 = arith.constant 0 : i32
    %c0_i32_1 = arith.constant 0 : i32
    %c0_i32_2 = arith.constant 0 : i32
    return %c0_i32, %c0_i32_0, %c0_i32_1 : i32, i32, i32
  }
  func.func @transform_19(%arg0: i32) -> (i32, i32, i32) {
    %c0_i32 = arith.constant 0 : i32
    %c0_i32_0 = arith.constant 0 : i32
    %c0_i32_1 = arith.constant 0 : i32
    %c0_i32_2 = arith.constant 0 : i32
    return %c0_i32, %c0_i32_0, %c0_i32_1 : i32, i32, i32
  }
  func.func @transform_20(%arg0: i32) -> (i32, i32, i32) {
    %c0_i32 = arith.constant 0 : i32
    %c0_i32_0 = arith.constant 0 : i32
    %c0_i32_1 = arith.constant 0 : i32
    %c0_i32_2 = arith.constant 0 : i32
    return %c0_i32, %c0_i32_0, %c0_i32_1 : i32, i32, i32
  }
  func.func @transform_21(%arg0: i32) -> (i32, i32, i32) {
    %c0_i32 = arith.constant 0 : i32
    %c0_i32_0 = arith.constant 0 : i32
    %c0_i32_1 = arith.constant 0 : i32
    %c0_i32_2 = arith.constant 0 : i32
    return %c0_i32, %c0_i32_0, %c0_i32_1 : i32, i32, i32
  }
  func.func @transform_22(%arg0: i32) -> (i32, i32, i32) {
    %c0_i32 = arith.constant 0 : i32
    %c0_i32_0 = arith.constant 0 : i32
    %c0_i32_1 = arith.constant 0 : i32
    %c0_i32_2 = arith.constant 0 : i32
    return %c0_i32, %c0_i32_0, %c0_i32_1 : i32, i32, i32
  }
  func.func @transform_23(%arg0: i32) -> (i32, i32, i32) {
    %c0_i32 = arith.constant 0 : i32
    %c0_i32_0 = arith.constant 0 : i32
    %c0_i32_1 = arith.constant 0 : i32
    %c0_i32_2 = arith.constant 0 : i32
    return %c0_i32, %c0_i32_0, %c0_i32_1 : i32, i32, i32
  }
  func.func @transform_24(%arg0: i32) -> (i32, i32, i32) {
    %c0_i32 = arith.constant 0 : i32
    %c0_i32_0 = arith.constant 0 : i32
    %c0_i32_1 = arith.constant 0 : i32
    %c0_i32_2 = arith.constant 0 : i32
    return %c0_i32, %c0_i32_0, %c0_i32_1 : i32, i32, i32
  }
  func.func @transform_25(%arg0: i32) -> (i32, i32, i32) {
    %c0_i32 = arith.constant 0 : i32
    %c0_i32_0 = arith.constant 0 : i32
    %c0_i32_1 = arith.constant 0 : i32
    %c0_i32_2 = arith.constant 0 : i32
    return %c0_i32, %c0_i32_0, %c0_i32_1 : i32, i32, i32
  }
  func.func @transform_26(%arg0: i32) -> (i32, i32) {
    %c0_i32 = arith.constant 0 : i32
    %c0_i32_0 = arith.constant 0 : i32
    %c0_i32_1 = arith.constant 0 : i32
    return %c0_i32, %c0_i32_0 : i32, i32
  }
  func.func @transform_27(%arg0: i32) -> (i32, i32) {
    %c0_i32 = arith.constant 0 : i32
    %c0_i32_0 = arith.constant 0 : i32
    %c0_i32_1 = arith.constant 0 : i32
    return %c0_i32, %c0_i32_0 : i32, i32
  }
  func.func @transform_28(%arg0: i32) -> (i32, i32, i32) {
    %c0_i32 = arith.constant 0 : i32
    %c0_i32_0 = arith.constant 0 : i32
    %c0_i32_1 = arith.constant 0 : i32
    return %arg0, %c0_i32, %c0_i32_0 : i32, i32, i32
  }
}

</mosaic_0001>

<llo_original>
// kernel: tpu_custom_call.1
$region0: #{tpu_custom_call.1}
  #allocation0 [shape = 'u32[]', space=smem, size = 0x4, offset = 0x4, fixed_abs, tag = 'smem constant byte address 0x4 - core index']
  #allocation1 [shape = 'u32[144,128]{1,0:T(1,128)}', space=vmem, size = 0x12000, scoped, tag = 'internal scratch']
  %s0 = inlined_call_operand.vmem [shape: f32[2,64,32], index: 0, kind: input, shape index: {}]
  %s1 = inlined_call_operand.vmem [shape: f32[2,4,64,32], index: 1, kind: input, shape index: {}]
  %s2 = inlined_call_operand.vmem [shape: f32[1,32], index: 2, kind: input, shape index: {}]
  %s3 = inlined_call_operand.vmem [shape: f32[1,32], index: 3, kind: input, shape index: {}]
  %s4 = inlined_call_operand.vmem [shape: f32[32,32], index: 4, kind: input, shape index: {}]
  %s5 = inlined_call_operand.vmem [shape: f32[1,32], index: 5, kind: input, shape index: {}]
  %s6 = inlined_call_operand.vmem [shape: f32[1,1,32], index: 6, kind: input, shape index: {}]
  %s7 = inlined_call_operand.vmem [shape: f32[1,1,32], index: 7, kind: input, shape index: {}]
  %s8 = inlined_call_operand.vmem [shape: f32[1,32,32], index: 8, kind: input, shape index: {}]
  %s9 = inlined_call_operand.vmem [shape: f32[1,32,32], index: 9, kind: input, shape index: {}]
  %s10 = inlined_call_operand.vmem [shape: f32[1,32,32], index: 10, kind: input, shape index: {}]
  %s11 = inlined_call_operand.vmem [shape: f32[1,32,32], index: 11, kind: input, shape index: {}]
  %s12 = inlined_call_operand.vmem [shape: f32[1,1,32], index: 12, kind: input, shape index: {}]
  %s13 = inlined_call_operand.vmem [shape: f32[1,1,32], index: 13, kind: input, shape index: {}]
  %s14 = inlined_call_operand.vmem [shape: f32[1,1,32], index: 14, kind: input, shape index: {}]
  %s15 = inlined_call_operand.vmem [shape: f32[1,32,32], index: 15, kind: input, shape index: {}]
  %s16 = inlined_call_operand.vmem [shape: f32[1,32,32], index: 16, kind: input, shape index: {}]
  %s17 = inlined_call_operand.vmem [shape: f32[1,32,32], index: 17, kind: input, shape index: {}]
  %s18 = inlined_call_operand.vmem [shape: f32[1,32,32], index: 18, kind: input, shape index: {}]
  %s19 = inlined_call_operand.vmem [shape: f32[1,1,32], index: 19, kind: input, shape index: {}]
  %s20 = inlined_call_operand.vmem [shape: f32[1,1,32], index: 20, kind: input, shape index: {}]
  %s21 = inlined_call_operand.vmem [shape: f32[1,1,32], index: 21, kind: input, shape index: {}]
  %s22 = inlined_call_operand.vmem [shape: f32[1,32,256], index: 22, kind: input, shape index: {}]
  %s23 = inlined_call_operand.vmem [shape: f32[1,1,256], index: 23, kind: input, shape index: {}]
  %s24 = inlined_call_operand.vmem [shape: f32[1,128,32], index: 24, kind: input, shape index: {}]
  %s25 = inlined_call_operand.vmem [shape: f32[1,1,32], index: 25, kind: input, shape index: {}]
  %s26 = inlined_call_operand.vmem [shape: f32[32,32], index: 26, kind: input, shape index: {}]
  %s27 = inlined_call_operand.vmem [shape: f32[1,32], index: 27, kind: input, shape index: {}]
  %s28 = inlined_call_operand.vmem [shape: f32[2,64,32], index: 28, kind: output, shape index: {}]
  %s29 = sld [smem:[#allocation0]]
  $region145: #{tpu_custom_call.1} parent=0
    _
  %s31 = ssub.s32 1, %s29
  %s32 = scalar_select 0, %s31, %s29
  loop: start=0, step=1, limit=4
  $region2: #{tpu_custom_call.1} parent=0 // loop_pre_header
    _
  $region3: #{tpu_custom_call.1} parent=0 // loop_header
    %s34 = sphi 0, %s38
    %p35 = scmp.ge.s32.totalorder %s34, 4
    %s44 = sphi 0, %s46
    %s47 = sphi 0, %s44
    %s48 = sphi 0, %s47
    %s64 = sphi 0, %s48
    %s70 = sphi 0, %s72
    %s73 = sphi 0, %s70
    %s74 = sphi 0, %s73
    %s90 = sphi 0, %s74
    %s94 = sphi 0, %s94
    %s96 = sphi 0, %s94
    %s97 = sphi 0, %s96
    %s111 = sphi 0, %s97
    %s115 = sphi 0, %s115
    %s117 = sphi 0, %s115
    %s118 = sphi 0, %s117
    %s132 = sphi 0, %s118
    %s136 = sphi 0, %s136
    %s138 = sphi 0, %s136
    %s139 = sphi 0, %s138
    %s153 = sphi 0, %s139
    %s157 = sphi 0, %s157
    %s159 = sphi 0, %s157
    %s160 = sphi 0, %s159
    %s174 = sphi 0, %s160
    %s178 = sphi 0, %s178
    %s180 = sphi 0, %s178
    %s181 = sphi 0, %s180
    %s195 = sphi 0, %s181
    %s199 = sphi 0, %s199
    %s201 = sphi 0, %s199
    %s202 = sphi 0, %s201
    %s216 = sphi 0, %s202
    %s220 = sphi 0, %s220
    %s222 = sphi 0, %s220
    %s223 = sphi 0, %s222
    %s237 = sphi 0, %s223
    %s241 = sphi 0, %s241
    %s243 = sphi 0, %s241
    %s244 = sphi 0, %s243
    %s258 = sphi 0, %s244
    %s262 = sphi 0, %s262
    %s264 = sphi 0, %s262
    %s265 = sphi 0, %s264
    %s279 = sphi 0, %s265
    %s283 = sphi 0, %s283
    %s285 = sphi 0, %s283
    %s286 = sphi 0, %s285
    %s300 = sphi 0, %s286
    %s304 = sphi 0, %s304
    %s306 = sphi 0, %s304
    %s307 = sphi 0, %s306
    %s321 = sphi 0, %s307
    %s325 = sphi 0, %s325
    %s327 = sphi 0, %s325
    %s328 = sphi 0, %s327
    %s342 = sphi 0, %s328
    %s346 = sphi 0, %s346
    %s348 = sphi 0, %s346
    %s349 = sphi 0, %s348
    %s363 = sphi 0, %s349
    %s367 = sphi 0, %s367
    %s369 = sphi 0, %s367
    %s370 = sphi 0, %s369
    %s384 = sphi 0, %s370
    %s388 = sphi 0, %s388
    %s390 = sphi 0, %s388
    %s391 = sphi 0, %s390
    %s405 = sphi 0, %s391
    %s409 = sphi 0, %s409
    %s411 = sphi 0, %s409
    %s412 = sphi 0, %s411
    %s426 = sphi 0, %s412
    %s430 = sphi 0, %s430
    %s432 = sphi 0, %s430
    %s433 = sphi 0, %s432
    %s447 = sphi 0, %s433
    %s451 = sphi 0, %s451
    %s453 = sphi 0, %s451
    %s454 = sphi 0, %s453
    %s468 = sphi 0, %s454
    %s472 = sphi 0, %s472
    %s474 = sphi 0, %s472
    %s475 = sphi 0, %s474
    %s489 = sphi 0, %s475
    %s493 = sphi 0, %s493
    %s495 = sphi 0, %s493
    %s496 = sphi 0, %s495
    %s510 = sphi 0, %s496
    %s514 = sphi 0, %s514
    %s516 = sphi 0, %s514
    %s517 = sphi 0, %s516
    %s531 = sphi 0, %s517
    %s535 = sphi 0, %s535
    %s537 = sphi 0, %s535
    %s538 = sphi 0, %s537
    %s552 = sphi 0, %s538
    %s556 = sphi 0, %s556
    %s558 = sphi 0, %s556
    %s559 = sphi 0, %s558
    %s573 = sphi 0, %s559
    %s577 = sphi 0, %s577
    %s579 = sphi 0, %s577
    %s580 = sphi 0, %s579
    %s594 = sphi 0, %s580
    %s598 = sphi 0, %s598
    %s600 = sphi 0, %s598
    %s601 = sphi 0, %s600
    %s615 = sphi 0, %s601
    %s619 = sphi 0, %s619
    %s621 = sphi 0, %s619
    %s622 = sphi 0, %s621
    %s636 = sphi 0, %s622
    %s642 = sphi 0, %s644
    %s645 = sphi 0, %s642
    %s646 = sphi 0, %s645
    %s662 = sphi 0, %s646
  $region4: #{tpu_custom_call.1} parent=0 // loop_header_branch
    %37 = sbr.rel (%p35) target = $region8
  $region5: #{tpu_custom_call.1} parent=0 // loop_body
    %s39 = ssub.s32 %s34, 1
    %s40 = ssub.s32 %s34, 2
    %s41 = sadd.s32 %s34, 1
    %s42 = ssub.s32 %s34, %s41
    %p43 = scmp.eq.s32.totalorder %s42, 0
    %s45 = sadd.s32 %s44, 1
    %s46 = scalar_select %p43, %s44, %s45
    %p49 = pneg %p43
    %p50 = scmp.eq.s32.totalorder %s34, 1
    %p51 = por %p49, %p50
    %p52 = scmp.ne.s32.totalorder %s44, %s47
    %p53 = scmp.eq.s32.totalorder %s34, 0
    %p54 = por %p52, %p53
    %p55 = scmp.ne.s32.totalorder %s44, %s47
    %p56 = scmp.eq.s32.totalorder %s39, 1
    %p57 = por %p55, %p56
    %p58 = scmp.ne.s32.totalorder %s47, %s48
    %p59 = scmp.eq.s32.totalorder %s39, 0
    %p60 = por %p58, %p59
    %p61 = scmp.ne.s32.totalorder %s47, %s48
    %p62 = scmp.eq.s32.totalorder %s40, 1
    %p63 = por %p61, %p62
    %p65 = scmp.ne.s32.totalorder %s48, %s64
    %p66 = scmp.eq.s32.totalorder %s40, 0
    %p67 = por %p65, %p66
    %s68 = ssub.s32 %s34, %s41
    %p69 = scmp.eq.s32.totalorder %s68, 0
    %s71 = sadd.s32 %s70, 1
    %s72 = scalar_select %p69, %s70, %s71
    %p75 = pneg %p69
    %p76 = scmp.eq.s32.totalorder %s34, 1
    %p77 = por %p75, %p76
    %p78 = scmp.ne.s32.totalorder %s70, %s73
    %p79 = scmp.eq.s32.totalorder %s34, 0
    %p80 = por %p78, %p79
    %p81 = scmp.ne.s32.totalorder %s70, %s73
    %p82 = scmp.eq.s32.totalorder %s39, 1
    %p83 = por %p81, %p82
    %p84 = scmp.ne.s32.totalorder %s73, %s74
    %p85 = scmp.eq.s32.totalorder %s39, 0
    %p86 = por %p84, %p85
    %p87 = scmp.ne.s32.totalorder %s73, %s74
    %p88 = scmp.eq.s32.totalorder %s40, 1
    %p89 = por %p87, %p88
    %p91 = scmp.ne.s32.totalorder %s74, %s90
    %p92 = scmp.eq.s32.totalorder %s40, 0
    %p93 = por %p91, %p92
    %s95 = sadd.s32 %s94, 1
    %p98 = scmp.eq.s32.totalorder %s34, 1
    %p99 = scmp.ne.s32.totalorder %s94, %s96
    %p100 = scmp.eq.s32.totalorder %s34, 0
    %p101 = por %p99, %p100
    %p102 = scmp.ne.s32.totalorder %s94, %s96
    %p103 = scmp.eq.s32.totalorder %s39, 1
    %p104 = por %p102, %p103
    %p105 = scmp.ne.s32.totalorder %s96, %s97
    %p106 = scmp.eq.s32.totalorder %s39, 0
    %p107 = por %p105, %p106
    %p108 = scmp.ne.s32.totalorder %s96, %s97
    %p109 = scmp.eq.s32.totalorder %s40, 1
    %p110 = por %p108, %p109
    %p112 = scmp.ne.s32.totalorder %s97, %s111
    %p113 = scmp.eq.s32.totalorder %s40, 0
    %p114 = por %p112, %p113
    %s116 = sadd.s32 %s115, 1
    %p119 = scmp.eq.s32.totalorder %s34, 1
    %p120 = scmp.ne.s32.totalorder %s115, %s117
    %p121 = scmp.eq.s32.totalorder %s34, 0
    %p122 = por %p120, %p121
    %p123 = scmp.ne.s32.totalorder %s115, %s117
    %p124 = scmp.eq.s32.totalorder %s39, 1
    %p125 = por %p123, %p124
    %p126 = scmp.ne.s32.totalorder %s117, %s118
    %p127 = scmp.eq.s32.totalorder %s39, 0
    %p128 = por %p126, %p127
    %p129 = scmp.ne.s32.totalorder %s117, %s118
    %p130 = scmp.eq.s32.totalorder %s40, 1
    %p131 = por %p129, %p130
    %p133 = scmp.ne.s32.totalorder %s118, %s132
    %p134 = scmp.eq.s32.totalorder %s40, 0
    %p135 = por %p133, %p134
    %s137 = sadd.s32 %s136, 1
    %p140 = scmp.eq.s32.totalorder %s34, 1
    %p141 = scmp.ne.s32.totalorder %s136, %s138
    %p142 = scmp.eq.s32.totalorder %s34, 0
    %p143 = por %p141, %p142
    %p144 = scmp.ne.s32.totalorder %s136, %s138
    %p145 = scmp.eq.s32.totalorder %s39, 1
    %p146 = por %p144, %p145
    %p147 = scmp.ne.s32.totalorder %s138, %s139
    %p148 = scmp.eq.s32.totalorder %s39, 0
    %p149 = por %p147, %p148
    %p150 = scmp.ne.s32.totalorder %s138, %s139
    %p151 = scmp.eq.s32.totalorder %s40, 1
    %p152 = por %p150, %p151
    %p154 = scmp.ne.s32.totalorder %s139, %s153
    %p155 = scmp.eq.s32.totalorder %s40, 0
    %p156 = por %p154, %p155
    %s158 = sadd.s32 %s157, 1
    %p161 = scmp.eq.s32.totalorder %s34, 1
    %p162 = scmp.ne.s32.totalorder %s157, %s159
    %p163 = scmp.eq.s32.totalorder %s34, 0
    %p164 = por %p162, %p163
    %p165 = scmp.ne.s32.totalorder %s157, %s159
    %p166 = scmp.eq.s32.totalorder %s39, 1
    %p167 = por %p165, %p166
    %p168 = scmp.ne.s32.totalorder %s159, %s160
    %p169 = scmp.eq.s32.totalorder %s39, 0
    %p170 = por %p168, %p169
    %p171 = scmp.ne.s32.totalorder %s159, %s160
    %p172 = scmp.eq.s32.totalorder %s40, 1
    %p173 = por %p171, %p172
    %p175 = scmp.ne.s32.totalorder %s160, %s174
    %p176 = scmp.eq.s32.totalorder %s40, 0
    %p177 = por %p175, %p176
    %s179 = sadd.s32 %s178, 1
    %p182 = scmp.eq.s32.totalorder %s34, 1
    %p183 = scmp.ne.s32.totalorder %s178, %s180
    %p184 = scmp.eq.s32.totalorder %s34, 0
    %p185 = por %p183, %p184
    %p186 = scmp.ne.s32.totalorder %s178, %s180
    %p187 = scmp.eq.s32.totalorder %s39, 1
    %p188 = por %p186, %p187
    %p189 = scmp.ne.s32.totalorder %s180, %s181
    %p190 = scmp.eq.s32.totalorder %s39, 0
    %p191 = por %p189, %p190
    %p192 = scmp.ne.s32.totalorder %s180, %s181
    %p193 = scmp.eq.s32.totalorder %s40, 1
    %p194 = por %p192, %p193
    %p196 = scmp.ne.s32.totalorder %s181, %s195
    %p197 = scmp.eq.s32.totalorder %s40, 0
    %p198 = por %p196, %p197
    %s200 = sadd.s32 %s199, 1
    %p203 = scmp.eq.s32.totalorder %s34, 1
    %p204 = scmp.ne.s32.totalorder %s199, %s201
    %p205 = scmp.eq.s32.totalorder %s34, 0
    %p206 = por %p204, %p205
    %p207 = scmp.ne.s32.totalorder %s199, %s201
    %p208 = scmp.eq.s32.totalorder %s39, 1
    %p209 = por %p207, %p208
    %p210 = scmp.ne.s32.totalorder %s201, %s202
    %p211 = scmp.eq.s32.totalorder %s39, 0
    %p212 = por %p210, %p211
    %p213 = scmp.ne.s32.totalorder %s201, %s202
    %p214 = scmp.eq.s32.totalorder %s40, 1
    %p215 = por %p213, %p214
    %p217 = scmp.ne.s32.totalorder %s202, %s216
    %p218 = scmp.eq.s32.totalorder %s40, 0
    %p219 = por %p217, %p218
    %s221 = sadd.s32 %s220, 1
    %p224 = scmp.eq.s32.totalorder %s34, 1
    %p225 = scmp.ne.s32.totalorder %s220, %s222
    %p226 = scmp.eq.s32.totalorder %s34, 0
    %p227 = por %p225, %p226
    %p228 = scmp.ne.s32.totalorder %s220, %s222
    %p229 = scmp.eq.s32.totalorder %s39, 1
    %p230 = por %p228, %p229
    %p231 = scmp.ne.s32.totalorder %s222, %s223
    %p232 = scmp.eq.s32.totalorder %s39, 0
    %p233 = por %p231, %p232
    %p234 = scmp.ne.s32.totalorder %s222, %s223
    %p235 = scmp.eq.s32.totalorder %s40, 1
    %p236 = por %p234, %p235
    %p238 = scmp.ne.s32.totalorder %s223, %s237
    %p239 = scmp.eq.s32.totalorder %s40, 0
    %p240 = por %p238, %p239
    %s242 = sadd.s32 %s241, 1
    %p245 = scmp.eq.s32.totalorder %s34, 1
    %p246 = scmp.ne.s32.totalorder %s241, %s243
    %p247 = scmp.eq.s32.totalorder %s34, 0
    %p248 = por %p246, %p247
    %p249 = scmp.ne.s32.totalorder %s241, %s243
    %p250 = scmp.eq.s32.totalorder %s39, 1
    %p251 = por %p249, %p250
    %p252 = scmp.ne.s32.totalorder %s243, %s244
    %p253 = scmp.eq.s32.totalorder %s39, 0
    %p254 = por %p252, %p253
    %p255 = scmp.ne.s32.totalorder %s243, %s244
    %p256 = scmp.eq.s32.totalorder %s40, 1
    %p257 = por %p255, %p256
    %p259 = scmp.ne.s32.totalorder %s244, %s258
    %p260 = scmp.eq.s32.totalorder %s40, 0
    %p261 = por %p259, %p260
    %s263 = sadd.s32 %s262, 1
    %p266 = scmp.eq.s32.totalorder %s34, 1
    %p267 = scmp.ne.s32.totalorder %s262, %s264
    %p268 = scmp.eq.s32.totalorder %s34, 0
    %p269 = por %p267, %p268
    %p270 = scmp.ne.s32.totalorder %s262, %s264
    %p271 = scmp.eq.s32.totalorder %s39, 1
    %p272 = por %p270, %p271
    %p273 = scmp.ne.s32.totalorder %s264, %s265
    %p274 = scmp.eq.s32.totalorder %s39, 0
    %p275 = por %p273, %p274
    %p276 = scmp.ne.s32.totalorder %s264, %s265
    %p277 = scmp.eq.s32.totalorder %s40, 1
    %p278 = por %p276, %p277
    %p280 = scmp.ne.s32.totalorder %s265, %s279
    %p281 = scmp.eq.s32.totalorder %s40, 0
    %p282 = por %p280, %p281
    %s284 = sadd.s32 %s283, 1
    %p287 = scmp.eq.s32.totalorder %s34, 1
    %p288 = scmp.ne.s32.totalorder %s283, %s285
    %p289 = scmp.eq.s32.totalorder %s34, 0
    %p290 = por %p288, %p289
    %p291 = scmp.ne.s32.totalorder %s283, %s285
    %p292 = scmp.eq.s32.totalorder %s39, 1
    %p293 = por %p291, %p292
    %p294 = scmp.ne.s32.totalorder %s285, %s286
    %p295 = scmp.eq.s32.totalorder %s39, 0
    %p296 = por %p294, %p295
    %p297 = scmp.ne.s32.totalorder %s285, %s286
    %p298 = scmp.eq.s32.totalorder %s40, 1
    %p299 = por %p297, %p298
    %p301 = scmp.ne.s32.totalorder %s286, %s300
    %p302 = scmp.eq.s32.totalorder %s40, 0
    %p303 = por %p301, %p302
    %s305 = sadd.s32 %s304, 1
    %p308 = scmp.eq.s32.totalorder %s34, 1
    %p309 = scmp.ne.s32.totalorder %s304, %s306
    %p310 = scmp.eq.s32.totalorder %s34, 0
    %p311 = por %p309, %p310
    %p312 = scmp.ne.s32.totalorder %s304, %s306
    %p313 = scmp.eq.s32.totalorder %s39, 1
    %p314 = por %p312, %p313
    %p315 = scmp.ne.s32.totalorder %s306, %s307
    %p316 = scmp.eq.s32.totalorder %s39, 0
    %p317 = por %p315, %p316
    %p318 = scmp.ne.s32.totalorder %s306, %s307
    %p319 = scmp.eq.s32.totalorder %s40, 1
    %p320 = por %p318, %p319
    %p322 = scmp.ne.s32.totalorder %s307, %s321
    %p323 = scmp.eq.s32.totalorder %s40, 0
    %p324 = por %p322, %p323
    %s326 = sadd.s32 %s325, 1
    %p329 = scmp.eq.s32.totalorder %s34, 1
    %p330 = scmp.ne.s32.totalorder %s325, %s327
    %p331 = scmp.eq.s32.totalorder %s34, 0
    %p332 = por %p330, %p331
    %p333 = scmp.ne.s32.totalorder %s325, %s327
    %p334 = scmp.eq.s32.totalorder %s39, 1
    %p335 = por %p333, %p334
    %p336 = scmp.ne.s32.totalorder %s327, %s328
    %p337 = scmp.eq.s32.totalorder %s39, 0
    %p338 = por %p336, %p337
    %p339 = scmp.ne.s32.totalorder %s327, %s328
    %p340 = scmp.eq.s32.totalorder %s40, 1
    %p341 = por %p339, %p340
    %p343 = scmp.ne.s32.totalorder %s328, %s342
    %p344 = scmp.eq.s32.totalorder %s40, 0
    %p345 = por %p343, %p344
    %s347 = sadd.s32 %s346, 1
    %p350 = scmp.eq.s32.totalorder %s34, 1
    %p351 = scmp.ne.s32.totalorder %s346, %s348
    %p352 = scmp.eq.s32.totalorder %s34, 0
    %p353 = por %p351, %p352
    %p354 = scmp.ne.s32.totalorder %s346, %s348
    %p355 = scmp.eq.s32.totalorder %s39, 1
    %p356 = por %p354, %p355
    %p357 = scmp.ne.s32.totalorder %s348, %s349
    %p358 = scmp.eq.s32.totalorder %s39, 0
    %p359 = por %p357, %p358
    %p360 = scmp.ne.s32.totalorder %s348, %s349
    %p361 = scmp.eq.s32.totalorder %s40, 1
    %p362 = por %p360, %p361
    %p364 = scmp.ne.s32.totalorder %s349, %s363
    %p365 = scmp.eq.s32.totalorder %s40, 0
    %p366 = por %p364, %p365
    %s368 = sadd.s32 %s367, 1
    %p371 = scmp.eq.s32.totalorder %s34, 1
    %p372 = scmp.ne.s32.totalorder %s367, %s369
    %p373 = scmp.eq.s32.totalorder %s34, 0
    %p374 = por %p372, %p373
    %p375 = scmp.ne.s32.totalorder %s367, %s369
    %p376 = scmp.eq.s32.totalorder %s39, 1
    %p377 = por %p375, %p376
    %p378 = scmp.ne.s32.totalorder %s369, %s370
    %p379 = scmp.eq.s32.totalorder %s39, 0
    %p380 = por %p378, %p379
    %p381 = scmp.ne.s32.totalorder %s369, %s370
    %p382 = scmp.eq.s32.totalorder %s40, 1
    %p383 = por %p381, %p382
    %p385 = scmp.ne.s32.totalorder %s370, %s384
    %p386 = scmp.eq.s32.totalorder %s40, 0
    %p387 = por %p385, %p386
    %s389 = sadd.s32 %s388, 1
    %p392 = scmp.eq.s32.totalorder %s34, 1
    %p393 = scmp.ne.s32.totalorder %s388, %s390
    %p394 = scmp.eq.s32.totalorder %s34, 0
    %p395 = por %p393, %p394
    %p396 = scmp.ne.s32.totalorder %s388, %s390
    %p397 = scmp.eq.s32.totalorder %s39, 1
    %p398 = por %p396, %p397
    %p399 = scmp.ne.s32.totalorder %s390, %s391
    %p400 = scmp.eq.s32.totalorder %s39, 0
    %p401 = por %p399, %p400
    %p402 = scmp.ne.s32.totalorder %s390, %s391
    %p403 = scmp.eq.s32.totalorder %s40, 1
    %p404 = por %p402, %p403
    %p406 = scmp.ne.s32.totalorder %s391, %s405
    %p407 = scmp.eq.s32.totalorder %s40, 0
    %p408 = por %p406, %p407
    %s410 = sadd.s32 %s409, 1
    %p413 = scmp.eq.s32.totalorder %s34, 1
    %p414 = scmp.ne.s32.totalorder %s409, %s411
    %p415 = scmp.eq.s32.totalorder %s34, 0
    %p416 = por %p414, %p415
    %p417 = scmp.ne.s32.totalorder %s409, %s411
    %p418 = scmp.eq.s32.totalorder %s39, 1
    %p419 = por %p417, %p418
    %p420 = scmp.ne.s32.totalorder %s411, %s412
    %p421 = scmp.eq.s32.totalorder %s39, 0
    %p422 = por %p420, %p421
    %p423 = scmp.ne.s32.totalorder %s411, %s412
    %p424 = scmp.eq.s32.totalorder %s40, 1
    %p425 = por %p423, %p424
    %p427 = scmp.ne.s32.totalorder %s412, %s426
    %p428 = scmp.eq.s32.totalorder %s40, 0
    %p429 = por %p427, %p428
    %s431 = sadd.s32 %s430, 1
    %p434 = scmp.eq.s32.totalorder %s34, 1
    %p435 = scmp.ne.s32.totalorder %s430, %s432
    %p436 = scmp.eq.s32.totalorder %s34, 0
    %p437 = por %p435, %p436
    %p438 = scmp.ne.s32.totalorder %s430, %s432
    %p439 = scmp.eq.s32.totalorder %s39, 1
    %p440 = por %p438, %p439
    %p441 = scmp.ne.s32.totalorder %s432, %s433
    %p442 = scmp.eq.s32.totalorder %s39, 0
    %p443 = por %p441, %p442
    %p444 = scmp.ne.s32.totalorder %s432, %s433
    %p445 = scmp.eq.s32.totalorder %s40, 1
    %p446 = por %p444, %p445
    %p448 = scmp.ne.s32.totalorder %s433, %s447
    %p449 = scmp.eq.s32.totalorder %s40, 0
    %p450 = por %p448, %p449
    %s452 = sadd.s32 %s451, 1
    %p455 = scmp.eq.s32.totalorder %s34, 1
    %p456 = scmp.ne.s32.totalorder %s451, %s453
    %p457 = scmp.eq.s32.totalorder %s34, 0
    %p458 = por %p456, %p457
    %p459 = scmp.ne.s32.totalorder %s451, %s453
    %p460 = scmp.eq.s32.totalorder %s39, 1
    %p461 = por %p459, %p460
    %p462 = scmp.ne.s32.totalorder %s453, %s454
    %p463 = scmp.eq.s32.totalorder %s39, 0
    %p464 = por %p462, %p463
    %p465 = scmp.ne.s32.totalorder %s453, %s454
    %p466 = scmp.eq.s32.totalorder %s40, 1
    %p467 = por %p465, %p466
    %p469 = scmp.ne.s32.totalorder %s454, %s468
    %p470 = scmp.eq.s32.totalorder %s40, 0
    %p471 = por %p469, %p470
    %s473 = sadd.s32 %s472, 1
    %p476 = scmp.eq.s32.totalorder %s34, 1
    %p477 = scmp.ne.s32.totalorder %s472, %s474
    %p478 = scmp.eq.s32.totalorder %s34, 0
    %p479 = por %p477, %p478
    %p480 = scmp.ne.s32.totalorder %s472, %s474
    %p481 = scmp.eq.s32.totalorder %s39, 1
    %p482 = por %p480, %p481
    %p483 = scmp.ne.s32.totalorder %s474, %s475
    %p484 = scmp.eq.s32.totalorder %s39, 0
    %p485 = por %p483, %p484
    %p486 = scmp.ne.s32.totalorder %s474, %s475
    %p487 = scmp.eq.s32.totalorder %s40, 1
    %p488 = por %p486, %p487
    %p490 = scmp.ne.s32.totalorder %s475, %s489
    %p491 = scmp.eq.s32.totalorder %s40, 0
    %p492 = por %p490, %p491
    %s494 = sadd.s32 %s493, 1
    %p497 = scmp.eq.s32.totalorder %s34, 1
    %p498 = scmp.ne.s32.totalorder %s493, %s495
    %p499 = scmp.eq.s32.totalorder %s34, 0
    %p500 = por %p498, %p499
    %p501 = scmp.ne.s32.totalorder %s493, %s495
    %p502 = scmp.eq.s32.totalorder %s39, 1
    %p503 = por %p501, %p502
    %p504 = scmp.ne.s32.totalorder %s495, %s496
    %p505 = scmp.eq.s32.totalorder %s39, 0
    %p506 = por %p504, %p505
    %p507 = scmp.ne.s32.totalorder %s495, %s496
    %p508 = scmp.eq.s32.totalorder %s40, 1
    %p509 = por %p507, %p508
    %p511 = scmp.ne.s32.totalorder %s496, %s510
    %p512 = scmp.eq.s32.totalorder %s40, 0
    %p513 = por %p511, %p512
    %s515 = sadd.s32 %s514, 1
    %p518 = scmp.eq.s32.totalorder %s34, 1
    %p519 = scmp.ne.s32.totalorder %s514, %s516
    %p520 = scmp.eq.s32.totalorder %s34, 0
    %p521 = por %p519, %p520
    %p522 = scmp.ne.s32.totalorder %s514, %s516
    %p523 = scmp.eq.s32.totalorder %s39, 1
    %p524 = por %p522, %p523
    %p525 = scmp.ne.s32.totalorder %s516, %s517
    %p526 = scmp.eq.s32.totalorder %s39, 0
    %p527 = por %p525, %p526
    %p528 = scmp.ne.s32.totalorder %s516, %s517
    %p529 = scmp.eq.s32.totalorder %s40, 1
    %p530 = por %p528, %p529
    %p532 = scmp.ne.s32.totalorder %s517, %s531
    %p533 = scmp.eq.s32.totalorder %s40, 0
    %p534 = por %p532, %p533
    %s536 = sadd.s32 %s535, 1
    %p539 = scmp.eq.s32.totalorder %s34, 1
    %p540 = scmp.ne.s32.totalorder %s535, %s537
    %p541 = scmp.eq.s32.totalorder %s34, 0
    %p542 = por %p540, %p541
    %p543 = scmp.ne.s32.totalorder %s535, %s537
    %p544 = scmp.eq.s32.totalorder %s39, 1
    %p545 = por %p543, %p544
    %p546 = scmp.ne.s32.totalorder %s537, %s538
    %p547 = scmp.eq.s32.totalorder %s39, 0
    %p548 = por %p546, %p547
    %p549 = scmp.ne.s32.totalorder %s537, %s538
    %p550 = scmp.eq.s32.totalorder %s40, 1
    %p551 = por %p549, %p550
    %p553 = scmp.ne.s32.totalorder %s538, %s552
    %p554 = scmp.eq.s32.totalorder %s40, 0
    %p555 = por %p553, %p554
    %s557 = sadd.s32 %s556, 1
    %p560 = scmp.eq.s32.totalorder %s34, 1
    %p561 = scmp.ne.s32.totalorder %s556, %s558
    %p562 = scmp.eq.s32.totalorder %s34, 0
    %p563 = por %p561, %p562
    %p564 = scmp.ne.s32.totalorder %s556, %s558
    %p565 = scmp.eq.s32.totalorder %s39, 1
    %p566 = por %p564, %p565
    %p567 = scmp.ne.s32.totalorder %s558, %s559
    %p568 = scmp.eq.s32.totalorder %s39, 0
    %p569 = por %p567, %p568
    %p570 = scmp.ne.s32.totalorder %s558, %s559
    %p571 = scmp.eq.s32.totalorder %s40, 1
    %p572 = por %p570, %p571
    %p574 = scmp.ne.s32.totalorder %s559, %s573
    %p575 = scmp.eq.s32.totalorder %s40, 0
    %p576 = por %p574, %p575
    %s578 = sadd.s32 %s577, 1
    %p581 = scmp.eq.s32.totalorder %s34, 1
    %p582 = scmp.ne.s32.totalorder %s577, %s579
    %p583 = scmp.eq.s32.totalorder %s34, 0
    %p584 = por %p582, %p583
    %p585 = scmp.ne.s32.totalorder %s577, %s579
    %p586 = scmp.eq.s32.totalorder %s39, 1
    %p587 = por %p585, %p586
    %p588 = scmp.ne.s32.totalorder %s579, %s580
    %p589 = scmp.eq.s32.totalorder %s39, 0
    %p590 = por %p588, %p589
    %p591 = scmp.ne.s32.totalorder %s579, %s580
    %p592 = scmp.eq.s32.totalorder %s40, 1
    %p593 = por %p591, %p592
    %p595 = scmp.ne.s32.totalorder %s580, %s594
    %p596 = scmp.eq.s32.totalorder %s40, 0
    %p597 = por %p595, %p596
    %s599 = sadd.s32 %s598, 1
    %p602 = scmp.eq.s32.totalorder %s34, 1
    %p603 = scmp.ne.s32.totalorder %s598, %s600
    %p604 = scmp.eq.s32.totalorder %s34, 0
    %p605 = por %p603, %p604
    %p606 = scmp.ne.s32.totalorder %s598, %s600
    %p607 = scmp.eq.s32.totalorder %s39, 1
    %p608 = por %p606, %p607
    %p609 = scmp.ne.s32.totalorder %s600, %s601
    %p610 = scmp.eq.s32.totalorder %s39, 0
    %p611 = por %p609, %p610
    %p612 = scmp.ne.s32.totalorder %s600, %s601
    %p613 = scmp.eq.s32.totalorder %s40, 1
    %p614 = por %p612, %p613
    %p616 = scmp.ne.s32.totalorder %s601, %s615
    %p617 = scmp.eq.s32.totalorder %s40, 0
    %p618 = por %p616, %p617
    %s620 = sadd.s32 %s619, 1
    %p623 = scmp.eq.s32.totalorder %s34, 1
    %p624 = scmp.ne.s32.totalorder %s619, %s621
    %p625 = scmp.eq.s32.totalorder %s34, 0
    %p626 = por %p624, %p625
    %p627 = scmp.ne.s32.totalorder %s619, %s621
    %p628 = scmp.eq.s32.totalorder %s39, 1
    %p629 = por %p627, %p628
    %p630 = scmp.ne.s32.totalorder %s621, %s622
    %p631 = scmp.eq.s32.totalorder %s39, 0
    %p632 = por %p630, %p631
    %p633 = scmp.ne.s32.totalorder %s621, %s622
    %p634 = scmp.eq.s32.totalorder %s40, 1
    %p635 = por %p633, %p634
    %p637 = scmp.ne.s32.totalorder %s622, %s636
    %p638 = scmp.eq.s32.totalorder %s40, 0
    %p639 = por %p637, %p638
    %s640 = ssub.s32 %s34, %s41
    %p641 = scmp.eq.s32.totalorder %s640, 0
    %s643 = sadd.s32 %s642, 1
    %s644 = scalar_select %p641, %s642, %s643
    %p647 = pneg %p641
    %p648 = scmp.eq.s32.totalorder %s34, 1
    %p649 = por %p647, %p648
    %p650 = scmp.ne.s32.totalorder %s642, %s645
    %p651 = scmp.eq.s32.totalorder %s34, 0
    %p652 = por %p650, %p651
    %p653 = scmp.ne.s32.totalorder %s642, %s645
    %p654 = scmp.eq.s32.totalorder %s39, 1
    %p655 = por %p653, %p654
    %p656 = scmp.ne.s32.totalorder %s645, %s646
    %p657 = scmp.eq.s32.totalorder %s39, 0
    %p658 = por %p656, %p657
    %p659 = scmp.ne.s32.totalorder %s645, %s646
    %p660 = scmp.eq.s32.totalorder %s40, 1
    %p661 = por %p659, %p660
    %p663 = scmp.ne.s32.totalorder %s646, %s662
    %p664 = scmp.eq.s32.totalorder %s40, 0
    %p665 = por %p663, %p664
    %p666 = scmp.le.s32.totalorder 1, %s34
    %p667 = scmp.lt.s32.totalorder %s34, 3
    %p668 = pnand %p666, %p667
    %p669 = pneg %p668
    // Predicated region
    $region9: #{tpu_custom_call.1} parent=5 // pred_check
      _
    $region10: #{tpu_custom_call.1} parent=5 // pred_check_branch
      %671 = sbr.rel (%p668) target = $region12
    $region11: #{tpu_custom_call.1} parent=5 // pred_region
      %s672 = ssub.s32 %s34, 1
      // Predicated region
      $region13: #{tpu_custom_call.1} parent=11 // pred_check
        %p673 = pneg %p107
      $region14: #{tpu_custom_call.1} parent=11 // pred_check_branch
        %675 = sbr.rel (%p673) target = $region16
      $region15: #{tpu_custom_call.1} parent=11 // pred_region
        _
      $region16: #{tpu_custom_call.1} parent=11 // pred_fallthru
        _
      // Predicated region
      $region17: #{tpu_custom_call.1} parent=11 // pred_check
        %p676 = pneg %p128
      $region18: #{tpu_custom_call.1} parent=11 // pred_check_branch
        %678 = sbr.rel (%p676) target = $region20
      $region19: #{tpu_custom_call.1} parent=11 // pred_region
        _
      $region20: #{tpu_custom_call.1} parent=11 // pred_fallthru
        _
      // Predicated region
      $region21: #{tpu_custom_call.1} parent=11 // pred_check
        %p679 = pneg %p149
      $region22: #{tpu_custom_call.1} parent=11 // pred_check_branch
        %681 = sbr.rel (%p679) target = $region24
      $region23: #{tpu_custom_call.1} parent=11 // pred_region
        _
      $region24: #{tpu_custom_call.1} parent=11 // pred_fallthru
        _
      // Predicated region
      $region25: #{tpu_custom_call.1} parent=11 // pred_check
        %p682 = pneg %p170
      $region26: #{tpu_custom_call.1} parent=11 // pred_check_branch
        %684 = sbr.rel (%p682) target = $region28
      $region27: #{tpu_custom_call.1} parent=11 // pred_region
        _
      $region28: #{tpu_custom_call.1} parent=11 // pred_fallthru
        _
      // Predicated region
      $region29: #{tpu_custom_call.1} parent=11 // pred_check
        %p685 = pneg %p191
      $region30: #{tpu_custom_call.1} parent=11 // pred_check_branch
        %687 = sbr.rel (%p685) target = $region32
      $region31: #{tpu_custom_call.1} parent=11 // pred_region
        _
      $region32: #{tpu_custom_call.1} parent=11 // pred_fallthru
        _
      // Predicated region
      $region33: #{tpu_custom_call.1} parent=11 // pred_check
        %p688 = pneg %p212
      $region34: #{tpu_custom_call.1} parent=11 // pred_check_branch
        %690 = sbr.rel (%p688) target = $region36
      $region35: #{tpu_custom_call.1} parent=11 // pred_region
        _
      $region36: #{tpu_custom_call.1} parent=11 // pred_fallthru
        _
      // Predicated region
      $region37: #{tpu_custom_call.1} parent=11 // pred_check
        %p691 = pneg %p233
      $region38: #{tpu_custom_call.1} parent=11 // pred_check_branch
        %693 = sbr.rel (%p691) target = $region40
      $region39: #{tpu_custom_call.1} parent=11 // pred_region
        _
      $region40: #{tpu_custom_call.1} parent=11 // pred_fallthru
        _
      // Predicated region
      $region41: #{tpu_custom_call.1} parent=11 // pred_check
        %p694 = pneg %p254
      $region42: #{tpu_custom_call.1} parent=11 // pred_check_branch
        %696 = sbr.rel (%p694) target = $region44
      $region43: #{tpu_custom_call.1} parent=11 // pred_region
        _
      $region44: #{tpu_custom_call.1} parent=11 // pred_fallthru
        _
      // Predicated region
      $region45: #{tpu_custom_call.1} parent=11 // pred_check
        %p697 = pneg %p275
      $region46: #{tpu_custom_call.1} parent=11 // pred_check_branch
        %699 = sbr.rel (%p697) target = $region48
      $region47: #{tpu_custom_call.1} parent=11 // pred_region
        _
      $region48: #{tpu_custom_call.1} parent=11 // pred_fallthru
        _
      // Predicated region
      $region49: #{tpu_custom_call.1} parent=11 // pred_check
        %p700 = pneg %p296
      $region50: #{tpu_custom_call.1} parent=11 // pred_check_branch
        %702 = sbr.rel (%p700) target = $region52
      $region51: #{tpu_custom_call.1} parent=11 // pred_region
        _
      $region52: #{tpu_custom_call.1} parent=11 // pred_fallthru
        _
      // Predicated region
      $region53: #{tpu_custom_call.1} parent=11 // pred_check
        %p703 = pneg %p317
      $region54: #{tpu_custom_call.1} parent=11 // pred_check_branch
        %705 = sbr.rel (%p703) target = $region56
      $region55: #{tpu_custom_call.1} parent=11 // pred_region
        _
      $region56: #{tpu_custom_call.1} parent=11 // pred_fallthru
        _
      // Predicated region
      $region57: #{tpu_custom_call.1} parent=11 // pred_check
        %p706 = pneg %p338
      $region58: #{tpu_custom_call.1} parent=11 // pred_check_branch
        %708 = sbr.rel (%p706) target = $region60
      $region59: #{tpu_custom_call.1} parent=11 // pred_region
        _
      $region60: #{tpu_custom_call.1} parent=11 // pred_fallthru
        _
      // Predicated region
      $region61: #{tpu_custom_call.1} parent=11 // pred_check
        %p709 = pneg %p359
      $region62: #{tpu_custom_call.1} parent=11 // pred_check_branch
        %711 = sbr.rel (%p709) target = $region64
      $region63: #{tpu_custom_call.1} parent=11 // pred_region
        _
      $region64: #{tpu_custom_call.1} parent=11 // pred_fallthru
        _
      // Predicated region
      $region65: #{tpu_custom_call.1} parent=11 // pred_check
        %p712 = pneg %p380
      $region66: #{tpu_custom_call.1} parent=11 // pred_check_branch
        %714 = sbr.rel (%p712) target = $region68
      $region67: #{tpu_custom_call.1} parent=11 // pred_region
        _
      $region68: #{tpu_custom_call.1} parent=11 // pred_fallthru
        _
      // Predicated region
      $region69: #{tpu_custom_call.1} parent=11 // pred_check
        %p715 = pneg %p401
      $region70: #{tpu_custom_call.1} parent=11 // pred_check_branch
        %717 = sbr.rel (%p715) target = $region72
      $region71: #{tpu_custom_call.1} parent=11 // pred_region
        _
      $region72: #{tpu_custom_call.1} parent=11 // pred_fallthru
        _
      // Predicated region
      $region73: #{tpu_custom_call.1} parent=11 // pred_check
        %p718 = pneg %p422
      $region74: #{tpu_custom_call.1} parent=11 // pred_check_branch
        %720 = sbr.rel (%p718) target = $region76
      $region75: #{tpu_custom_call.1} parent=11 // pred_region
        _
      $region76: #{tpu_custom_call.1} parent=11 // pred_fallthru
        _
      // Predicated region
      $region77: #{tpu_custom_call.1} parent=11 // pred_check
        %p721 = pneg %p443
      $region78: #{tpu_custom_call.1} parent=11 // pred_check_branch
        %723 = sbr.rel (%p721) target = $region80
      $region79: #{tpu_custom_call.1} parent=11 // pred_region
        _
      $region80: #{tpu_custom_call.1} parent=11 // pred_fallthru
        _
      // Predicated region
      $region81: #{tpu_custom_call.1} parent=11 // pred_check
        %p724 = pneg %p464
      $region82: #{tpu_custom_call.1} parent=11 // pred_check_branch
        %726 = sbr.rel (%p724) target = $region84
      $region83: #{tpu_custom_call.1} parent=11 // pred_region
        _
      $region84: #{tpu_custom_call.1} parent=11 // pred_fallthru
        _
      // Predicated region
      $region85: #{tpu_custom_call.1} parent=11 // pred_check
        %p727 = pneg %p485
      $region86: #{tpu_custom_call.1} parent=11 // pred_check_branch
        %729 = sbr.rel (%p727) target = $region88
      $region87: #{tpu_custom_call.1} parent=11 // pred_region
        _
      $region88: #{tpu_custom_call.1} parent=11 // pred_fallthru
        _
      // Predicated region
      $region89: #{tpu_custom_call.1} parent=11 // pred_check
        %p730 = pneg %p506
      $region90: #{tpu_custom_call.1} parent=11 // pred_check_branch
        %732 = sbr.rel (%p730) target = $region92
      $region91: #{tpu_custom_call.1} parent=11 // pred_region
        _
      $region92: #{tpu_custom_call.1} parent=11 // pred_fallthru
        _
      // Predicated region
      $region93: #{tpu_custom_call.1} parent=11 // pred_check
        %p733 = pneg %p527
      $region94: #{tpu_custom_call.1} parent=11 // pred_check_branch
        %735 = sbr.rel (%p733) target = $region96
      $region95: #{tpu_custom_call.1} parent=11 // pred_region
        _
      $region96: #{tpu_custom_call.1} parent=11 // pred_fallthru
        _
      // Predicated region
      $region97: #{tpu_custom_call.1} parent=11 // pred_check
        %p736 = pneg %p548
      $region98: #{tpu_custom_call.1} parent=11 // pred_check_branch
        %738 = sbr.rel (%p736) target = $region100
      $region99: #{tpu_custom_call.1} parent=11 // pred_region
        _
      $region100: #{tpu_custom_call.1} parent=11 // pred_fallthru
        _
      // Predicated region
      $region101: #{tpu_custom_call.1} parent=11 // pred_check
        %p739 = pneg %p569
      $region102: #{tpu_custom_call.1} parent=11 // pred_check_branch
        %741 = sbr.rel (%p739) target = $region104
      $region103: #{tpu_custom_call.1} parent=11 // pred_region
        _
      $region104: #{tpu_custom_call.1} parent=11 // pred_fallthru
        _
      // Predicated region
      $region105: #{tpu_custom_call.1} parent=11 // pred_check
        %p742 = pneg %p590
      $region106: #{tpu_custom_call.1} parent=11 // pred_check_branch
        %744 = sbr.rel (%p742) target = $region108
      $region107: #{tpu_custom_call.1} parent=11 // pred_region
        _
      $region108: #{tpu_custom_call.1} parent=11 // pred_fallthru
        _
      // Predicated region
      $region109: #{tpu_custom_call.1} parent=11 // pred_check
        %p745 = pneg %p611
      $region110: #{tpu_custom_call.1} parent=11 // pred_check_branch
        %747 = sbr.rel (%p745) target = $region112
      $region111: #{tpu_custom_call.1} parent=11 // pred_region
        _
      $region112: #{tpu_custom_call.1} parent=11 // pred_fallthru
        _
      // Predicated region
      $region113: #{tpu_custom_call.1} parent=11 // pred_check
        %p748 = pneg %p632
      $region114: #{tpu_custom_call.1} parent=11 // pred_check_branch
        %750 = sbr.rel (%p748) target = $region116
      $region115: #{tpu_custom_call.1} parent=11 // pred_region
        _
      $region116: #{tpu_custom_call.1} parent=11 // pred_fallthru
        _
    $region12: #{tpu_custom_call.1} parent=5 // pred_fallthru
      _
    %p751 = scmp.lt.s32.totalorder %s34, 2
    // Predicated region
    $region117: #{tpu_custom_call.1} parent=5 // pred_check
      %p752 = pneg %p751
    $region118: #{tpu_custom_call.1} parent=5 // pred_check_branch
      %754 = sbr.rel (%p752) target = $region120
    $region119: #{tpu_custom_call.1} parent=5 // pred_region
      // Predicated region
      $region121: #{tpu_custom_call.1} parent=119 // pred_check
        %p755 = pneg %p54
      $region122: #{tpu_custom_call.1} parent=119 // pred_check_branch
        %757 = sbr.rel (%p755) target = $region124
      $region123: #{tpu_custom_call.1} parent=119 // pred_region
        %p758 = scmp.lt.s32.totalorder %s34, 1
        %s759 = scalar_select %p758, %s34, 1
        %s760 = smul.addr %s759, 8
        %s761 = smul.addr %s760, 8
        %s762 = scalar_lea.vmem %s0, %s761
      $region124: #{tpu_custom_call.1} parent=119 // pred_fallthru
        _
      // Predicated region
      $region125: #{tpu_custom_call.1} parent=119 // pred_check
        %p763 = pneg %p80
      $region126: #{tpu_custom_call.1} parent=119 // pred_check_branch
        %765 = sbr.rel (%p763) target = $region128
      $region127: #{tpu_custom_call.1} parent=119 // pred_region
        %p766 = scmp.lt.s32.totalorder %s34, 1
        %s767 = scalar_select %p766, %s34, 1
        %s768 = smul.addr %s767, 32
        %s769 = smul.addr %s768, 8
        %s770 = scalar_lea.vmem %s1, %s769
      $region128: #{tpu_custom_call.1} parent=119 // pred_fallthru
        _
    $region120: #{tpu_custom_call.1} parent=5 // pred_fallthru
      _
    %p771 = scmp.le.s32.totalorder 1, %s34
    %p772 = scmp.lt.s32.totalorder %s34, 3
    %p773 = pnand %p771, %p772
    %p774 = pneg %p773
    // Predicated region
    $region129: #{tpu_custom_call.1} parent=5 // pred_check
      _
    $region130: #{tpu_custom_call.1} parent=5 // pred_check_branch
      %776 = sbr.rel (%p773) target = $region132
    $region131: #{tpu_custom_call.1} parent=5 // pred_region
      %s777 = ssub.s32 %s34, 1
      %p778 = scmp.lt.s32.totalorder %s39, 1
      %s779 = scalar_select %p778, %s39, 1
      %s780 = smul.addr %s779, 8
      %s781 = smul.addr %s780, 8
      %s782 = scalar_lea.vmem %s0, %s781
      %p783 = pneg %p60
      %p784 = pneg %p57
      %p785 = scmp.lt.s32.totalorder %s39, 1
      %s786 = scalar_select %p785, %s39, 1
      %s787 = smul.addr %s786, 32
      %s788 = smul.addr %s787, 8
      %s789 = scalar_lea.vmem %s1, %s788
      %p790 = pneg %p86
      %p791 = pneg %p83
      %p792 = pneg %p107
      %p793 = pneg %p104
      %p794 = pneg %p128
      %p795 = pneg %p125
      %p796 = pneg %p149
      %p797 = pneg %p146
      %p798 = pneg %p170
      %p799 = pneg %p167
      %p800 = pneg %p191
      %p801 = pneg %p188
      %p802 = pneg %p212
      %p803 = pneg %p209
      %p804 = pneg %p233
      %p805 = pneg %p230
      %p806 = pneg %p254
      %p807 = pneg %p251
      %p808 = pneg %p275
      %p809 = pneg %p272
      %p810 = pneg %p296
      %p811 = pneg %p293
      %p812 = pneg %p317
      %p813 = pneg %p314
      %p814 = pneg %p338
      %p815 = pneg %p335
      %p816 = pneg %p359
      %p817 = pneg %p356
      %p818 = pneg %p380
      %p819 = pneg %p377
      %p820 = pneg %p401
      %p821 = pneg %p398
      %p822 = pneg %p422
      %p823 = pneg %p419
      %p824 = pneg %p443
      %p825 = pneg %p440
      %p826 = pneg %p464
      %p827 = pneg %p461
      %p828 = pneg %p485
      %p829 = pneg %p482
      %p830 = pneg %p506
      %p831 = pneg %p503
      %p832 = pneg %p527
      %p833 = pneg %p524
      %p834 = pneg %p548
      %p835 = pneg %p545
      %p836 = pneg %p569
      %p837 = pneg %p566
      %p838 = pneg %p590
      %p839 = pneg %p587
      %p840 = pneg %p611
      %p841 = pneg %p608
      %p842 = pneg %p632
      %p843 = pneg %p629
      %p844 = pneg %p658
      %p845 = pneg %p655
      %p846 = scmp.lt.s32.totalorder %s39, 1
      %s847 = scalar_select %p846, %s39, 1
      %s848 = smul.addr %s847, 8
      %s849 = smul.addr %s848, 8
      %s850 = scalar_lea.vmem %s28, %s849
      %p851 = scmp.lt.s32.totalorder %s39, 1
      %s852 = scalar_select %p851, %s39, 1
      %s853 = smul.addr %s852, 8
      %s854 = smul.addr %s853, 8
      %s855 = scalar_lea.vmem %s0, %s854
      %p856 = scmp.lt.s32.totalorder %s39, 1
      %s857 = scalar_select %p856, %s39, 1
      %s858 = smul.addr %s857, 32
      %s859 = smul.addr %s858, 8
      %s860 = scalar_lea.vmem %s1, %s859
      %p861 = scmp.lt.s32.totalorder %s39, 1
      %s862 = scalar_select %p861, %s39, 1
      %s863 = smul.addr %s862, 8
      %s864 = smul.addr %s863, 8
      %s865 = scalar_lea.vmem %s28, %s864
      %v866 = vld [vmem:[%s855] sm:$0xff]
      %v867 = vld [vmem:[%s855 + $0x8] sm:$0xff]
      %v868 = vld [vmem:[%s855 + $0x10] sm:$0xff]
      %v869 = vld [vmem:[%s855 + $0x18] sm:$0xff]
      %v870 = vld [vmem:[%s855 + $0x20] sm:$0xff]
      %v871 = vld [vmem:[%s855 + $0x28] sm:$0xff]
      %v872 = vld [vmem:[%s855 + $0x30] sm:$0xff]
      %v873 = vld [vmem:[%s855 + $0x38] sm:$0xff]
      %vm874 = vcmask 261120
      %v875 = vsel %vm874, %v866, 0.0
      %v876 = vsel %vm874, %v867, 0.0
      %v877 = vadd.f32 %v875, %v876
      %v878 = vsel %vm874, %v868, 0.0
      %v879 = vadd.f32 %v877, %v878
      %v880 = vsel %vm874, %v869, 0.0
      %v881 = vadd.f32 %v879, %v880
      %v882 = vsel %vm874, %v870, 0.0
      %v883 = vadd.f32 %v881, %v882
      %v884 = vsel %vm874, %v871, 0.0
      %v885 = vadd.f32 %v883, %v884
      %v886 = vsel %vm874, %v872, 0.0
      %v887 = vadd.f32 %v885, %v886
      %v888 = vsel %vm874, %v873, 0.0
      %v889 = vadd.f32 %v887, %v888
      %v890 = vrot.slane %v889, 4
      %v891 = vadd.f32 %v889, %v890
      %v892 = vrot.slane %v891, 2
      %v893 = vadd.f32 %v891, %v892
      %v894 = vrot.slane %v893, 1
      %v895 = vadd.f32 %v893, %v894
      %v896 = vrcp.pop 64.0
      %v897 = vmul.f32 %v895, %v896
      %v898 = vsub.f32 %v866, %v897
      %v899 = vsub.f32 %v867, %v897
      %v900 = vsub.f32 %v868, %v897
      %v901 = vsub.f32 %v869, %v897
      %v902 = vsub.f32 %v870, %v897
      %v903 = vsub.f32 %v871, %v897
      %v904 = vsub.f32 %v872, %v897
      %v905 = vsub.f32 %v873, %v897
      %v906 = vmul.f32 %v898, %v898
      %v907 = vmul.f32 %v899, %v899
      %v908 = vmul.f32 %v900, %v900
      %v909 = vmul.f32 %v901, %v901
      %v910 = vmul.f32 %v902, %v902
      %v911 = vmul.f32 %v903, %v903
      %v912 = vmul.f32 %v904, %v904
      %v913 = vmul.f32 %v905, %v905
      %v914 = vsel %vm874, %v906, 0.0
      %v915 = vsel %vm874, %v907, 0.0
      %v916 = vadd.f32 %v914, %v915
      %v917 = vsel %vm874, %v908, 0.0
      %v918 = vadd.f32 %v916, %v917
      %v919 = vsel %vm874, %v909, 0.0
      %v920 = vadd.f32 %v918, %v919
      %v921 = vsel %vm874, %v910, 0.0
      %v922 = vadd.f32 %v920, %v921
      %v923 = vsel %vm874, %v911, 0.0
      %v924 = vadd.f32 %v922, %v923
      %v925 = vsel %vm874, %v912, 0.0
      %v926 = vadd.f32 %v924, %v925
      %v927 = vsel %vm874, %v913, 0.0
      %v928 = vadd.f32 %v926, %v927
      %v929 = vrot.slane %v928, 4
      %v930 = vadd.f32 %v928, %v929
      %v931 = vrot.slane %v930, 2
      %v932 = vadd.f32 %v930, %v931
      %v933 = vrot.slane %v932, 1
      %v934 = vadd.f32 %v932, %v933
      %v935 = vmul.f32 %v934, %v896
      %v936 = vadd.f32 %v935, 1e-06
      %v937 = vrsqrt.pop %v936
      %v938 = vmul.f32 %v898, %v937
      %v939 = vmul.f32 %v899, %v937
      %v940 = vmul.f32 %v900, %v937
      %v941 = vmul.f32 %v901, %v937
      %v942 = vmul.f32 %v902, %v937
      %v943 = vmul.f32 %v903, %v937
      %v944 = vmul.f32 %v904, %v937
      %v945 = vmul.f32 %v905, %v937
      %v946 = vld [vmem:[%s2] sm:$0x1]
      %v948 = vlaneseq
      %v949 = vshrl.u32 %v948, 7
      %v950 = vsub.s32 0, %v949
      %v951 = vrot.slane %v946, %v950
      %v953 = vmul.f32 %v938, %v951
      %v954 = vmul.f32 %v939, %v951
      %v955 = vmul.f32 %v940, %v951
      %v956 = vmul.f32 %v941, %v951
      %v957 = vmul.f32 %v942, %v951
      %v958 = vmul.f32 %v943, %v951
      %v959 = vmul.f32 %v944, %v951
      %v960 = vmul.f32 %v945, %v951
      %v961 = vld [vmem:[%s3] sm:$0x1]
      %v963 = vlaneseq
      %v964 = vshrl.u32 %v963, 7
      %v965 = vsub.s32 0, %v964
      %v966 = vrot.slane %v961, %v965
      %v968 = vadd.f32 %v953, %v966
      %v969 = vadd.f32 %v954, %v966
      %v970 = vadd.f32 %v955, %v966
      %v971 = vadd.f32 %v956, %v966
      %v972 = vadd.f32 %v957, %v966
      %v973 = vadd.f32 %v958, %v966
      %v974 = vadd.f32 %v959, %v966
      %v975 = vadd.f32 %v960, %v966
      %v976 = vld [vmem:[%s4] sm:$0xff]
      %v977 = vld [vmem:[%s4 + $0x8] sm:$0xff]
      %v978 = vld [vmem:[%s4 + $0x10] sm:$0xff]
      %v979 = vld [vmem:[%s4 + $0x18] sm:$0xff]
      %v980 = vld [vmem:[%s5] sm:$0x1]
      %v982 = vlaneseq
      %v983 = vshrl.u32 %v982, 7
      %v984 = vsub.s32 0, %v983
      %v985 = vrot.slane %v980, %v984
      %v988 = vsel %vm874, %v968, 0
      %v991 = vsel %vm874, %v969, 0
      %v994 = vsel %vm874, %v970, 0
      %v997 = vsel %vm874, %v971, 0
      %v1000 = vsel %vm874, %v972, 0
      %v1003 = vsel %vm874, %v973, 0
      %v1006 = vsel %vm874, %v974, 0
      %v1009 = vsel %vm874, %v975, 0
      %1011 = vmatprep.subr.mxu0 0.0
      %1012 = vmatpush1.msra.mxu0 0.0
      %1013 = vmatprep.subr.mxu0 0.0
      %1014 = vmatpush1.msra.mxu0 0.0
      %1015 = vmatprep.subr.mxu0 0.0
      %1016 = vmatpush1.msra.mxu0 0.0
      %1017 = vmatprep.subr.mxu0 0.0
      %1018 = vmatpush1.msra.mxu0 0.0
      %1019 = vmatprep.subr.mxu0 0.0
      %1020 = vmatpush1.msra.mxu0 0.0
      %1021 = vmatprep.subr.mxu0 0.0
      %1022 = vmatpush1.msra.mxu0 0.0
      %1023 = vmatprep.subr.mxu0 0.0
      %1024 = vmatpush1.msra.mxu0 0.0
      %1025 = vmatprep.subr.mxu0 0.0
      %1026 = vmatpush1.msra.mxu0 0.0
      %1027 = vmatprep.subr.mxu0 0.0
      %1028 = vmatpush1.msra.mxu0 0.0
      %1029 = vmatprep.subr.mxu0 0.0
      %1030 = vmatpush1.msra.mxu0 0.0
      %1031 = vmatprep.subr.mxu0 0.0
      %1032 = vmatpush1.msra.mxu0 0.0
      %1033 = vmatprep.subr.mxu0 0.0
      %1034 = vmatpush1.msra.mxu0 0.0
      %1035 = vmatprep.subr.mxu0 0.0
      %1036 = vmatpush1.msra.mxu0 %v979
      %1037 = vmatprep.subr.mxu0 0.0
      %1038 = vmatpush1.msra.mxu0 %v978
      %1039 = vmatprep.subr.mxu0 0.0
      %1040 = vmatpush1.msra.mxu0 %v977
      %1041 = vmatprep.subr.mxu0 0.0
      %1042 = vmatpush1.msra.mxu0 %v976
      %1043 = vmatprep.subr.mxu0 0.0
      %1044 = vmatpush2.msra.mxu0 0.0
      %1045 = vmatprep.subr.mxu0 0.0
      %1046 = vmatpush2.msra.mxu0 0.0
      %1047 = vmatprep.subr.mxu0 0.0
      %1048 = vmatpush2.msra.mxu0 0.0
      %1049 = vmatprep.subr.mxu0 0.0
      %1050 = vmatpush2.msra.mxu0 0.0
      %1051 = vmatprep.subr.mxu0 0.0
      %1052 = vmatpush2.msra.mxu0 0.0
      %1053 = vmatprep.subr.mxu0 0.0
      %1054 = vmatpush2.msra.mxu0 0.0
      %1055 = vmatprep.subr.mxu0 0.0
      %1056 = vmatpush2.msra.mxu0 0.0
      %1057 = vmatprep.subr.mxu0 0.0
      %1058 = vmatpush2.msra.mxu0 0.0
      %1059 = vmatprep.subr.mxu0 0.0
      %1060 = vmatpush2.msra.mxu0 0.0
      %1061 = vmatprep.subr.mxu0 0.0
      %1062 = vmatpush2.msra.mxu0 0.0
      %1063 = vmatprep.subr.mxu0 0.0
      %1064 = vmatpush2.msra.mxu0 0.0
      %1065 = vmatprep.subr.mxu0 0.0
      %1066 = vmatpush2.msra.mxu0 0.0
      %1067 = vmatprep.subr.mxu0 0.0
      %1068 = vmatpush2.msra.mxu0 0.0
      %1069 = vmatprep.subr.mxu0 0.0
      %1070 = vmatpush2.msra.mxu0 0.0
      %1071 = vmatprep.subr.mxu0 0.0
      %1072 = vmatpush2.msra.mxu0 0.0
      %1073 = vmatprep.subr.mxu0 0.0
      %1074 = vmatpush2.msra.mxu0 0.0
      %1075 = vmatprep.mubr.f32.mxu0 0.0
      %1076 = vmatmul.mubr.f32.gmra.mxu0 %v988
      %v1077 = vpop.f32.mrf.mxu0
      %v1078 = vadd.f32 %v985, %v1077
      %v1079 = vpop.f32.mrf.mxu0
      %1080 = vmatprep.mubr.f32.mxu0 0.0
      %1081 = vmatmul.mubr.f32.gmra.mxu0 %v991
      %v1082 = vpop.f32.mrf.mxu0
      %v1083 = vadd.f32 %v985, %v1082
      %v1084 = vpop.f32.mrf.mxu0
      %1085 = vmatprep.mubr.f32.mxu0 0.0
      %1086 = vmatmul.mubr.f32.gmra.mxu0 %v994
      %v1087 = vpop.f32.mrf.mxu0
      %v1088 = vadd.f32 %v985, %v1087
      %v1089 = vpop.f32.mrf.mxu0
      %1090 = vmatprep.mubr.f32.mxu0 0.0
      %1091 = vmatmul.mubr.f32.gmra.mxu0 %v997
      %v1092 = vpop.f32.mrf.mxu0
      %v1093 = vadd.f32 %v985, %v1092
      %v1094 = vpop.f32.mrf.mxu0
      %1095 = vmatprep.mubr.f32.mxu0 0.0
      %1096 = vmatmul.mubr.f32.gmra.mxu0 %v1000
      %v1097 = vpop.f32.mrf.mxu0
      %v1098 = vadd.f32 %v985, %v1097
      %v1099 = vpop.f32.mrf.mxu0
      %1100 = vmatprep.mubr.f32.mxu0 0.0
      %1101 = vmatmul.mubr.f32.gmra.mxu0 %v1003
      %v1102 = vpop.f32.mrf.mxu0
      %v1103 = vadd.f32 %v985, %v1102
      %v1104 = vpop.f32.mrf.mxu0
      %1105 = vmatprep.mubr.f32.mxu0 0.0
      %1106 = vmatmul.mubr.f32.gmra.mxu0 %v1006
      %v1107 = vpop.f32.mrf.mxu0
      %v1108 = vadd.f32 %v985, %v1107
      %v1109 = vpop.f32.mrf.mxu0
      %1110 = vmatprep.mubr.f32.mxu0 0.0
      %1111 = vmatmul.mubr.f32.gmra.mxu0 %v1009
      %v1112 = vpop.f32.mrf.mxu0
      %v1113 = vadd.f32 %v985, %v1112
      %v1114 = vpop.f32.mrf.mxu0
      %1115 = vdwg.mxu0
      %v1116 = vld [vmem:[%s860] sm:$0xff]
      %v1117 = vld [vmem:[%s860 + $0x8] sm:$0xff]
      %v1118 = vld [vmem:[%s860 + $0x10] sm:$0xff]
      %v1119 = vld [vmem:[%s860 + $0x18] sm:$0xff]
      %v1120 = vld [vmem:[%s860 + $0x20] sm:$0xff]
      %v1121 = vld [vmem:[%s860 + $0x28] sm:$0xff]
      %v1122 = vld [vmem:[%s860 + $0x30] sm:$0xff]
      %v1123 = vld [vmem:[%s860 + $0x38] sm:$0xff]
      %v1124 = vld [vmem:[%s860 + $0x40] sm:$0xff]
      %v1125 = vld [vmem:[%s860 + $0x48] sm:$0xff]
      %v1126 = vld [vmem:[%s860 + $0x50] sm:$0xff]
      %v1127 = vld [vmem:[%s860 + $0x58] sm:$0xff]
      %v1128 = vld [vmem:[%s860 + $0x60] sm:$0xff]
      %v1129 = vld [vmem:[%s860 + $0x68] sm:$0xff]
      %v1130 = vld [vmem:[%s860 + $0x70] sm:$0xff]
      %v1131 = vld [vmem:[%s860 + $0x78] sm:$0xff]
      %v1132 = vld [vmem:[%s860 + $0x80] sm:$0xff]
      %v1133 = vld [vmem:[%s860 + $0x88] sm:$0xff]
      %v1134 = vld [vmem:[%s860 + $0x90] sm:$0xff]
      %v1135 = vld [vmem:[%s860 + $0x98] sm:$0xff]
      %v1136 = vld [vmem:[%s860 + $0xa0] sm:$0xff]
      %v1137 = vld [vmem:[%s860 + $0xa8] sm:$0xff]
      %v1138 = vld [vmem:[%s860 + $0xb0] sm:$0xff]
      %v1139 = vld [vmem:[%s860 + $0xb8] sm:$0xff]
      %v1140 = vld [vmem:[%s860 + $0xc0] sm:$0xff]
      %v1141 = vld [vmem:[%s860 + $0xc8] sm:$0xff]
      %v1142 = vld [vmem:[%s860 + $0xd0] sm:$0xff]
      %v1143 = vld [vmem:[%s860 + $0xd8] sm:$0xff]
      %v1144 = vld [vmem:[%s860 + $0xe0] sm:$0xff]
      %v1145 = vld [vmem:[%s860 + $0xe8] sm:$0xff]
      %v1146 = vld [vmem:[%s860 + $0xf0] sm:$0xff]
      %v1147 = vld [vmem:[%s860 + $0xf8] sm:$0xff]
      %v1148 = vld [vmem:[%s6] sm:$0x1]
      %v1149 = vld [vmem:[%s7] sm:$0x1]
      %v1150 = vsel %vm874, %v1078, 0.0
      %1151 = vadd.xlane.f32.xlu0 %v1150
      %v1152 = vpop.xlane.xlu0 %1151
      %v1153 = vsel %vm874, %v1083, 0.0
      %1154 = vadd.xlane.f32.xlu0 %v1153
      %v1155 = vpop.xlane.xlu0 %1154
      %v1156 = vsel %vm874, %v1088, 0.0
      %1157 = vadd.xlane.f32.xlu0 %v1156
      %v1158 = vpop.xlane.xlu0 %1157
      %v1159 = vsel %vm874, %v1093, 0.0
      %1160 = vadd.xlane.f32.xlu0 %v1159
      %v1161 = vpop.xlane.xlu0 %1160
      %v1162 = vsel %vm874, %v1098, 0.0
      %1163 = vadd.xlane.f32.xlu0 %v1162
      %v1164 = vpop.xlane.xlu0 %1163
      %v1165 = vsel %vm874, %v1103, 0.0
      %1166 = vadd.xlane.f32.xlu0 %v1165
      %v1167 = vpop.xlane.xlu0 %1166
      %v1168 = vsel %vm874, %v1108, 0.0
      %1169 = vadd.xlane.f32.xlu0 %v1168
      %v1170 = vpop.xlane.xlu0 %1169
      %v1171 = vsel %vm874, %v1113, 0.0
      %1172 = vadd.xlane.f32.xlu0 %v1171
      %v1173 = vpop.xlane.xlu0 %1172
      %v1174 = vrcp.pop 32.0
      %v1175 = vmul.f32 %v1152, %v1174
      %v1176 = vmul.f32 %v1155, %v1174
      %v1177 = vmul.f32 %v1158, %v1174
      %v1178 = vmul.f32 %v1161, %v1174
      %v1179 = vmul.f32 %v1164, %v1174
      %v1180 = vmul.f32 %v1167, %v1174
      %v1181 = vmul.f32 %v1170, %v1174
      %v1182 = vmul.f32 %v1173, %v1174
      %v1183 = vsub.f32 %v1078, %v1175
      %v1184 = vsub.f32 %v1083, %v1176
      %v1185 = vsub.f32 %v1088, %v1177
      %v1186 = vsub.f32 %v1093, %v1178
      %v1187 = vsub.f32 %v1098, %v1179
      %v1188 = vsub.f32 %v1103, %v1180
      %v1189 = vsub.f32 %v1108, %v1181
      %v1190 = vsub.f32 %v1113, %v1182
      %v1191 = vmul.f32 %v1183, %v1183
      %v1192 = vmul.f32 %v1184, %v1184
      %v1193 = vmul.f32 %v1185, %v1185
      %v1194 = vmul.f32 %v1186, %v1186
      %v1195 = vmul.f32 %v1187, %v1187
      %v1196 = vmul.f32 %v1188, %v1188
      %v1197 = vmul.f32 %v1189, %v1189
      %v1198 = vmul.f32 %v1190, %v1190
      %v1199 = vsel %vm874, %v1191, 0.0
      %1200 = vadd.xlane.f32.xlu0 %v1199
      %v1201 = vpop.xlane.xlu0 %1200
      %v1202 = vsel %vm874, %v1192, 0.0
      %1203 = vadd.xlane.f32.xlu0 %v1202
      %v1204 = vpop.xlane.xlu0 %1203
      %v1205 = vsel %vm874, %v1193, 0.0
      %1206 = vadd.xlane.f32.xlu0 %v1205
      %v1207 = vpop.xlane.xlu0 %1206
      %v1208 = vsel %vm874, %v1194, 0.0
      %1209 = vadd.xlane.f32.xlu0 %v1208
      %v1210 = vpop.xlane.xlu0 %1209
      %v1211 = vsel %vm874, %v1195, 0.0
      %1212 = vadd.xlane.f32.xlu0 %v1211
      %v1213 = vpop.xlane.xlu0 %1212
      %v1214 = vsel %vm874, %v1196, 0.0
      %1215 = vadd.xlane.f32.xlu0 %v1214
      %v1216 = vpop.xlane.xlu0 %1215
      %v1217 = vsel %vm874, %v1197, 0.0
      %1218 = vadd.xlane.f32.xlu0 %v1217
      %v1219 = vpop.xlane.xlu0 %1218
      %v1220 = vsel %vm874, %v1198, 0.0
      %1221 = vadd.xlane.f32.xlu0 %v1220
      %v1222 = vpop.xlane.xlu0 %1221
      %v1223 = vmul.f32 %v1201, %v1174
      %v1224 = vmul.f32 %v1204, %v1174
      %v1225 = vmul.f32 %v1207, %v1174
      %v1226 = vmul.f32 %v1210, %v1174
      %v1227 = vmul.f32 %v1213, %v1174
      %v1228 = vmul.f32 %v1216, %v1174
      %v1229 = vmul.f32 %v1219, %v1174
      %v1230 = vmul.f32 %v1222, %v1174
      %v1231 = vadd.f32 %v1223, 1e-05
      %v1232 = vadd.f32 %v1224, 1e-05
      %v1233 = vadd.f32 %v1225, 1e-05
      %v1234 = vadd.f32 %v1226, 1e-05
      %v1235 = vadd.f32 %v1227, 1e-05
      %v1236 = vadd.f32 %v1228, 1e-05
      %v1237 = vadd.f32 %v1229, 1e-05
      %v1238 = vadd.f32 %v1230, 1e-05
      %v1239 = vrsqrt.pop %v1231
      %v1240 = vrsqrt.pop %v1232
      %v1241 = vrsqrt.pop %v1233
      %v1242 = vrsqrt.pop %v1234
      %v1243 = vrsqrt.pop %v1235
      %v1244 = vrsqrt.pop %v1236
      %v1245 = vrsqrt.pop %v1237
      %v1246 = vrsqrt.pop %v1238
      %v1247 = vmul.f32 %v1183, %v1239
      %v1248 = vmul.f32 %v1184, %v1240
      %v1249 = vmul.f32 %v1185, %v1241
      %v1250 = vmul.f32 %v1186, %v1242
      %v1251 = vmul.f32 %v1187, %v1243
      %v1252 = vmul.f32 %v1188, %v1244
      %v1253 = vmul.f32 %v1189, %v1245
      %v1254 = vmul.f32 %v1190, %v1246
      %v1256 = vlaneseq
      %v1257 = vshrl.u32 %v1256, 7
      %v1258 = vsub.s32 0, %v1257
      %v1259 = vrot.slane %v1148, %v1258
      %v1261 = vmul.f32 %v1247, %v1259
      %v1262 = vmul.f32 %v1248, %v1259
      %v1263 = vmul.f32 %v1249, %v1259
      %v1264 = vmul.f32 %v1250, %v1259
      %v1265 = vmul.f32 %v1251, %v1259
      %v1266 = vmul.f32 %v1252, %v1259
      %v1267 = vmul.f32 %v1253, %v1259
      %v1268 = vmul.f32 %v1254, %v1259
      %v1270 = vlaneseq
      %v1271 = vshrl.u32 %v1270, 7
      %v1272 = vsub.s32 0, %v1271
      %v1273 = vrot.slane %v1149, %v1272
      %v1275 = vadd.f32 %v1261, %v1273
      %v1276 = vadd.f32 %v1262, %v1273
      %v1277 = vadd.f32 %v1263, %v1273
      %v1278 = vadd.f32 %v1264, %v1273
      %v1279 = vadd.f32 %v1265, %v1273
      %v1280 = vadd.f32 %v1266, %v1273
      %v1281 = vadd.f32 %v1267, %v1273
      %v1282 = vadd.f32 %v1268, %v1273
      %v1283 = vld [vmem:[%s8] sm:$0xff]
      %v1284 = vld [vmem:[%s8 + $0x8] sm:$0xff]
      %v1285 = vld [vmem:[%s8 + $0x10] sm:$0xff]
      %v1286 = vld [vmem:[%s8 + $0x18] sm:$0xff]
      %v1288 = vsel %vm874, %v1275, 0
      %v1291 = vsel %vm874, %v1276, 0
      %v1294 = vsel %vm874, %v1277, 0
      %v1297 = vsel %vm874, %v1278, 0
      %v1300 = vsel %vm874, %v1279, 0
      %v1303 = vsel %vm874, %v1280, 0
      %v1306 = vsel %vm874, %v1281, 0
      %v1309 = vsel %vm874, %v1282, 0
      %1311 = vmatprep.subr.mxu0 0.0
      %1312 = vmatpush1.msra.mxu0 0.0
      %1313 = vmatprep.subr.mxu0 0.0
      %1314 = vmatpush1.msra.mxu0 0.0
      %1315 = vmatprep.subr.mxu0 0.0
      %1316 = vmatpush1.msra.mxu0 0.0
      %1317 = vmatprep.subr.mxu0 0.0
      %1318 = vmatpush1.msra.mxu0 0.0
      %1319 = vmatprep.subr.mxu0 0.0
      %1320 = vmatpush1.msra.mxu0 0.0
      %1321 = vmatprep.subr.mxu0 0.0
      %1322 = vmatpush1.msra.mxu0 0.0
      %1323 = vmatprep.subr.mxu0 0.0
      %1324 = vmatpush1.msra.mxu0 0.0
      %1325 = vmatprep.subr.mxu0 0.0
      %1326 = vmatpush1.msra.mxu0 0.0
      %1327 = vmatprep.subr.mxu0 0.0
      %1328 = vmatpush1.msra.mxu0 0.0
      %1329 = vmatprep.subr.mxu0 0.0
      %1330 = vmatpush1.msra.mxu0 0.0
      %1331 = vmatprep.subr.mxu0 0.0
      %1332 = vmatpush1.msra.mxu0 0.0
      %1333 = vmatprep.subr.mxu0 0.0
      %1334 = vmatpush1.msra.mxu0 0.0
      %1335 = vmatprep.subr.mxu0 0.0
      %1336 = vmatpush1.msra.mxu0 %v1286
      %1337 = vmatprep.subr.mxu0 0.0
      %1338 = vmatpush1.msra.mxu0 %v1285
      %1339 = vmatprep.subr.mxu0 0.0
      %1340 = vmatpush1.msra.mxu0 %v1284
      %1341 = vmatprep.subr.mxu0 0.0
      %1342 = vmatpush1.msra.mxu0 %v1283
      %1343 = vmatprep.subr.mxu0 0.0
      %1344 = vmatpush2.msra.mxu0 0.0
      %1345 = vmatprep.subr.mxu0 0.0
      %1346 = vmatpush2.msra.mxu0 0.0
      %1347 = vmatprep.subr.mxu0 0.0
      %1348 = vmatpush2.msra.mxu0 0.0
      %1349 = vmatprep.subr.mxu0 0.0
      %1350 = vmatpush2.msra.mxu0 0.0
      %1351 = vmatprep.subr.mxu0 0.0
      %1352 = vmatpush2.msra.mxu0 0.0
      %1353 = vmatprep.subr.mxu0 0.0
      %1354 = vmatpush2.msra.mxu0 0.0
      %1355 = vmatprep.subr.mxu0 0.0
      %1356 = vmatpush2.msra.mxu0 0.0
      %1357 = vmatprep.subr.mxu0 0.0
      %1358 = vmatpush2.msra.mxu0 0.0
      %1359 = vmatprep.subr.mxu0 0.0
      %1360 = vmatpush2.msra.mxu0 0.0
      %1361 = vmatprep.subr.mxu0 0.0
      %1362 = vmatpush2.msra.mxu0 0.0
      %1363 = vmatprep.subr.mxu0 0.0
      %1364 = vmatpush2.msra.mxu0 0.0
      %1365 = vmatprep.subr.mxu0 0.0
      %1366 = vmatpush2.msra.mxu0 0.0
      %1367 = vmatprep.subr.mxu0 0.0
      %1368 = vmatpush2.msra.mxu0 0.0
      %1369 = vmatprep.subr.mxu0 0.0
      %1370 = vmatpush2.msra.mxu0 0.0
      %1371 = vmatprep.subr.mxu0 0.0
      %1372 = vmatpush2.msra.mxu0 0.0
      %1373 = vmatprep.subr.mxu0 0.0
      %1374 = vmatpush2.msra.mxu0 0.0
      %1375 = vmatprep.mubr.f32.mxu0 0.0
      %1376 = vmatmul.mubr.f32.gmra.mxu0 %v1288
      %v1377 = vpop.f32.mrf.mxu0
      %v1378 = vadd.f32 0.0, %v1377
      %v1379 = vpop.f32.mrf.mxu0
      %1380 = vmatprep.mubr.f32.mxu0 0.0
      %1381 = vmatmul.mubr.f32.gmra.mxu0 %v1291
      %v1382 = vpop.f32.mrf.mxu0
      %v1383 = vadd.f32 0.0, %v1382
      %v1384 = vpop.f32.mrf.mxu0
      %1385 = vmatprep.mubr.f32.mxu0 0.0
      %1386 = vmatmul.mubr.f32.gmra.mxu0 %v1294
      %v1387 = vpop.f32.mrf.mxu0
      %v1388 = vadd.f32 0.0, %v1387
      %v1389 = vpop.f32.mrf.mxu0
      %1390 = vmatprep.mubr.f32.mxu0 0.0
      %1391 = vmatmul.mubr.f32.gmra.mxu0 %v1297
      %v1392 = vpop.f32.mrf.mxu0
      %v1393 = vadd.f32 0.0, %v1392
      %v1394 = vpop.f32.mrf.mxu0
      %1395 = vmatprep.mubr.f32.mxu0 0.0
      %1396 = vmatmul.mubr.f32.gmra.mxu0 %v1300
      %v1397 = vpop.f32.mrf.mxu0
      %v1398 = vadd.f32 0.0, %v1397
      %v1399 = vpop.f32.mrf.mxu0
      %1400 = vmatprep.mubr.f32.mxu0 0.0
      %1401 = vmatmul.mubr.f32.gmra.mxu0 %v1303
      %v1402 = vpop.f32.mrf.mxu0
      %v1403 = vadd.f32 0.0, %v1402
      %v1404 = vpop.f32.mrf.mxu0
      %1405 = vmatprep.mubr.f32.mxu0 0.0
      %1406 = vmatmul.mubr.f32.gmra.mxu0 %v1306
      %v1407 = vpop.f32.mrf.mxu0
      %v1408 = vadd.f32 0.0, %v1407
      %v1409 = vpop.f32.mrf.mxu0
      %1410 = vmatprep.mubr.f32.mxu0 0.0
      %1411 = vmatmul.mubr.f32.gmra.mxu0 %v1309
      %v1412 = vpop.f32.mrf.mxu0
      %v1413 = vadd.f32 0.0, %v1412
      %v1414 = vpop.f32.mrf.mxu0
      %1415 = vdwg.mxu0
      %v1416 = vld [vmem:[%s9] sm:$0xff]
      %v1417 = vld [vmem:[%s9 + $0x8] sm:$0xff]
      %v1418 = vld [vmem:[%s9 + $0x10] sm:$0xff]
      %v1419 = vld [vmem:[%s9 + $0x18] sm:$0xff]
      %1420 = vmatprep.subr.mxu0 0.0
      %1421 = vmatpush1.msra.mxu0 0.0
      %1422 = vmatprep.subr.mxu0 0.0
      %1423 = vmatpush1.msra.mxu0 0.0
      %1424 = vmatprep.subr.mxu0 0.0
      %1425 = vmatpush1.msra.mxu0 0.0
      %1426 = vmatprep.subr.mxu0 0.0
      %1427 = vmatpush1.msra.mxu0 0.0
      %1428 = vmatprep.subr.mxu0 0.0
      %1429 = vmatpush1.msra.mxu0 0.0
      %1430 = vmatprep.subr.mxu0 0.0
      %1431 = vmatpush1.msra.mxu0 0.0
      %1432 = vmatprep.subr.mxu0 0.0
      %1433 = vmatpush1.msra.mxu0 0.0
      %1434 = vmatprep.subr.mxu0 0.0
      %1435 = vmatpush1.msra.mxu0 0.0
      %1436 = vmatprep.subr.mxu0 0.0
      %1437 = vmatpush1.msra.mxu0 0.0
      %1438 = vmatprep.subr.mxu0 0.0
      %1439 = vmatpush1.msra.mxu0 0.0
      %1440 = vmatprep.subr.mxu0 0.0
      %1441 = vmatpush1.msra.mxu0 0.0
      %1442 = vmatprep.subr.mxu0 0.0
      %1443 = vmatpush1.msra.mxu0 0.0
      %1444 = vmatprep.subr.mxu0 0.0
      %1445 = vmatpush1.msra.mxu0 %v1419
      %1446 = vmatprep.subr.mxu0 0.0
      %1447 = vmatpush1.msra.mxu0 %v1418
      %1448 = vmatprep.subr.mxu0 0.0
      %1449 = vmatpush1.msra.mxu0 %v1417
      %1450 = vmatprep.subr.mxu0 0.0
      %1451 = vmatpush1.msra.mxu0 %v1416
      %1452 = vmatprep.subr.mxu0 0.0
      %1453 = vmatpush2.msra.mxu0 0.0
      %1454 = vmatprep.subr.mxu0 0.0
      %1455 = vmatpush2.msra.mxu0 0.0
      %1456 = vmatprep.subr.mxu0 0.0
      %1457 = vmatpush2.msra.mxu0 0.0
      %1458 = vmatprep.subr.mxu0 0.0
      %1459 = vmatpush2.msra.mxu0 0.0
      %1460 = vmatprep.subr.mxu0 0.0
      %1461 = vmatpush2.msra.mxu0 0.0
      %1462 = vmatprep.subr.mxu0 0.0
      %1463 = vmatpush2.msra.mxu0 0.0
      %1464 = vmatprep.subr.mxu0 0.0
      %1465 = vmatpush2.msra.mxu0 0.0
      %1466 = vmatprep.subr.mxu0 0.0
      %1467 = vmatpush2.msra.mxu0 0.0
      %1468 = vmatprep.subr.mxu0 0.0
      %1469 = vmatpush2.msra.mxu0 0.0
      %1470 = vmatprep.subr.mxu0 0.0
      %1471 = vmatpush2.msra.mxu0 0.0
      %1472 = vmatprep.subr.mxu0 0.0
      %1473 = vmatpush2.msra.mxu0 0.0
      %1474 = vmatprep.subr.mxu0 0.0
      %1475 = vmatpush2.msra.mxu0 0.0
      %1476 = vmatprep.subr.mxu0 0.0
      %1477 = vmatpush2.msra.mxu0 0.0
      %1478 = vmatprep.subr.mxu0 0.0
      %1479 = vmatpush2.msra.mxu0 0.0
      %1480 = vmatprep.subr.mxu0 0.0
      %1481 = vmatpush2.msra.mxu0 0.0
      %1482 = vmatprep.subr.mxu0 0.0
      %1483 = vmatpush2.msra.mxu0 0.0
      %1484 = vmatprep.mubr.f32.mxu0 0.0
      %1485 = vmatmul.mubr.f32.gmra.mxu0 %v1288
      %v1486 = vpop.f32.mrf.mxu0
      %v1487 = vadd.f32 0.0, %v1486
      %v1488 = vpop.f32.mrf.mxu0
      %1489 = vmatprep.mubr.f32.mxu0 0.0
      %1490 = vmatmul.mubr.f32.gmra.mxu0 %v1291
      %v1491 = vpop.f32.mrf.mxu0
      %v1492 = vadd.f32 0.0, %v1491
      %v1493 = vpop.f32.mrf.mxu0
      %1494 = vmatprep.mubr.f32.mxu0 0.0
      %1495 = vmatmul.mubr.f32.gmra.mxu0 %v1294
      %v1496 = vpop.f32.mrf.mxu0
      %v1497 = vadd.f32 0.0, %v1496
      %v1498 = vpop.f32.mrf.mxu0
      %1499 = vmatprep.mubr.f32.mxu0 0.0
      %1500 = vmatmul.mubr.f32.gmra.mxu0 %v1297
      %v1501 = vpop.f32.mrf.mxu0
      %v1502 = vadd.f32 0.0, %v1501
      %v1503 = vpop.f32.mrf.mxu0
      %1504 = vmatprep.mubr.f32.mxu0 0.0
      %1505 = vmatmul.mubr.f32.gmra.mxu0 %v1300
      %v1506 = vpop.f32.mrf.mxu0
      %v1507 = vadd.f32 0.0, %v1506
      %v1508 = vpop.f32.mrf.mxu0
      %1509 = vmatprep.mubr.f32.mxu0 0.0
      %1510 = vmatmul.mubr.f32.gmra.mxu0 %v1303
      %v1511 = vpop.f32.mrf.mxu0
      %v1512 = vadd.f32 0.0, %v1511
      %v1513 = vpop.f32.mrf.mxu0
      %1514 = vmatprep.mubr.f32.mxu0 0.0
      %1515 = vmatmul.mubr.f32.gmra.mxu0 %v1306
      %v1516 = vpop.f32.mrf.mxu0
      %v1517 = vadd.f32 0.0, %v1516
      %v1518 = vpop.f32.mrf.mxu0
      %1519 = vmatprep.mubr.f32.mxu0 0.0
      %1520 = vmatmul.mubr.f32.gmra.mxu0 %v1309
      %v1521 = vpop.f32.mrf.mxu0
      %v1522 = vadd.f32 0.0, %v1521
      %v1523 = vpop.f32.mrf.mxu0
      %1524 = vdwg.mxu0
      %v1525 = vld [vmem:[%s10] sm:$0xff]
      %v1526 = vld [vmem:[%s10 + $0x8] sm:$0xff]
      %v1527 = vld [vmem:[%s10 + $0x10] sm:$0xff]
      %v1528 = vld [vmem:[%s10 + $0x18] sm:$0xff]
      %1529 = vmatprep.subr.mxu0 0.0
      %1530 = vmatpush1.msra.mxu0 0.0
      %1531 = vmatprep.subr.mxu0 0.0
      %1532 = vmatpush1.msra.mxu0 0.0
      %1533 = vmatprep.subr.mxu0 0.0
      %1534 = vmatpush1.msra.mxu0 0.0
      %1535 = vmatprep.subr.mxu0 0.0
      %1536 = vmatpush1.msra.mxu0 0.0
      %1537 = vmatprep.subr.mxu0 0.0
      %1538 = vmatpush1.msra.mxu0 0.0
      %1539 = vmatprep.subr.mxu0 0.0
      %1540 = vmatpush1.msra.mxu0 0.0
      %1541 = vmatprep.subr.mxu0 0.0
      %1542 = vmatpush1.msra.mxu0 0.0
      %1543 = vmatprep.subr.mxu0 0.0
      %1544 = vmatpush1.msra.mxu0 0.0
      %1545 = vmatprep.subr.mxu0 0.0
      %1546 = vmatpush1.msra.mxu0 0.0
      %1547 = vmatprep.subr.mxu0 0.0
      %1548 = vmatpush1.msra.mxu0 0.0
      %1549 = vmatprep.subr.mxu0 0.0
      %1550 = vmatpush1.msra.mxu0 0.0
      %1551 = vmatprep.subr.mxu0 0.0
      %1552 = vmatpush1.msra.mxu0 0.0
      %1553 = vmatprep.subr.mxu0 0.0
      %1554 = vmatpush1.msra.mxu0 %v1528
      %1555 = vmatprep.subr.mxu0 0.0
      %1556 = vmatpush1.msra.mxu0 %v1527
      %1557 = vmatprep.subr.mxu0 0.0
      %1558 = vmatpush1.msra.mxu0 %v1526
      %1559 = vmatprep.subr.mxu0 0.0
      %1560 = vmatpush1.msra.mxu0 %v1525
      %1561 = vmatprep.subr.mxu0 0.0
      %1562 = vmatpush2.msra.mxu0 0.0
      %1563 = vmatprep.subr.mxu0 0.0
      %1564 = vmatpush2.msra.mxu0 0.0
      %1565 = vmatprep.subr.mxu0 0.0
      %1566 = vmatpush2.msra.mxu0 0.0
      %1567 = vmatprep.subr.mxu0 0.0
      %1568 = vmatpush2.msra.mxu0 0.0
      %1569 = vmatprep.subr.mxu0 0.0
      %1570 = vmatpush2.msra.mxu0 0.0
      %1571 = vmatprep.subr.mxu0 0.0
      %1572 = vmatpush2.msra.mxu0 0.0
      %1573 = vmatprep.subr.mxu0 0.0
      %1574 = vmatpush2.msra.mxu0 0.0
      %1575 = vmatprep.subr.mxu0 0.0
      %1576 = vmatpush2.msra.mxu0 0.0
      %1577 = vmatprep.subr.mxu0 0.0
      %1578 = vmatpush2.msra.mxu0 0.0
      %1579 = vmatprep.subr.mxu0 0.0
      %1580 = vmatpush2.msra.mxu0 0.0
      %1581 = vmatprep.subr.mxu0 0.0
      %1582 = vmatpush2.msra.mxu0 0.0
      %1583 = vmatprep.subr.mxu0 0.0
      %1584 = vmatpush2.msra.mxu0 0.0
      %1585 = vmatprep.subr.mxu0 0.0
      %1586 = vmatpush2.msra.mxu0 0.0
      %1587 = vmatprep.subr.mxu0 0.0
      %1588 = vmatpush2.msra.mxu0 0.0
      %1589 = vmatprep.subr.mxu0 0.0
      %1590 = vmatpush2.msra.mxu0 0.0
      %1591 = vmatprep.subr.mxu0 0.0
      %1592 = vmatpush2.msra.mxu0 0.0
      %1593 = vmatprep.mubr.f32.mxu0 0.0
      %1594 = vmatmul.mubr.f32.gmra.mxu0 %v1288
      %v1595 = vpop.f32.mrf.mxu0
      %v1596 = vadd.f32 0.0, %v1595
      %v1597 = vpop.f32.mrf.mxu0
      %1598 = vmatprep.mubr.f32.mxu0 0.0
      %1599 = vmatmul.mubr.f32.gmra.mxu0 %v1291
      %v1600 = vpop.f32.mrf.mxu0
      %v1601 = vadd.f32 0.0, %v1600
      %v1602 = vpop.f32.mrf.mxu0
      %1603 = vmatprep.mubr.f32.mxu0 0.0
      %1604 = vmatmul.mubr.f32.gmra.mxu0 %v1294
      %v1605 = vpop.f32.mrf.mxu0
      %v1606 = vadd.f32 0.0, %v1605
      %v1607 = vpop.f32.mrf.mxu0
      %1608 = vmatprep.mubr.f32.mxu0 0.0
      %1609 = vmatmul.mubr.f32.gmra.mxu0 %v1297
      %v1610 = vpop.f32.mrf.mxu0
      %v1611 = vadd.f32 0.0, %v1610
      %v1612 = vpop.f32.mrf.mxu0
      %1613 = vmatprep.mubr.f32.mxu0 0.0
      %1614 = vmatmul.mubr.f32.gmra.mxu0 %v1300
      %v1615 = vpop.f32.mrf.mxu0
      %v1616 = vadd.f32 0.0, %v1615
      %v1617 = vpop.f32.mrf.mxu0
      %1618 = vmatprep.mubr.f32.mxu0 0.0
      %1619 = vmatmul.mubr.f32.gmra.mxu0 %v1303
      %v1620 = vpop.f32.mrf.mxu0
      %v1621 = vadd.f32 0.0, %v1620
      %v1622 = vpop.f32.mrf.mxu0
      %1623 = vmatprep.mubr.f32.mxu0 0.0
      %1624 = vmatmul.mubr.f32.gmra.mxu0 %v1306
      %v1625 = vpop.f32.mrf.mxu0
      %v1626 = vadd.f32 0.0, %v1625
      %v1627 = vpop.f32.mrf.mxu0
      %1628 = vmatprep.mubr.f32.mxu0 0.0
      %1629 = vmatmul.mubr.f32.gmra.mxu0 %v1309
      %v1630 = vpop.f32.mrf.mxu0
      %v1631 = vadd.f32 0.0, %v1630
      %v1632 = vpop.f32.mrf.mxu0
      %1633 = vdwg.mxu0
      %vm1634 = vcmask 130048
      %v1636 = vsel %vm1634, %v1378, 0
      %v1639 = vsel %vm1634, %v1383, 0
      %v1642 = vsel %vm1634, %v1388, 0
      %v1645 = vsel %vm1634, %v1393, 0
      %v1648 = vsel %vm1634, %v1398, 0
      %v1651 = vsel %vm1634, %v1403, 0
      %v1654 = vsel %vm1634, %v1408, 0
      %v1657 = vsel %vm1634, %v1413, 0
      %v1660 = vsel %vm1634, %v1487, 0
      %v1663 = vsel %vm1634, %v1492, 0
      %v1666 = vsel %vm1634, %v1497, 0
      %v1669 = vsel %vm1634, %v1502, 0
      %v1672 = vsel %vm1634, %v1507, 0
      %v1675 = vsel %vm1634, %v1512, 0
      %v1678 = vsel %vm1634, %v1517, 0
      %v1681 = vsel %vm1634, %v1522, 0
      %1683 = vmatprep.subr.mxu0 0.0
      %1684 = vmatpush1.xpose.msra.mxu0 0.0
      %1685 = vmatprep.subr.mxu0 0.0
      %1686 = vmatpush1.xpose.msra.mxu0 0.0
      %1687 = vmatprep.subr.mxu0 0.0
      %1688 = vmatpush1.xpose.msra.mxu0 0.0
      %1689 = vmatprep.subr.mxu0 0.0
      %1690 = vmatpush1.xpose.msra.mxu0 0.0
      %1691 = vmatprep.subr.mxu0 0.0
      %1692 = vmatpush1.xpose.msra.mxu0 0.0
      %1693 = vmatprep.subr.mxu0 0.0
      %1694 = vmatpush1.xpose.msra.mxu0 0.0
      %1695 = vmatprep.subr.mxu0 0.0
      %1696 = vmatpush1.xpose.msra.mxu0 0.0
      %1697 = vmatprep.subr.mxu0 0.0
      %1698 = vmatpush1.xpose.msra.mxu0 0.0
      %1699 = vmatprep.subr.mxu0 0.0
      %1700 = vmatpush1.xpose.msra.mxu0 %v1681
      %1701 = vmatprep.subr.mxu0 0.0
      %1702 = vmatpush1.xpose.msra.mxu0 %v1678
      %1703 = vmatprep.subr.mxu0 0.0
      %1704 = vmatpush1.xpose.msra.mxu0 %v1675
      %1705 = vmatprep.subr.mxu0 0.0
      %1706 = vmatpush1.xpose.msra.mxu0 %v1672
      %1707 = vmatprep.subr.mxu0 0.0
      %1708 = vmatpush1.xpose.msra.mxu0 %v1669
      %1709 = vmatprep.subr.mxu0 0.0
      %1710 = vmatpush1.xpose.msra.mxu0 %v1666
      %1711 = vmatprep.subr.mxu0 0.0
      %1712 = vmatpush1.xpose.msra.mxu0 %v1663
      %1713 = vmatprep.subr.mxu0 0.0
      %1714 = vmatpush1.xpose.msra.mxu0 %v1660
      %1715 = vmatprep.subr.mxu0 0.0
      %1716 = vmatpush2.xpose.msra.mxu0 0.0
      %1717 = vmatprep.subr.mxu0 0.0
      %1718 = vmatpush2.xpose.msra.mxu0 0.0
      %1719 = vmatprep.subr.mxu0 0.0
      %1720 = vmatpush2.xpose.msra.mxu0 0.0
      %1721 = vmatprep.subr.mxu0 0.0
      %1722 = vmatpush2.xpose.msra.mxu0 0.0
      %1723 = vmatprep.subr.mxu0 0.0
      %1724 = vmatpush2.xpose.msra.mxu0 0.0
      %1725 = vmatprep.subr.mxu0 0.0
      %1726 = vmatpush2.xpose.msra.mxu0 0.0
      %1727 = vmatprep.subr.mxu0 0.0
      %1728 = vmatpush2.xpose.msra.mxu0 0.0
      %1729 = vmatprep.subr.mxu0 0.0
      %1730 = vmatpush2.xpose.msra.mxu0 0.0
      %1731 = vmatprep.subr.mxu0 0.0
      %1732 = vmatpush2.xpose.msra.mxu0 0.0
      %1733 = vmatprep.subr.mxu0 0.0
      %1734 = vmatpush2.xpose.msra.mxu0 0.0
      %1735 = vmatprep.subr.mxu0 0.0
      %1736 = vmatpush2.xpose.msra.mxu0 0.0
      %1737 = vmatprep.subr.mxu0 0.0
      %1738 = vmatpush2.xpose.msra.mxu0 0.0
      %1739 = vmatprep.subr.mxu0 0.0
      %1740 = vmatpush2.xpose.msra.mxu0 0.0
      %1741 = vmatprep.subr.mxu0 0.0
      %1742 = vmatpush2.xpose.msra.mxu0 0.0
      %1743 = vmatprep.subr.mxu0 0.0
      %1744 = vmatpush2.xpose.msra.mxu0 0.0
      %1745 = vmatprep.subr.mxu0 0.0
      %1746 = vmatpush2.xpose.msra.mxu0 0.0
      %1747 = vmatprep.mubr.f32.mxu0 0.0
      %1748 = vmatmul.mubr.f32.gmra.mxu0 %v1636
      %v1749 = vpop.f32.mrf.mxu0
      %v1750 = vadd.f32 0.0, %v1749
      %v1751 = vpop.f32.mrf.mxu0
      %1752 = vmatprep.mubr.f32.mxu0 0.0
      %1753 = vmatmul.mubr.f32.gmra.mxu0 %v1639
      %v1754 = vpop.f32.mrf.mxu0
      %v1755 = vadd.f32 0.0, %v1754
      %v1756 = vpop.f32.mrf.mxu0
      %1757 = vmatprep.mubr.f32.mxu0 0.0
      %1758 = vmatmul.mubr.f32.gmra.mxu0 %v1642
      %v1759 = vpop.f32.mrf.mxu0
      %v1760 = vadd.f32 0.0, %v1759
      %v1761 = vpop.f32.mrf.mxu0
      %1762 = vmatprep.mubr.f32.mxu0 0.0
      %1763 = vmatmul.mubr.f32.gmra.mxu0 %v1645
      %v1764 = vpop.f32.mrf.mxu0
      %v1765 = vadd.f32 0.0, %v1764
      %v1766 = vpop.f32.mrf.mxu0
      %1767 = vmatprep.mubr.f32.mxu0 0.0
      %1768 = vmatmul.mubr.f32.gmra.mxu0 %v1648
      %v1769 = vpop.f32.mrf.mxu0
      %v1770 = vadd.f32 0.0, %v1769
      %v1771 = vpop.f32.mrf.mxu0
      %1772 = vmatprep.mubr.f32.mxu0 0.0
      %1773 = vmatmul.mubr.f32.gmra.mxu0 %v1651
      %v1774 = vpop.f32.mrf.mxu0
      %v1775 = vadd.f32 0.0, %v1774
      %v1776 = vpop.f32.mrf.mxu0
      %1777 = vmatprep.mubr.f32.mxu0 0.0
      %1778 = vmatmul.mubr.f32.gmra.mxu0 %v1654
      %v1779 = vpop.f32.mrf.mxu0
      %v1780 = vadd.f32 0.0, %v1779
      %v1781 = vpop.f32.mrf.mxu0
      %1782 = vmatprep.mubr.f32.mxu0 0.0
      %1783 = vmatmul.mubr.f32.gmra.mxu0 %v1657
      %v1784 = vpop.f32.mrf.mxu0
      %v1785 = vadd.f32 0.0, %v1784
      %v1786 = vpop.f32.mrf.mxu0
      %1787 = vdwg.mxu0
      %v1788 = vmul.f32 %v1750, 0.25
      %v1789 = vmul.f32 %v1755, 0.25
      %v1790 = vmul.f32 %v1760, 0.25
      %v1791 = vmul.f32 %v1765, 0.25
      %v1792 = vmul.f32 %v1770, 0.25
      %v1793 = vmul.f32 %v1775, 0.25
      %v1794 = vmul.f32 %v1780, 0.25
      %v1795 = vmul.f32 %v1785, 0.25
      %vm1796 = vcmask 523264
      %v1797 = vsel %vm1796, %v1788, -inf
      %1798 = vmax.xlane.f32.xlu0 %v1797
      %v1799 = vpop.xlane.xlu0 %1798
      %v1800 = vsel %vm1796, %v1789, -inf
      %1801 = vmax.xlane.f32.xlu0 %v1800
      %v1802 = vpop.xlane.xlu0 %1801
      %v1803 = vsel %vm1796, %v1790, -inf
      %1804 = vmax.xlane.f32.xlu0 %v1803
      %v1805 = vpop.xlane.xlu0 %1804
      %v1806 = vsel %vm1796, %v1791, -inf
      %1807 = vmax.xlane.f32.xlu0 %v1806
      %v1808 = vpop.xlane.xlu0 %1807
      %v1809 = vsel %vm1796, %v1792, -inf
      %1810 = vmax.xlane.f32.xlu0 %v1809
      %v1811 = vpop.xlane.xlu0 %1810
      %v1812 = vsel %vm1796, %v1793, -inf
      %1813 = vmax.xlane.f32.xlu0 %v1812
      %v1814 = vpop.xlane.xlu0 %1813
      %v1815 = vsel %vm1796, %v1794, -inf
      %1816 = vmax.xlane.f32.xlu0 %v1815
      %v1817 = vpop.xlane.xlu0 %1816
      %v1818 = vsel %vm1796, %v1795, -inf
      %1819 = vmax.xlane.f32.xlu0 %v1818
      %v1820 = vpop.xlane.xlu0 %1819
      %v1821 = vsub.f32 %v1788, %v1799
      %v1822 = vsub.f32 %v1789, %v1802
      %v1823 = vsub.f32 %v1790, %v1805
      %v1824 = vsub.f32 %v1791, %v1808
      %v1825 = vsub.f32 %v1792, %v1811
      %v1826 = vsub.f32 %v1793, %v1814
      %v1827 = vsub.f32 %v1794, %v1817
      %v1828 = vsub.f32 %v1795, %v1820
      %v1829 = vmul.f32 %v1821, 1.442695
      %v1830 = vpow.pop %v1829
      %v1831 = vmul.f32 %v1822, 1.442695
      %v1832 = vpow.pop %v1831
      %v1833 = vmul.f32 %v1823, 1.442695
      %v1834 = vpow.pop %v1833
      %v1835 = vmul.f32 %v1824, 1.442695
      %v1836 = vpow.pop %v1835
      %v1837 = vmul.f32 %v1825, 1.442695
      %v1838 = vpow.pop %v1837
      %v1839 = vmul.f32 %v1826, 1.442695
      %v1840 = vpow.pop %v1839
      %v1841 = vmul.f32 %v1827, 1.442695
      %v1842 = vpow.pop %v1841
      %v1843 = vmul.f32 %v1828, 1.442695
      %v1844 = vpow.pop %v1843
      %v1845 = vsel %vm1796, %v1830, 0.0
      %1846 = vadd.xlane.f32.xlu0 %v1845
      %v1847 = vpop.xlane.xlu0 %1846
      %v1848 = vsel %vm1796, %v1832, 0.0
      %1849 = vadd.xlane.f32.xlu0 %v1848
      %v1850 = vpop.xlane.xlu0 %1849
      %v1851 = vsel %vm1796, %v1834, 0.0
      %1852 = vadd.xlane.f32.xlu0 %v1851
      %v1853 = vpop.xlane.xlu0 %1852
      %v1854 = vsel %vm1796, %v1836, 0.0
      %1855 = vadd.xlane.f32.xlu0 %v1854
      %v1856 = vpop.xlane.xlu0 %1855
      %v1857 = vsel %vm1796, %v1838, 0.0
      %1858 = vadd.xlane.f32.xlu0 %v1857
      %v1859 = vpop.xlane.xlu0 %1858
      %v1860 = vsel %vm1796, %v1840, 0.0
      %1861 = vadd.xlane.f32.xlu0 %v1860
      %v1862 = vpop.xlane.xlu0 %1861
      %v1863 = vsel %vm1796, %v1842, 0.0
      %1864 = vadd.xlane.f32.xlu0 %v1863
      %v1865 = vpop.xlane.xlu0 %1864
      %v1866 = vsel %vm1796, %v1844, 0.0
      %1867 = vadd.xlane.f32.xlu0 %v1866
      %v1868 = vpop.xlane.xlu0 %1867
      %v1869 = vrcp.pop %v1847
      %v1870 = vrcp.pop %v1850
      %v1871 = vrcp.pop %v1853
      %v1872 = vrcp.pop %v1856
      %v1873 = vrcp.pop %v1859
      %v1874 = vrcp.pop %v1862
      %v1875 = vrcp.pop %v1865
      %v1876 = vrcp.pop %v1868
      %v1877 = vmul.f32 %v1830, %v1869
      %v1878 = vmul.f32 %v1832, %v1870
      %v1879 = vmul.f32 %v1834, %v1871
      %v1880 = vmul.f32 %v1836, %v1872
      %v1881 = vmul.f32 %v1838, %v1873
      %v1882 = vmul.f32 %v1840, %v1874
      %v1883 = vmul.f32 %v1842, %v1875
      %v1884 = vmul.f32 %v1844, %v1876
      %v1886 = vsel %vm1796, %v1877, 0
      %v1889 = vsel %vm1796, %v1878, 0
      %v1892 = vsel %vm1796, %v1879, 0
      %v1895 = vsel %vm1796, %v1880, 0
      %v1898 = vsel %vm1796, %v1881, 0
      %v1901 = vsel %vm1796, %v1882, 0
      %v1904 = vsel %vm1796, %v1883, 0
      %v1907 = vsel %vm1796, %v1884, 0
      %1909 = vmatprep.subr.mxu0 0.0
      %1910 = vmatpush1.msra.mxu0 0.0
      %1911 = vmatprep.subr.mxu0 0.0
      %1912 = vmatpush1.msra.mxu0 0.0
      %1913 = vmatprep.subr.mxu0 0.0
      %1914 = vmatpush1.msra.mxu0 0.0
      %1915 = vmatprep.subr.mxu0 0.0
      %1916 = vmatpush1.msra.mxu0 0.0
      %1917 = vmatprep.subr.mxu0 0.0
      %1918 = vmatpush1.msra.mxu0 0.0
      %1919 = vmatprep.subr.mxu0 0.0
      %1920 = vmatpush1.msra.mxu0 0.0
      %1921 = vmatprep.subr.mxu0 0.0
      %1922 = vmatpush1.msra.mxu0 0.0
      %1923 = vmatprep.subr.mxu0 0.0
      %1924 = vmatpush1.msra.mxu0 0.0
      %1925 = vmatprep.subr.mxu0 0.0
      %1926 = vmatpush1.msra.mxu0 %v1631
      %1927 = vmatprep.subr.mxu0 0.0
      %1928 = vmatpush1.msra.mxu0 %v1626
      %1929 = vmatprep.subr.mxu0 0.0
      %1930 = vmatpush1.msra.mxu0 %v1621
      %1931 = vmatprep.subr.mxu0 0.0
      %1932 = vmatpush1.msra.mxu0 %v1616
      %1933 = vmatprep.subr.mxu0 0.0
      %1934 = vmatpush1.msra.mxu0 %v1611
      %1935 = vmatprep.subr.mxu0 0.0
      %1936 = vmatpush1.msra.mxu0 %v1606
      %1937 = vmatprep.subr.mxu0 0.0
      %1938 = vmatpush1.msra.mxu0 %v1601
      %1939 = vmatprep.subr.mxu0 0.0
      %1940 = vmatpush1.msra.mxu0 %v1596
      %1941 = vmatprep.subr.mxu0 0.0
      %1942 = vmatpush2.msra.mxu0 0.0
      %1943 = vmatprep.subr.mxu0 0.0
      %1944 = vmatpush2.msra.mxu0 0.0
      %1945 = vmatprep.subr.mxu0 0.0
      %1946 = vmatpush2.msra.mxu0 0.0
      %1947 = vmatprep.subr.mxu0 0.0
      %1948 = vmatpush2.msra.mxu0 0.0
      %1949 = vmatprep.subr.mxu0 0.0
      %1950 = vmatpush2.msra.mxu0 0.0
      %1951 = vmatprep.subr.mxu0 0.0
      %1952 = vmatpush2.msra.mxu0 0.0
      %1953 = vmatprep.subr.mxu0 0.0
      %1954 = vmatpush2.msra.mxu0 0.0
      %1955 = vmatprep.subr.mxu0 0.0
      %1956 = vmatpush2.msra.mxu0 0.0
      %1957 = vmatprep.subr.mxu0 0.0
      %1958 = vmatpush2.msra.mxu0 0.0
      %1959 = vmatprep.subr.mxu0 0.0
      %1960 = vmatpush2.msra.mxu0 0.0
      %1961 = vmatprep.subr.mxu0 0.0
      %1962 = vmatpush2.msra.mxu0 0.0
      %1963 = vmatprep.subr.mxu0 0.0
      %1964 = vmatpush2.msra.mxu0 0.0
      %1965 = vmatprep.subr.mxu0 0.0
      %1966 = vmatpush2.msra.mxu0 0.0
      %1967 = vmatprep.subr.mxu0 0.0
      %1968 = vmatpush2.msra.mxu0 0.0
      %1969 = vmatprep.subr.mxu0 0.0
      %1970 = vmatpush2.msra.mxu0 0.0
      %1971 = vmatprep.subr.mxu0 0.0
      %1972 = vmatpush2.msra.mxu0 0.0
      %1973 = vmatprep.mubr.f32.mxu0 0.0
      %1974 = vmatmul.mubr.f32.gmra.mxu0 %v1886
      %v1975 = vpop.f32.mrf.mxu0
      %v1976 = vadd.f32 0.0, %v1975
      %v1977 = vpop.f32.mrf.mxu0
      %1978 = vmatprep.mubr.f32.mxu0 0.0
      %1979 = vmatmul.mubr.f32.gmra.mxu0 %v1889
      %v1980 = vpop.f32.mrf.mxu0
      %v1981 = vadd.f32 0.0, %v1980
      %v1982 = vpop.f32.mrf.mxu0
      %1983 = vmatprep.mubr.f32.mxu0 0.0
      %1984 = vmatmul.mubr.f32.gmra.mxu0 %v1892
      %v1985 = vpop.f32.mrf.mxu0
      %v1986 = vadd.f32 0.0, %v1985
      %v1987 = vpop.f32.mrf.mxu0
      %1988 = vmatprep.mubr.f32.mxu0 0.0
      %1989 = vmatmul.mubr.f32.gmra.mxu0 %v1895
      %v1990 = vpop.f32.mrf.mxu0
      %v1991 = vadd.f32 0.0, %v1990
      %v1992 = vpop.f32.mrf.mxu0
      %1993 = vmatprep.mubr.f32.mxu0 0.0
      %1994 = vmatmul.mubr.f32.gmra.mxu0 %v1898
      %v1995 = vpop.f32.mrf.mxu0
      %v1996 = vadd.f32 0.0, %v1995
      %v1997 = vpop.f32.mrf.mxu0
      %1998 = vmatprep.mubr.f32.mxu0 0.0
      %1999 = vmatmul.mubr.f32.gmra.mxu0 %v1901
      %v2000 = vpop.f32.mrf.mxu0
      %v2001 = vadd.f32 0.0, %v2000
      %v2002 = vpop.f32.mrf.mxu0
      %2003 = vmatprep.mubr.f32.mxu0 0.0
      %2004 = vmatmul.mubr.f32.gmra.mxu0 %v1904
      %v2005 = vpop.f32.mrf.mxu0
      %v2006 = vadd.f32 0.0, %v2005
      %v2007 = vpop.f32.mrf.mxu0
      %2008 = vmatprep.mubr.f32.mxu0 0.0
      %2009 = vmatmul.mubr.f32.gmra.mxu0 %v1907
      %v2010 = vpop.f32.mrf.mxu0
      %v2011 = vadd.f32 0.0, %v2010
      %v2012 = vpop.f32.mrf.mxu0
      %2013 = vdwg.mxu0
      %2014 = vrot.lane.b32.xlu0 %v1378, 112
      %v2015 = vpop.permute.xlu0 %2014
      %2016 = vrot.lane.b32.xlu0 %v1383, 112
      %v2017 = vpop.permute.xlu0 %2016
      %2018 = vrot.lane.b32.xlu0 %v1388, 112
      %v2019 = vpop.permute.xlu0 %2018
      %2020 = vrot.lane.b32.xlu0 %v1393, 112
      %v2021 = vpop.permute.xlu0 %2020
      %2022 = vrot.lane.b32.xlu0 %v1398, 112
      %v2023 = vpop.permute.xlu0 %2022
      %2024 = vrot.lane.b32.xlu0 %v1403, 112
      %v2025 = vpop.permute.xlu0 %2024
      %2026 = vrot.lane.b32.xlu0 %v1408, 112
      %v2027 = vpop.permute.xlu0 %2026
      %2028 = vrot.lane.b32.xlu0 %v1413, 112
      %v2029 = vpop.permute.xlu0 %2028
      %2030 = vrot.lane.b32.xlu0 %v1487, 112
      %v2031 = vpop.permute.xlu0 %2030
      %2032 = vrot.lane.b32.xlu0 %v1492, 112
      %v2033 = vpop.permute.xlu0 %2032
      %2034 = vrot.lane.b32.xlu0 %v1497, 112
      %v2035 = vpop.permute.xlu0 %2034
      %2036 = vrot.lane.b32.xlu0 %v1502, 112
      %v2037 = vpop.permute.xlu0 %2036
      %2038 = vrot.lane.b32.xlu0 %v1507, 112
      %v2039 = vpop.permute.xlu0 %2038
      %2040 = vrot.lane.b32.xlu0 %v1512, 112
      %v2041 = vpop.permute.xlu0 %2040
      %2042 = vrot.lane.b32.xlu0 %v1517, 112
      %v2043 = vpop.permute.xlu0 %2042
      %2044 = vrot.lane.b32.xlu0 %v1522, 112
      %v2045 = vpop.permute.xlu0 %2044
      %v2046 = vsel %vm1634, %v2015, 0
      %v2048 = vsel %vm1634, %v2017, 0
      %v2050 = vsel %vm1634, %v2019, 0
      %v2052 = vsel %vm1634, %v2021, 0
      %v2054 = vsel %vm1634, %v2023, 0
      %v2056 = vsel %vm1634, %v2025, 0
      %v2058 = vsel %vm1634, %v2027, 0
      %v2060 = vsel %vm1634, %v2029, 0
      %v2062 = vsel %vm1634, %v2031, 0
      %v2064 = vsel %vm1634, %v2033, 0
      %v2066 = vsel %vm1634, %v2035, 0
      %v2068 = vsel %vm1634, %v2037, 0
      %v2070 = vsel %vm1634, %v2039, 0
      %v2072 = vsel %vm1634, %v2041, 0
      %v2074 = vsel %vm1634, %v2043, 0
      %v2076 = vsel %vm1634, %v2045, 0
      %2078 = vmatprep.subr.mxu0 0.0
      %2079 = vmatpush1.xpose.msra.mxu0 0.0
      %2080 = vmatprep.subr.mxu0 0.0
      %2081 = vmatpush1.xpose.msra.mxu0 0.0
      %2082 = vmatprep.subr.mxu0 0.0
      %2083 = vmatpush1.xpose.msra.mxu0 0.0
      %2084 = vmatprep.subr.mxu0 0.0
      %2085 = vmatpush1.xpose.msra.mxu0 0.0
      %2086 = vmatprep.subr.mxu0 0.0
      %2087 = vmatpush1.xpose.msra.mxu0 0.0
      %2088 = vmatprep.subr.mxu0 0.0
      %2089 = vmatpush1.xpose.msra.mxu0 0.0
      %2090 = vmatprep.subr.mxu0 0.0
      %2091 = vmatpush1.xpose.msra.mxu0 0.0
      %2092 = vmatprep.subr.mxu0 0.0
      %2093 = vmatpush1.xpose.msra.mxu0 0.0
      %2094 = vmatprep.subr.mxu0 0.0
      %2095 = vmatpush1.xpose.msra.mxu0 %v2076
      %2096 = vmatprep.subr.mxu0 0.0
      %2097 = vmatpush1.xpose.msra.mxu0 %v2074
      %2098 = vmatprep.subr.mxu0 0.0
      %2099 = vmatpush1.xpose.msra.mxu0 %v2072
      %2100 = vmatprep.subr.mxu0 0.0
      %2101 = vmatpush1.xpose.msra.mxu0 %v2070
      %2102 = vmatprep.subr.mxu0 0.0
      %2103 = vmatpush1.xpose.msra.mxu0 %v2068
      %2104 = vmatprep.subr.mxu0 0.0
      %2105 = vmatpush1.xpose.msra.mxu0 %v2066
      %2106 = vmatprep.subr.mxu0 0.0
      %2107 = vmatpush1.xpose.msra.mxu0 %v2064
      %2108 = vmatprep.subr.mxu0 0.0
      %2109 = vmatpush1.xpose.msra.mxu0 %v2062
      %2110 = vmatprep.subr.mxu0 0.0
      %2111 = vmatpush2.xpose.msra.mxu0 0.0
      %2112 = vmatprep.subr.mxu0 0.0
      %2113 = vmatpush2.xpose.msra.mxu0 0.0
      %2114 = vmatprep.subr.mxu0 0.0
      %2115 = vmatpush2.xpose.msra.mxu0 0.0
      %2116 = vmatprep.subr.mxu0 0.0
      %2117 = vmatpush2.xpose.msra.mxu0 0.0
      %2118 = vmatprep.subr.mxu0 0.0
      %2119 = vmatpush2.xpose.msra.mxu0 0.0
      %2120 = vmatprep.subr.mxu0 0.0
      %2121 = vmatpush2.xpose.msra.mxu0 0.0
      %2122 = vmatprep.subr.mxu0 0.0
      %2123 = vmatpush2.xpose.msra.mxu0 0.0
      %2124 = vmatprep.subr.mxu0 0.0
      %2125 = vmatpush2.xpose.msra.mxu0 0.0
      %2126 = vmatprep.subr.mxu0 0.0
      %2127 = vmatpush2.xpose.msra.mxu0 0.0
      %2128 = vmatprep.subr.mxu0 0.0
      %2129 = vmatpush2.xpose.msra.mxu0 0.0
      %2130 = vmatprep.subr.mxu0 0.0
      %2131 = vmatpush2.xpose.msra.mxu0 0.0
      %2132 = vmatprep.subr.mxu0 0.0
      %2133 = vmatpush2.xpose.msra.mxu0 0.0
      %2134 = vmatprep.subr.mxu0 0.0
      %2135 = vmatpush2.xpose.msra.mxu0 0.0
      %2136 = vmatprep.subr.mxu0 0.0
      %2137 = vmatpush2.xpose.msra.mxu0 0.0
      %2138 = vmatprep.subr.mxu0 0.0
      %2139 = vmatpush2.xpose.msra.mxu0 0.0
      %2140 = vmatprep.subr.mxu0 0.0
      %2141 = vmatpush2.xpose.msra.mxu0 0.0
      %2142 = vmatprep.mubr.f32.mxu0 0.0
      %2143 = vmatmul.mubr.f32.gmra.mxu0 %v2046
      %v2144 = vpop.f32.mrf.mxu0
      %v2145 = vadd.f32 0.0, %v2144
      %v2146 = vpop.f32.mrf.mxu0
      %2147 = vmatprep.mubr.f32.mxu0 0.0
      %2148 = vmatmul.mubr.f32.gmra.mxu0 %v2048
      %v2149 = vpop.f32.mrf.mxu0
      %v2150 = vadd.f32 0.0, %v2149
      %v2151 = vpop.f32.mrf.mxu0
      %2152 = vmatprep.mubr.f32.mxu0 0.0
      %2153 = vmatmul.mubr.f32.gmra.mxu0 %v2050
      %v2154 = vpop.f32.mrf.mxu0
      %v2155 = vadd.f32 0.0, %v2154
      %v2156 = vpop.f32.mrf.mxu0
      %2157 = vmatprep.mubr.f32.mxu0 0.0
      %2158 = vmatmul.mubr.f32.gmra.mxu0 %v2052
      %v2159 = vpop.f32.mrf.mxu0
      %v2160 = vadd.f32 0.0, %v2159
      %v2161 = vpop.f32.mrf.mxu0
      %2162 = vmatprep.mubr.f32.mxu0 0.0
      %2163 = vmatmul.mubr.f32.gmra.mxu0 %v2054
      %v2164 = vpop.f32.mrf.mxu0
      %v2165 = vadd.f32 0.0, %v2164
      %v2166 = vpop.f32.mrf.mxu0
      %2167 = vmatprep.mubr.f32.mxu0 0.0
      %2168 = vmatmul.mubr.f32.gmra.mxu0 %v2056
      %v2169 = vpop.f32.mrf.mxu0
      %v2170 = vadd.f32 0.0, %v2169
      %v2171 = vpop.f32.mrf.mxu0
      %2172 = vmatprep.mubr.f32.mxu0 0.0
      %2173 = vmatmul.mubr.f32.gmra.mxu0 %v2058
      %v2174 = vpop.f32.mrf.mxu0
      %v2175 = vadd.f32 0.0, %v2174
      %v2176 = vpop.f32.mrf.mxu0
      %2177 = vmatprep.mubr.f32.mxu0 0.0
      %2178 = vmatmul.mubr.f32.gmra.mxu0 %v2060
      %v2179 = vpop.f32.mrf.mxu0
      %v2180 = vadd.f32 0.0, %v2179
      %v2181 = vpop.f32.mrf.mxu0
      %2182 = vdwg.mxu0
      %v2183 = vmul.f32 %v2145, 0.25
      %v2184 = vmul.f32 %v2150, 0.25
      %v2185 = vmul.f32 %v2155, 0.25
      %v2186 = vmul.f32 %v2160, 0.25
      %v2187 = vmul.f32 %v2165, 0.25
      %v2188 = vmul.f32 %v2170, 0.25
      %v2189 = vmul.f32 %v2175, 0.25
      %v2190 = vmul.f32 %v2180, 0.25
      %v2191 = vsel %vm1796, %v2183, -inf
      %2192 = vmax.xlane.f32.xlu0 %v2191
      %v2193 = vpop.xlane.xlu0 %2192
      %v2194 = vsel %vm1796, %v2184, -inf
      %2195 = vmax.xlane.f32.xlu0 %v2194
      %v2196 = vpop.xlane.xlu0 %2195
      %v2197 = vsel %vm1796, %v2185, -inf
      %2198 = vmax.xlane.f32.xlu0 %v2197
      %v2199 = vpop.xlane.xlu0 %2198
      %v2200 = vsel %vm1796, %v2186, -inf
      %2201 = vmax.xlane.f32.xlu0 %v2200
      %v2202 = vpop.xlane.xlu0 %2201
      %v2203 = vsel %vm1796, %v2187, -inf
      %2204 = vmax.xlane.f32.xlu0 %v2203
      %v2205 = vpop.xlane.xlu0 %2204
      %v2206 = vsel %vm1796, %v2188, -inf
      %2207 = vmax.xlane.f32.xlu0 %v2206
      %v2208 = vpop.xlane.xlu0 %2207
      %v2209 = vsel %vm1796, %v2189, -inf
      %2210 = vmax.xlane.f32.xlu0 %v2209
      %v2211 = vpop.xlane.xlu0 %2210
      %v2212 = vsel %vm1796, %v2190, -inf
      %2213 = vmax.xlane.f32.xlu0 %v2212
      %v2214 = vpop.xlane.xlu0 %2213
      %v2215 = vsub.f32 %v2183, %v2193
      %v2216 = vsub.f32 %v2184, %v2196
      %v2217 = vsub.f32 %v2185, %v2199
      %v2218 = vsub.f32 %v2186, %v2202
      %v2219 = vsub.f32 %v2187, %v2205
      %v2220 = vsub.f32 %v2188, %v2208
      %v2221 = vsub.f32 %v2189, %v2211
      %v2222 = vsub.f32 %v2190, %v2214
      %v2223 = vmul.f32 %v2215, 1.442695
      %v2224 = vpow.pop %v2223
      %v2225 = vmul.f32 %v2216, 1.442695
      %v2226 = vpow.pop %v2225
      %v2227 = vmul.f32 %v2217, 1.442695
      %v2228 = vpow.pop %v2227
      %v2229 = vmul.f32 %v2218, 1.442695
      %v2230 = vpow.pop %v2229
      %v2231 = vmul.f32 %v2219, 1.442695
      %v2232 = vpow.pop %v2231
      %v2233 = vmul.f32 %v2220, 1.442695
      %v2234 = vpow.pop %v2233
      %v2235 = vmul.f32 %v2221, 1.442695
      %v2236 = vpow.pop %v2235
      %v2237 = vmul.f32 %v2222, 1.442695
      %v2238 = vpow.pop %v2237
      %v2239 = vsel %vm1796, %v2224, 0.0
      %2240 = vadd.xlane.f32.xlu0 %v2239
      %v2241 = vpop.xlane.xlu0 %2240
      %v2242 = vsel %vm1796, %v2226, 0.0
      %2243 = vadd.xlane.f32.xlu0 %v2242
      %v2244 = vpop.xlane.xlu0 %2243
      %v2245 = vsel %vm1796, %v2228, 0.0
      %2246 = vadd.xlane.f32.xlu0 %v2245
      %v2247 = vpop.xlane.xlu0 %2246
      %v2248 = vsel %vm1796, %v2230, 0.0
      %2249 = vadd.xlane.f32.xlu0 %v2248
      %v2250 = vpop.xlane.xlu0 %2249
      %v2251 = vsel %vm1796, %v2232, 0.0
      %2252 = vadd.xlane.f32.xlu0 %v2251
      %v2253 = vpop.xlane.xlu0 %2252
      %v2254 = vsel %vm1796, %v2234, 0.0
      %2255 = vadd.xlane.f32.xlu0 %v2254
      %v2256 = vpop.xlane.xlu0 %2255
      %v2257 = vsel %vm1796, %v2236, 0.0
      %2258 = vadd.xlane.f32.xlu0 %v2257
      %v2259 = vpop.xlane.xlu0 %2258
      %v2260 = vsel %vm1796, %v2238, 0.0
      %2261 = vadd.xlane.f32.xlu0 %v2260
      %v2262 = vpop.xlane.xlu0 %2261
      %v2263 = vrcp.pop %v2241
      %v2264 = vrcp.pop %v2244
      %v2265 = vrcp.pop %v2247
      %v2266 = vrcp.pop %v2250
      %v2267 = vrcp.pop %v2253
      %v2268 = vrcp.pop %v2256
      %v2269 = vrcp.pop %v2259
      %v2270 = vrcp.pop %v2262
      %v2271 = vmul.f32 %v2224, %v2263
      %v2272 = vmul.f32 %v2226, %v2264
      %v2273 = vmul.f32 %v2228, %v2265
      %v2274 = vmul.f32 %v2230, %v2266
      %v2275 = vmul.f32 %v2232, %v2267
      %v2276 = vmul.f32 %v2234, %v2268
      %v2277 = vmul.f32 %v2236, %v2269
      %v2278 = vmul.f32 %v2238, %v2270
      %2287 = vrot.lane.b32.xlu0 %v1596, 112
      %v2288 = vpop.permute.xlu0 %2287
      %2289 = vrot.lane.b32.xlu0 %v1601, 112
      %v2290 = vpop.permute.xlu0 %2289
      %2291 = vrot.lane.b32.xlu0 %v1606, 112
      %v2292 = vpop.permute.xlu0 %2291
      %2293 = vrot.lane.b32.xlu0 %v1611, 112
      %v2294 = vpop.permute.xlu0 %2293
      %2295 = vrot.lane.b32.xlu0 %v1616, 112
      %v2296 = vpop.permute.xlu0 %2295
      %2297 = vrot.lane.b32.xlu0 %v1621, 112
      %v2298 = vpop.permute.xlu0 %2297
      %2299 = vrot.lane.b32.xlu0 %v1626, 112
      %v2300 = vpop.permute.xlu0 %2299
      %2301 = vrot.lane.b32.xlu0 %v1631, 112
      %v2302 = vpop.permute.xlu0 %2301
      %v2312 = vsel %vm1796, %v2271, 0
      %v2315 = vsel %vm1796, %v2272, 0
      %v2318 = vsel %vm1796, %v2273, 0
      %v2321 = vsel %vm1796, %v2274, 0
      %v2324 = vsel %vm1796, %v2275, 0
      %v2327 = vsel %vm1796, %v2276, 0
      %v2330 = vsel %vm1796, %v2277, 0
      %v2333 = vsel %vm1796, %v2278, 0
      %2335 = vmatprep.subr.mxu0 0.0
      %2336 = vmatpush1.msra.mxu0 0.0
      %2337 = vmatprep.subr.mxu0 0.0
      %2338 = vmatpush1.msra.mxu0 0.0
      %2339 = vmatprep.subr.mxu0 0.0
      %2340 = vmatpush1.msra.mxu0 0.0
      %2341 = vmatprep.subr.mxu0 0.0
      %2342 = vmatpush1.msra.mxu0 0.0
      %2343 = vmatprep.subr.mxu0 0.0
      %2344 = vmatpush1.msra.mxu0 0.0
      %2345 = vmatprep.subr.mxu0 0.0
      %2346 = vmatpush1.msra.mxu0 0.0
      %2347 = vmatprep.subr.mxu0 0.0
      %2348 = vmatpush1.msra.mxu0 0.0
      %2349 = vmatprep.subr.mxu0 0.0
      %2350 = vmatpush1.msra.mxu0 0.0
      %2351 = vmatprep.subr.mxu0 0.0
      %2352 = vmatpush1.msra.mxu0 %v2302
      %2353 = vmatprep.subr.mxu0 0.0
      %2354 = vmatpush1.msra.mxu0 %v2300
      %2355 = vmatprep.subr.mxu0 0.0
      %2356 = vmatpush1.msra.mxu0 %v2298
      %2357 = vmatprep.subr.mxu0 0.0
      %2358 = vmatpush1.msra.mxu0 %v2296
      %2359 = vmatprep.subr.mxu0 0.0
      %2360 = vmatpush1.msra.mxu0 %v2294
      %2361 = vmatprep.subr.mxu0 0.0
      %2362 = vmatpush1.msra.mxu0 %v2292
      %2363 = vmatprep.subr.mxu0 0.0
      %2364 = vmatpush1.msra.mxu0 %v2290
      %2365 = vmatprep.subr.mxu0 0.0
      %2366 = vmatpush1.msra.mxu0 %v2288
      %2367 = vmatprep.subr.mxu0 0.0
      %2368 = vmatpush2.msra.mxu0 0.0
      %2369 = vmatprep.subr.mxu0 0.0
      %2370 = vmatpush2.msra.mxu0 0.0
      %2371 = vmatprep.subr.mxu0 0.0
      %2372 = vmatpush2.msra.mxu0 0.0
      %2373 = vmatprep.subr.mxu0 0.0
      %2374 = vmatpush2.msra.mxu0 0.0
      %2375 = vmatprep.subr.mxu0 0.0
      %2376 = vmatpush2.msra.mxu0 0.0
      %2377 = vmatprep.subr.mxu0 0.0
      %2378 = vmatpush2.msra.mxu0 0.0
      %2379 = vmatprep.subr.mxu0 0.0
      %2380 = vmatpush2.msra.mxu0 0.0
      %2381 = vmatprep.subr.mxu0 0.0
      %2382 = vmatpush2.msra.mxu0 0.0
      %2383 = vmatprep.subr.mxu0 0.0
      %2384 = vmatpush2.msra.mxu0 0.0
      %2385 = vmatprep.subr.mxu0 0.0
      %2386 = vmatpush2.msra.mxu0 0.0
      %2387 = vmatprep.subr.mxu0 0.0
      %2388 = vmatpush2.msra.mxu0 0.0
      %2389 = vmatprep.subr.mxu0 0.0
      %2390 = vmatpush2.msra.mxu0 0.0
      %2391 = vmatprep.subr.mxu0 0.0
      %2392 = vmatpush2.msra.mxu0 0.0
      %2393 = vmatprep.subr.mxu0 0.0
      %2394 = vmatpush2.msra.mxu0 0.0
      %2395 = vmatprep.subr.mxu0 0.0
      %2396 = vmatpush2.msra.mxu0 0.0
      %2397 = vmatprep.subr.mxu0 0.0
      %2398 = vmatpush2.msra.mxu0 0.0
      %2399 = vmatprep.mubr.f32.mxu0 0.0
      %2400 = vmatmul.mubr.f32.gmra.mxu0 %v2312
      %v2401 = vpop.f32.mrf.mxu0
      %v2402 = vadd.f32 0.0, %v2401
      %v2403 = vpop.f32.mrf.mxu0
      %2404 = vmatprep.mubr.f32.mxu0 0.0
      %2405 = vmatmul.mubr.f32.gmra.mxu0 %v2315
      %v2406 = vpop.f32.mrf.mxu0
      %v2407 = vadd.f32 0.0, %v2406
      %v2408 = vpop.f32.mrf.mxu0
      %2409 = vmatprep.mubr.f32.mxu0 0.0
      %2410 = vmatmul.mubr.f32.gmra.mxu0 %v2318
      %v2411 = vpop.f32.mrf.mxu0
      %v2412 = vadd.f32 0.0, %v2411
      %v2413 = vpop.f32.mrf.mxu0
      %2414 = vmatprep.mubr.f32.mxu0 0.0
      %2415 = vmatmul.mubr.f32.gmra.mxu0 %v2321
      %v2416 = vpop.f32.mrf.mxu0
      %v2417 = vadd.f32 0.0, %v2416
      %v2418 = vpop.f32.mrf.mxu0
      %2419 = vmatprep.mubr.f32.mxu0 0.0
      %2420 = vmatmul.mubr.f32.gmra.mxu0 %v2324
      %v2421 = vpop.f32.mrf.mxu0
      %v2422 = vadd.f32 0.0, %v2421
      %v2423 = vpop.f32.mrf.mxu0
      %2424 = vmatprep.mubr.f32.mxu0 0.0
      %2425 = vmatmul.mubr.f32.gmra.mxu0 %v2327
      %v2426 = vpop.f32.mrf.mxu0
      %v2427 = vadd.f32 0.0, %v2426
      %v2428 = vpop.f32.mrf.mxu0
      %2429 = vmatprep.mubr.f32.mxu0 0.0
      %2430 = vmatmul.mubr.f32.gmra.mxu0 %v2330
      %v2431 = vpop.f32.mrf.mxu0
      %v2432 = vadd.f32 0.0, %v2431
      %v2433 = vpop.f32.mrf.mxu0
      %2434 = vmatprep.mubr.f32.mxu0 0.0
      %2435 = vmatmul.mubr.f32.gmra.mxu0 %v2333
      %v2436 = vpop.f32.mrf.mxu0
      %v2437 = vadd.f32 0.0, %v2436
      %v2438 = vpop.f32.mrf.mxu0
      %2439 = vdwg.mxu0
      %2448 = vrot.lane.b32.xlu0 %v2402, 16
      %v2449 = vpop.permute.xlu0 %2448
      %2450 = vrot.lane.b32.xlu0 %v2407, 16
      %v2451 = vpop.permute.xlu0 %2450
      %2452 = vrot.lane.b32.xlu0 %v2412, 16
      %v2453 = vpop.permute.xlu0 %2452
      %2454 = vrot.lane.b32.xlu0 %v2417, 16
      %v2455 = vpop.permute.xlu0 %2454
      %2456 = vrot.lane.b32.xlu0 %v2422, 16
      %v2457 = vpop.permute.xlu0 %2456
      %2458 = vrot.lane.b32.xlu0 %v2427, 16
      %v2459 = vpop.permute.xlu0 %2458
      %2460 = vrot.lane.b32.xlu0 %v2432, 16
      %v2461 = vpop.permute.xlu0 %2460
      %2462 = vrot.lane.b32.xlu0 %v2437, 16
      %v2463 = vpop.permute.xlu0 %2462
      %v2472 = vsel %vm1634, %v1976, %v2449
      %v2473 = vsel %vm1634, %v1981, %v2451
      %v2474 = vsel %vm1634, %v1986, %v2453
      %v2475 = vsel %vm1634, %v1991, %v2455
      %v2476 = vsel %vm1634, %v1996, %v2457
      %v2477 = vsel %vm1634, %v2001, %v2459
      %v2478 = vsel %vm1634, %v2006, %v2461
      %v2479 = vsel %vm1634, %v2011, %v2463
      %v2480 = vld [vmem:[%s11] sm:$0xff]
      %v2481 = vld [vmem:[%s11 + $0x8] sm:$0xff]
      %v2482 = vld [vmem:[%s11 + $0x10] sm:$0xff]
      %v2483 = vld [vmem:[%s11 + $0x18] sm:$0xff]
      %v2484 = vld [vmem:[%s12] sm:$0x1]
      %v2486 = vlaneseq
      %v2487 = vshrl.u32 %v2486, 7
      %v2488 = vsub.s32 0, %v2487
      %v2489 = vrot.slane %v2484, %v2488
      %v2492 = vsel %vm874, %v2472, 0
      %v2495 = vsel %vm874, %v2473, 0
      %v2498 = vsel %vm874, %v2474, 0
      %v2501 = vsel %vm874, %v2475, 0
      %v2504 = vsel %vm874, %v2476, 0
      %v2507 = vsel %vm874, %v2477, 0
      %v2510 = vsel %vm874, %v2478, 0
      %v2513 = vsel %vm874, %v2479, 0
      %2515 = vmatprep.subr.mxu0 0.0
      %2516 = vmatpush1.msra.mxu0 0.0
      %2517 = vmatprep.subr.mxu0 0.0
      %2518 = vmatpush1.msra.mxu0 0.0
      %2519 = vmatprep.subr.mxu0 0.0
      %2520 = vmatpush1.msra.mxu0 0.0
      %2521 = vmatprep.subr.mxu0 0.0
      %2522 = vmatpush1.msra.mxu0 0.0
      %2523 = vmatprep.subr.mxu0 0.0
      %2524 = vmatpush1.msra.mxu0 0.0
      %2525 = vmatprep.subr.mxu0 0.0
      %2526 = vmatpush1.msra.mxu0 0.0
      %2527 = vmatprep.subr.mxu0 0.0
      %2528 = vmatpush1.msra.mxu0 0.0
      %2529 = vmatprep.subr.mxu0 0.0
      %2530 = vmatpush1.msra.mxu0 0.0
      %2531 = vmatprep.subr.mxu0 0.0
      %2532 = vmatpush1.msra.mxu0 0.0
      %2533 = vmatprep.subr.mxu0 0.0
      %2534 = vmatpush1.msra.mxu0 0.0
      %2535 = vmatprep.subr.mxu0 0.0
      %2536 = vmatpush1.msra.mxu0 0.0
      %2537 = vmatprep.subr.mxu0 0.0
      %2538 = vmatpush1.msra.mxu0 0.0
      %2539 = vmatprep.subr.mxu0 0.0
      %2540 = vmatpush1.msra.mxu0 %v2483
      %2541 = vmatprep.subr.mxu0 0.0
      %2542 = vmatpush1.msra.mxu0 %v2482
      %2543 = vmatprep.subr.mxu0 0.0
      %2544 = vmatpush1.msra.mxu0 %v2481
      %2545 = vmatprep.subr.mxu0 0.0
      %2546 = vmatpush1.msra.mxu0 %v2480
      %2547 = vmatprep.subr.mxu0 0.0
      %2548 = vmatpush2.msra.mxu0 0.0
      %2549 = vmatprep.subr.mxu0 0.0
      %2550 = vmatpush2.msra.mxu0 0.0
      %2551 = vmatprep.subr.mxu0 0.0
      %2552 = vmatpush2.msra.mxu0 0.0
      %2553 = vmatprep.subr.mxu0 0.0
      %2554 = vmatpush2.msra.mxu0 0.0
      %2555 = vmatprep.subr.mxu0 0.0
      %2556 = vmatpush2.msra.mxu0 0.0
      %2557 = vmatprep.subr.mxu0 0.0
      %2558 = vmatpush2.msra.mxu0 0.0
      %2559 = vmatprep.subr.mxu0 0.0
      %2560 = vmatpush2.msra.mxu0 0.0
      %2561 = vmatprep.subr.mxu0 0.0
      %2562 = vmatpush2.msra.mxu0 0.0
      %2563 = vmatprep.subr.mxu0 0.0
      %2564 = vmatpush2.msra.mxu0 0.0
      %2565 = vmatprep.subr.mxu0 0.0
      %2566 = vmatpush2.msra.mxu0 0.0
      %2567 = vmatprep.subr.mxu0 0.0
      %2568 = vmatpush2.msra.mxu0 0.0
      %2569 = vmatprep.subr.mxu0 0.0
      %2570 = vmatpush2.msra.mxu0 0.0
      %2571 = vmatprep.subr.mxu0 0.0
      %2572 = vmatpush2.msra.mxu0 0.0
      %2573 = vmatprep.subr.mxu0 0.0
      %2574 = vmatpush2.msra.mxu0 0.0
      %2575 = vmatprep.subr.mxu0 0.0
      %2576 = vmatpush2.msra.mxu0 0.0
      %2577 = vmatprep.subr.mxu0 0.0
      %2578 = vmatpush2.msra.mxu0 0.0
      %2579 = vmatprep.mubr.f32.mxu0 0.0
      %2580 = vmatmul.mubr.f32.gmra.mxu0 %v2492
      %v2581 = vpop.f32.mrf.mxu0
      %v2582 = vadd.f32 %v2489, %v2581
      %v2583 = vpop.f32.mrf.mxu0
      %2584 = vmatprep.mubr.f32.mxu0 0.0
      %2585 = vmatmul.mubr.f32.gmra.mxu0 %v2495
      %v2586 = vpop.f32.mrf.mxu0
      %v2587 = vadd.f32 %v2489, %v2586
      %v2588 = vpop.f32.mrf.mxu0
      %2589 = vmatprep.mubr.f32.mxu0 0.0
      %2590 = vmatmul.mubr.f32.gmra.mxu0 %v2498
      %v2591 = vpop.f32.mrf.mxu0
      %v2592 = vadd.f32 %v2489, %v2591
      %v2593 = vpop.f32.mrf.mxu0
      %2594 = vmatprep.mubr.f32.mxu0 0.0
      %2595 = vmatmul.mubr.f32.gmra.mxu0 %v2501
      %v2596 = vpop.f32.mrf.mxu0
      %v2597 = vadd.f32 %v2489, %v2596
      %v2598 = vpop.f32.mrf.mxu0
      %2599 = vmatprep.mubr.f32.mxu0 0.0
      %2600 = vmatmul.mubr.f32.gmra.mxu0 %v2504
      %v2601 = vpop.f32.mrf.mxu0
      %v2602 = vadd.f32 %v2489, %v2601
      %v2603 = vpop.f32.mrf.mxu0
      %2604 = vmatprep.mubr.f32.mxu0 0.0
      %2605 = vmatmul.mubr.f32.gmra.mxu0 %v2507
      %v2606 = vpop.f32.mrf.mxu0
      %v2607 = vadd.f32 %v2489, %v2606
      %v2608 = vpop.f32.mrf.mxu0
      %2609 = vmatprep.mubr.f32.mxu0 0.0
      %2610 = vmatmul.mubr.f32.gmra.mxu0 %v2510
      %v2611 = vpop.f32.mrf.mxu0
      %v2612 = vadd.f32 %v2489, %v2611
      %v2613 = vpop.f32.mrf.mxu0
      %2614 = vmatprep.mubr.f32.mxu0 0.0
      %2615 = vmatmul.mubr.f32.gmra.mxu0 %v2513
      %v2616 = vpop.f32.mrf.mxu0
      %v2617 = vadd.f32 %v2489, %v2616
      %v2618 = vpop.f32.mrf.mxu0
      %2619 = vdwg.mxu0
      %v2620 = vadd.f32 %v2582, %v1078
      %v2621 = vadd.f32 %v2587, %v1083
      %v2622 = vadd.f32 %v2592, %v1088
      %v2623 = vadd.f32 %v2597, %v1093
      %v2624 = vadd.f32 %v2602, %v1098
      %v2625 = vadd.f32 %v2607, %v1103
      %v2626 = vadd.f32 %v2612, %v1108
      %v2627 = vadd.f32 %v2617, %v1113
      %v2628 = vld [vmem:[%s13] sm:$0x1]
      %v2629 = vld [vmem:[%s14] sm:$0x1]
      %v2630 = vsel %vm874, %v2620, 0.0
      %2631 = vadd.xlane.f32.xlu0 %v2630
      %v2632 = vpop.xlane.xlu0 %2631
      %v2633 = vsel %vm874, %v2621, 0.0
      %2634 = vadd.xlane.f32.xlu0 %v2633
      %v2635 = vpop.xlane.xlu0 %2634
      %v2636 = vsel %vm874, %v2622, 0.0
      %2637 = vadd.xlane.f32.xlu0 %v2636
      %v2638 = vpop.xlane.xlu0 %2637
      %v2639 = vsel %vm874, %v2623, 0.0
      %2640 = vadd.xlane.f32.xlu0 %v2639
      %v2641 = vpop.xlane.xlu0 %2640
      %v2642 = vsel %vm874, %v2624, 0.0
      %2643 = vadd.xlane.f32.xlu0 %v2642
      %v2644 = vpop.xlane.xlu0 %2643
      %v2645 = vsel %vm874, %v2625, 0.0
      %2646 = vadd.xlane.f32.xlu0 %v2645
      %v2647 = vpop.xlane.xlu0 %2646
      %v2648 = vsel %vm874, %v2626, 0.0
      %2649 = vadd.xlane.f32.xlu0 %v2648
      %v2650 = vpop.xlane.xlu0 %2649
      %v2651 = vsel %vm874, %v2627, 0.0
      %2652 = vadd.xlane.f32.xlu0 %v2651
      %v2653 = vpop.xlane.xlu0 %2652
      %v2654 = vmul.f32 %v2632, %v1174
      %v2655 = vmul.f32 %v2635, %v1174
      %v2656 = vmul.f32 %v2638, %v1174
      %v2657 = vmul.f32 %v2641, %v1174
      %v2658 = vmul.f32 %v2644, %v1174
      %v2659 = vmul.f32 %v2647, %v1174
      %v2660 = vmul.f32 %v2650, %v1174
      %v2661 = vmul.f32 %v2653, %v1174
      %v2662 = vsub.f32 %v2620, %v2654
      %v2663 = vsub.f32 %v2621, %v2655
      %v2664 = vsub.f32 %v2622, %v2656
      %v2665 = vsub.f32 %v2623, %v2657
      %v2666 = vsub.f32 %v2624, %v2658
      %v2667 = vsub.f32 %v2625, %v2659
      %v2668 = vsub.f32 %v2626, %v2660
      %v2669 = vsub.f32 %v2627, %v2661
      %v2670 = vmul.f32 %v2662, %v2662
      %v2671 = vmul.f32 %v2663, %v2663
      %v2672 = vmul.f32 %v2664, %v2664
      %v2673 = vmul.f32 %v2665, %v2665
      %v2674 = vmul.f32 %v2666, %v2666
      %v2675 = vmul.f32 %v2667, %v2667
      %v2676 = vmul.f32 %v2668, %v2668
      %v2677 = vmul.f32 %v2669, %v2669
      %v2678 = vsel %vm874, %v2670, 0.0
      %2679 = vadd.xlane.f32.xlu0 %v2678
      %v2680 = vpop.xlane.xlu0 %2679
      %v2681 = vsel %vm874, %v2671, 0.0
      %2682 = vadd.xlane.f32.xlu0 %v2681
      %v2683 = vpop.xlane.xlu0 %2682
      %v2684 = vsel %vm874, %v2672, 0.0
      %2685 = vadd.xlane.f32.xlu0 %v2684
      %v2686 = vpop.xlane.xlu0 %2685
      %v2687 = vsel %vm874, %v2673, 0.0
      %2688 = vadd.xlane.f32.xlu0 %v2687
      %v2689 = vpop.xlane.xlu0 %2688
      %v2690 = vsel %vm874, %v2674, 0.0
      %2691 = vadd.xlane.f32.xlu0 %v2690
      %v2692 = vpop.xlane.xlu0 %2691
      %v2693 = vsel %vm874, %v2675, 0.0
      %2694 = vadd.xlane.f32.xlu0 %v2693
      %v2695 = vpop.xlane.xlu0 %2694
      %v2696 = vsel %vm874, %v2676, 0.0
      %2697 = vadd.xlane.f32.xlu0 %v2696
      %v2698 = vpop.xlane.xlu0 %2697
      %v2699 = vsel %vm874, %v2677, 0.0
      %2700 = vadd.xlane.f32.xlu0 %v2699
      %v2701 = vpop.xlane.xlu0 %2700
      %v2702 = vmul.f32 %v2680, %v1174
      %v2703 = vmul.f32 %v2683, %v1174
      %v2704 = vmul.f32 %v2686, %v1174
      %v2705 = vmul.f32 %v2689, %v1174
      %v2706 = vmul.f32 %v2692, %v1174
      %v2707 = vmul.f32 %v2695, %v1174
      %v2708 = vmul.f32 %v2698, %v1174
      %v2709 = vmul.f32 %v2701, %v1174
      %v2710 = vadd.f32 %v2702, 1e-05
      %v2711 = vadd.f32 %v2703, 1e-05
      %v2712 = vadd.f32 %v2704, 1e-05
      %v2713 = vadd.f32 %v2705, 1e-05
      %v2714 = vadd.f32 %v2706, 1e-05
      %v2715 = vadd.f32 %v2707, 1e-05
      %v2716 = vadd.f32 %v2708, 1e-05
      %v2717 = vadd.f32 %v2709, 1e-05
      %v2718 = vrsqrt.pop %v2710
      %v2719 = vrsqrt.pop %v2711
      %v2720 = vrsqrt.pop %v2712
      %v2721 = vrsqrt.pop %v2713
      %v2722 = vrsqrt.pop %v2714
      %v2723 = vrsqrt.pop %v2715
      %v2724 = vrsqrt.pop %v2716
      %v2725 = vrsqrt.pop %v2717
      %v2726 = vmul.f32 %v2662, %v2718
      %v2727 = vmul.f32 %v2663, %v2719
      %v2728 = vmul.f32 %v2664, %v2720
      %v2729 = vmul.f32 %v2665, %v2721
      %v2730 = vmul.f32 %v2666, %v2722
      %v2731 = vmul.f32 %v2667, %v2723
      %v2732 = vmul.f32 %v2668, %v2724
      %v2733 = vmul.f32 %v2669, %v2725
      %v2735 = vlaneseq
      %v2736 = vshrl.u32 %v2735, 7
      %v2737 = vsub.s32 0, %v2736
      %v2738 = vrot.slane %v2628, %v2737
      %v2740 = vmul.f32 %v2726, %v2738
      %v2741 = vmul.f32 %v2727, %v2738
      %v2742 = vmul.f32 %v2728, %v2738
      %v2743 = vmul.f32 %v2729, %v2738
      %v2744 = vmul.f32 %v2730, %v2738
      %v2745 = vmul.f32 %v2731, %v2738
      %v2746 = vmul.f32 %v2732, %v2738
      %v2747 = vmul.f32 %v2733, %v2738
      %v2749 = vlaneseq
      %v2750 = vshrl.u32 %v2749, 7
      %v2751 = vsub.s32 0, %v2750
      %v2752 = vrot.slane %v2629, %v2751
      %v2754 = vadd.f32 %v2740, %v2752
      %v2755 = vadd.f32 %v2741, %v2752
      %v2756 = vadd.f32 %v2742, %v2752
      %v2757 = vadd.f32 %v2743, %v2752
      %v2758 = vadd.f32 %v2744, %v2752
      %v2759 = vadd.f32 %v2745, %v2752
      %v2760 = vadd.f32 %v2746, %v2752
      %v2761 = vadd.f32 %v2747, %v2752
      %v2762 = vld [vmem:[%s15] sm:$0xff]
      %v2763 = vld [vmem:[%s15 + $0x8] sm:$0xff]
      %v2764 = vld [vmem:[%s15 + $0x10] sm:$0xff]
      %v2765 = vld [vmem:[%s15 + $0x18] sm:$0xff]
      %v2767 = vsel %vm874, %v2754, 0
      %v2770 = vsel %vm874, %v2755, 0
      %v2773 = vsel %vm874, %v2756, 0
      %v2776 = vsel %vm874, %v2757, 0
      %v2779 = vsel %vm874, %v2758, 0
      %v2782 = vsel %vm874, %v2759, 0
      %v2785 = vsel %vm874, %v2760, 0
      %v2788 = vsel %vm874, %v2761, 0
      %2790 = vmatprep.subr.mxu0 0.0
      %2791 = vmatpush1.msra.mxu0 0.0
      %2792 = vmatprep.subr.mxu0 0.0
      %2793 = vmatpush1.msra.mxu0 0.0
      %2794 = vmatprep.subr.mxu0 0.0
      %2795 = vmatpush1.msra.mxu0 0.0
      %2796 = vmatprep.subr.mxu0 0.0
      %2797 = vmatpush1.msra.mxu0 0.0
      %2798 = vmatprep.subr.mxu0 0.0
      %2799 = vmatpush1.msra.mxu0 0.0
      %2800 = vmatprep.subr.mxu0 0.0
      %2801 = vmatpush1.msra.mxu0 0.0
      %2802 = vmatprep.subr.mxu0 0.0
      %2803 = vmatpush1.msra.mxu0 0.0
      %2804 = vmatprep.subr.mxu0 0.0
      %2805 = vmatpush1.msra.mxu0 0.0
      %2806 = vmatprep.subr.mxu0 0.0
      %2807 = vmatpush1.msra.mxu0 0.0
      %2808 = vmatprep.subr.mxu0 0.0
      %2809 = vmatpush1.msra.mxu0 0.0
      %2810 = vmatprep.subr.mxu0 0.0
      %2811 = vmatpush1.msra.mxu0 0.0
      %2812 = vmatprep.subr.mxu0 0.0
      %2813 = vmatpush1.msra.mxu0 0.0
      %2814 = vmatprep.subr.mxu0 0.0
      %2815 = vmatpush1.msra.mxu0 %v2765
      %2816 = vmatprep.subr.mxu0 0.0
      %2817 = vmatpush1.msra.mxu0 %v2764
      %2818 = vmatprep.subr.mxu0 0.0
      %2819 = vmatpush1.msra.mxu0 %v2763
      %2820 = vmatprep.subr.mxu0 0.0
      %2821 = vmatpush1.msra.mxu0 %v2762
      %2822 = vmatprep.subr.mxu0 0.0
      %2823 = vmatpush2.msra.mxu0 0.0
      %2824 = vmatprep.subr.mxu0 0.0
      %2825 = vmatpush2.msra.mxu0 0.0
      %2826 = vmatprep.subr.mxu0 0.0
      %2827 = vmatpush2.msra.mxu0 0.0
      %2828 = vmatprep.subr.mxu0 0.0
      %2829 = vmatpush2.msra.mxu0 0.0
      %2830 = vmatprep.subr.mxu0 0.0
      %2831 = vmatpush2.msra.mxu0 0.0
      %2832 = vmatprep.subr.mxu0 0.0
      %2833 = vmatpush2.msra.mxu0 0.0
      %2834 = vmatprep.subr.mxu0 0.0
      %2835 = vmatpush2.msra.mxu0 0.0
      %2836 = vmatprep.subr.mxu0 0.0
      %2837 = vmatpush2.msra.mxu0 0.0
      %2838 = vmatprep.subr.mxu0 0.0
      %2839 = vmatpush2.msra.mxu0 0.0
      %2840 = vmatprep.subr.mxu0 0.0
      %2841 = vmatpush2.msra.mxu0 0.0
      %2842 = vmatprep.subr.mxu0 0.0
      %2843 = vmatpush2.msra.mxu0 0.0
      %2844 = vmatprep.subr.mxu0 0.0
      %2845 = vmatpush2.msra.mxu0 0.0
      %2846 = vmatprep.subr.mxu0 0.0
      %2847 = vmatpush2.msra.mxu0 0.0
      %2848 = vmatprep.subr.mxu0 0.0
      %2849 = vmatpush2.msra.mxu0 0.0
      %2850 = vmatprep.subr.mxu0 0.0
      %2851 = vmatpush2.msra.mxu0 0.0
      %2852 = vmatprep.subr.mxu0 0.0
      %2853 = vmatpush2.msra.mxu0 0.0
      %2854 = vmatprep.mubr.f32.mxu0 0.0
      %2855 = vmatmul.mubr.f32.gmra.mxu0 %v2767
      %v2856 = vpop.f32.mrf.mxu0
      %v2857 = vadd.f32 0.0, %v2856
      %v2858 = vpop.f32.mrf.mxu0
      %2859 = vmatprep.mubr.f32.mxu0 0.0
      %2860 = vmatmul.mubr.f32.gmra.mxu0 %v2770
      %v2861 = vpop.f32.mrf.mxu0
      %v2862 = vadd.f32 0.0, %v2861
      %v2863 = vpop.f32.mrf.mxu0
      %2864 = vmatprep.mubr.f32.mxu0 0.0
      %2865 = vmatmul.mubr.f32.gmra.mxu0 %v2773
      %v2866 = vpop.f32.mrf.mxu0
      %v2867 = vadd.f32 0.0, %v2866
      %v2868 = vpop.f32.mrf.mxu0
      %2869 = vmatprep.mubr.f32.mxu0 0.0
      %2870 = vmatmul.mubr.f32.gmra.mxu0 %v2776
      %v2871 = vpop.f32.mrf.mxu0
      %v2872 = vadd.f32 0.0, %v2871
      %v2873 = vpop.f32.mrf.mxu0
      %2874 = vmatprep.mubr.f32.mxu0 0.0
      %2875 = vmatmul.mubr.f32.gmra.mxu0 %v2779
      %v2876 = vpop.f32.mrf.mxu0
      %v2877 = vadd.f32 0.0, %v2876
      %v2878 = vpop.f32.mrf.mxu0
      %2879 = vmatprep.mubr.f32.mxu0 0.0
      %2880 = vmatmul.mubr.f32.gmra.mxu0 %v2782
      %v2881 = vpop.f32.mrf.mxu0
      %v2882 = vadd.f32 0.0, %v2881
      %v2883 = vpop.f32.mrf.mxu0
      %2884 = vmatprep.mubr.f32.mxu0 0.0
      %2885 = vmatmul.mubr.f32.gmra.mxu0 %v2785
      %v2886 = vpop.f32.mrf.mxu0
      %v2887 = vadd.f32 0.0, %v2886
      %v2888 = vpop.f32.mrf.mxu0
      %2889 = vmatprep.mubr.f32.mxu0 0.0
      %2890 = vmatmul.mubr.f32.gmra.mxu0 %v2788
      %v2891 = vpop.f32.mrf.mxu0
      %v2892 = vadd.f32 0.0, %v2891
      %v2893 = vpop.f32.mrf.mxu0
      %2894 = vdwg.mxu0
      %v2895 = vld [vmem:[%s16] sm:$0xff]
      %v2896 = vld [vmem:[%s16 + $0x8] sm:$0xff]
      %v2897 = vld [vmem:[%s16 + $0x10] sm:$0xff]
      %v2898 = vld [vmem:[%s16 + $0x18] sm:$0xff]
      %v2900 = vsel %vm874, %v1116, 0
      %v2903 = vsel %vm874, %v1117, 0
      %v2906 = vsel %vm874, %v1118, 0
      %v2909 = vsel %vm874, %v1119, 0
      %v2912 = vsel %vm874, %v1120, 0
      %v2915 = vsel %vm874, %v1121, 0
      %v2918 = vsel %vm874, %v1122, 0
      %v2921 = vsel %vm874, %v1123, 0
      %v2924 = vsel %vm874, %v1124, 0
      %v2927 = vsel %vm874, %v1125, 0
      %v2930 = vsel %vm874, %v1126, 0
      %v2933 = vsel %vm874, %v1127, 0
      %v2936 = vsel %vm874, %v1128, 0
      %v2939 = vsel %vm874, %v1129, 0
      %v2942 = vsel %vm874, %v1130, 0
      %v2945 = vsel %vm874, %v1131, 0
      %v2948 = vsel %vm874, %v1132, 0
      %v2951 = vsel %vm874, %v1133, 0
      %v2954 = vsel %vm874, %v1134, 0
      %v2957 = vsel %vm874, %v1135, 0
      %v2960 = vsel %vm874, %v1136, 0
      %v2963 = vsel %vm874, %v1137, 0
      %v2966 = vsel %vm874, %v1138, 0
      %v2969 = vsel %vm874, %v1139, 0
      %v2972 = vsel %vm874, %v1140, 0
      %v2975 = vsel %vm874, %v1141, 0
      %v2978 = vsel %vm874, %v1142, 0
      %v2981 = vsel %vm874, %v1143, 0
      %v2984 = vsel %vm874, %v1144, 0
      %v2987 = vsel %vm874, %v1145, 0
      %v2990 = vsel %vm874, %v1146, 0
      %v2993 = vsel %vm874, %v1147, 0
      %2995 = vmatprep.subr.mxu0 0.0
      %2996 = vmatpush1.msra.mxu0 0.0
      %2997 = vmatprep.subr.mxu0 0.0
      %2998 = vmatpush1.msra.mxu0 0.0
      %2999 = vmatprep.subr.mxu0 0.0
      %3000 = vmatpush1.msra.mxu0 0.0
      %3001 = vmatprep.subr.mxu0 0.0
      %3002 = vmatpush1.msra.mxu0 0.0
      %3003 = vmatprep.subr.mxu0 0.0
      %3004 = vmatpush1.msra.mxu0 0.0
      %3005 = vmatprep.subr.mxu0 0.0
      %3006 = vmatpush1.msra.mxu0 0.0
      %3007 = vmatprep.subr.mxu0 0.0
      %3008 = vmatpush1.msra.mxu0 0.0
      %3009 = vmatprep.subr.mxu0 0.0
      %3010 = vmatpush1.msra.mxu0 0.0
      %3011 = vmatprep.subr.mxu0 0.0
      %3012 = vmatpush1.msra.mxu0 0.0
      %3013 = vmatprep.subr.mxu0 0.0
      %3014 = vmatpush1.msra.mxu0 0.0
      %3015 = vmatprep.subr.mxu0 0.0
      %3016 = vmatpush1.msra.mxu0 0.0
      %3017 = vmatprep.subr.mxu0 0.0
      %3018 = vmatpush1.msra.mxu0 0.0
      %3019 = vmatprep.subr.mxu0 0.0
      %3020 = vmatpush1.msra.mxu0 %v2898
      %3021 = vmatprep.subr.mxu0 0.0
      %3022 = vmatpush1.msra.mxu0 %v2897
      %3023 = vmatprep.subr.mxu0 0.0
      %3024 = vmatpush1.msra.mxu0 %v2896
      %3025 = vmatprep.subr.mxu0 0.0
      %3026 = vmatpush1.msra.mxu0 %v2895
      %3027 = vmatprep.subr.mxu0 0.0
      %3028 = vmatpush2.msra.mxu0 0.0
      %3029 = vmatprep.subr.mxu0 0.0
      %3030 = vmatpush2.msra.mxu0 0.0
      %3031 = vmatprep.subr.mxu0 0.0
      %3032 = vmatpush2.msra.mxu0 0.0
      %3033 = vmatprep.subr.mxu0 0.0
      %3034 = vmatpush2.msra.mxu0 0.0
      %3035 = vmatprep.subr.mxu0 0.0
      %3036 = vmatpush2.msra.mxu0 0.0
      %3037 = vmatprep.subr.mxu0 0.0
      %3038 = vmatpush2.msra.mxu0 0.0
      %3039 = vmatprep.subr.mxu0 0.0
      %3040 = vmatpush2.msra.mxu0 0.0
      %3041 = vmatprep.subr.mxu0 0.0
      %3042 = vmatpush2.msra.mxu0 0.0
      %3043 = vmatprep.subr.mxu0 0.0
      %3044 = vmatpush2.msra.mxu0 0.0
      %3045 = vmatprep.subr.mxu0 0.0
      %3046 = vmatpush2.msra.mxu0 0.0
      %3047 = vmatprep.subr.mxu0 0.0
      %3048 = vmatpush2.msra.mxu0 0.0
      %3049 = vmatprep.subr.mxu0 0.0
      %3050 = vmatpush2.msra.mxu0 0.0
      %3051 = vmatprep.subr.mxu0 0.0
      %3052 = vmatpush2.msra.mxu0 0.0
      %3053 = vmatprep.subr.mxu0 0.0
      %3054 = vmatpush2.msra.mxu0 0.0
      %3055 = vmatprep.subr.mxu0 0.0
      %3056 = vmatpush2.msra.mxu0 0.0
      %3057 = vmatprep.subr.mxu0 0.0
      %3058 = vmatpush2.msra.mxu0 0.0
      %3059 = vmatprep.mubr.f32.mxu0 0.0
      %3060 = vmatmul.mubr.f32.gmra.mxu0 %v2900
      %v3061 = vpop.f32.mrf.mxu0
      %v3062 = vadd.f32 0.0, %v3061
      %v3063 = vpop.f32.mrf.mxu0
      %3064 = vmatprep.mubr.f32.mxu0 0.0
      %3065 = vmatmul.mubr.f32.gmra.mxu0 %v2903
      %v3066 = vpop.f32.mrf.mxu0
      %v3067 = vadd.f32 0.0, %v3066
      %v3068 = vpop.f32.mrf.mxu0
      %3069 = vmatprep.mubr.f32.mxu0 0.0
      %3070 = vmatmul.mubr.f32.gmra.mxu0 %v2906
      %v3071 = vpop.f32.mrf.mxu0
      %v3072 = vadd.f32 0.0, %v3071
      %v3073 = vpop.f32.mrf.mxu0
      %3074 = vmatprep.mubr.f32.mxu0 0.0
      %3075 = vmatmul.mubr.f32.gmra.mxu0 %v2909
      %v3076 = vpop.f32.mrf.mxu0
      %v3077 = vadd.f32 0.0, %v3076
      %v3078 = vpop.f32.mrf.mxu0
      %3079 = vmatprep.mubr.f32.mxu0 0.0
      %3080 = vmatmul.mubr.f32.gmra.mxu0 %v2912
      %v3081 = vpop.f32.mrf.mxu0
      %v3082 = vadd.f32 0.0, %v3081
      %v3083 = vpop.f32.mrf.mxu0
      %3084 = vmatprep.mubr.f32.mxu0 0.0
      %3085 = vmatmul.mubr.f32.gmra.mxu0 %v2915
      %v3086 = vpop.f32.mrf.mxu0
      %v3087 = vadd.f32 0.0, %v3086
      %v3088 = vpop.f32.mrf.mxu0
      %3089 = vmatprep.mubr.f32.mxu0 0.0
      %3090 = vmatmul.mubr.f32.gmra.mxu0 %v2918
      %v3091 = vpop.f32.mrf.mxu0
      %v3092 = vadd.f32 0.0, %v3091
      %v3093 = vpop.f32.mrf.mxu0
      %3094 = vmatprep.mubr.f32.mxu0 0.0
      %3095 = vmatmul.mubr.f32.gmra.mxu0 %v2921
      %v3096 = vpop.f32.mrf.mxu0
      %v3097 = vadd.f32 0.0, %v3096
      %v3098 = vpop.f32.mrf.mxu0
      %3099 = vmatprep.mubr.f32.mxu0 0.0
      %3100 = vmatmul.mubr.f32.gmra.mxu0 %v2924
      %v3101 = vpop.f32.mrf.mxu0
      %v3102 = vadd.f32 0.0, %v3101
      %v3103 = vpop.f32.mrf.mxu0
      %3104 = vmatprep.mubr.f32.mxu0 0.0
      %3105 = vmatmul.mubr.f32.gmra.mxu0 %v2927
      %v3106 = vpop.f32.mrf.mxu0
      %v3107 = vadd.f32 0.0, %v3106
      %v3108 = vpop.f32.mrf.mxu0
      %3109 = vmatprep.mubr.f32.mxu0 0.0
      %3110 = vmatmul.mubr.f32.gmra.mxu0 %v2930
      %v3111 = vpop.f32.mrf.mxu0
      %v3112 = vadd.f32 0.0, %v3111
      %v3113 = vpop.f32.mrf.mxu0
      %3114 = vmatprep.mubr.f32.mxu0 0.0
      %3115 = vmatmul.mubr.f32.gmra.mxu0 %v2933
      %v3116 = vpop.f32.mrf.mxu0
      %v3117 = vadd.f32 0.0, %v3116
      %v3118 = vpop.f32.mrf.mxu0
      %3119 = vmatprep.mubr.f32.mxu0 0.0
      %3120 = vmatmul.mubr.f32.gmra.mxu0 %v2936
      %v3121 = vpop.f32.mrf.mxu0
      %v3122 = vadd.f32 0.0, %v3121
      %v3123 = vpop.f32.mrf.mxu0
      %3124 = vmatprep.mubr.f32.mxu0 0.0
      %3125 = vmatmul.mubr.f32.gmra.mxu0 %v2939
      %v3126 = vpop.f32.mrf.mxu0
      %v3127 = vadd.f32 0.0, %v3126
      %v3128 = vpop.f32.mrf.mxu0
      %3129 = vmatprep.mubr.f32.mxu0 0.0
      %3130 = vmatmul.mubr.f32.gmra.mxu0 %v2942
      %v3131 = vpop.f32.mrf.mxu0
      %v3132 = vadd.f32 0.0, %v3131
      %v3133 = vpop.f32.mrf.mxu0
      %3134 = vmatprep.mubr.f32.mxu0 0.0
      %3135 = vmatmul.mubr.f32.gmra.mxu0 %v2945
      %v3136 = vpop.f32.mrf.mxu0
      %v3137 = vadd.f32 0.0, %v3136
      %v3138 = vpop.f32.mrf.mxu0
      %3139 = vmatprep.mubr.f32.mxu0 0.0
      %3140 = vmatmul.mubr.f32.gmra.mxu0 %v2948
      %v3141 = vpop.f32.mrf.mxu0
      %v3142 = vadd.f32 0.0, %v3141
      %v3143 = vpop.f32.mrf.mxu0
      %3144 = vmatprep.mubr.f32.mxu0 0.0
      %3145 = vmatmul.mubr.f32.gmra.mxu0 %v2951
      %v3146 = vpop.f32.mrf.mxu0
      %v3147 = vadd.f32 0.0, %v3146
      %v3148 = vpop.f32.mrf.mxu0
      %3149 = vmatprep.mubr.f32.mxu0 0.0
      %3150 = vmatmul.mubr.f32.gmra.mxu0 %v2954
      %v3151 = vpop.f32.mrf.mxu0
      %v3152 = vadd.f32 0.0, %v3151
      %v3153 = vpop.f32.mrf.mxu0
      %3154 = vmatprep.mubr.f32.mxu0 0.0
      %3155 = vmatmul.mubr.f32.gmra.mxu0 %v2957
      %v3156 = vpop.f32.mrf.mxu0
      %v3157 = vadd.f32 0.0, %v3156
      %v3158 = vpop.f32.mrf.mxu0
      %3159 = vmatprep.mubr.f32.mxu0 0.0
      %3160 = vmatmul.mubr.f32.gmra.mxu0 %v2960
      %v3161 = vpop.f32.mrf.mxu0
      %v3162 = vadd.f32 0.0, %v3161
      %v3163 = vpop.f32.mrf.mxu0
      %3164 = vmatprep.mubr.f32.mxu0 0.0
      %3165 = vmatmul.mubr.f32.gmra.mxu0 %v2963
      %v3166 = vpop.f32.mrf.mxu0
      %v3167 = vadd.f32 0.0, %v3166
      %v3168 = vpop.f32.mrf.mxu0
      %3169 = vmatprep.mubr.f32.mxu0 0.0
      %3170 = vmatmul.mubr.f32.gmra.mxu0 %v2966
      %v3171 = vpop.f32.mrf.mxu0
      %v3172 = vadd.f32 0.0, %v3171
      %v3173 = vpop.f32.mrf.mxu0
      %3174 = vmatprep.mubr.f32.mxu0 0.0
      %3175 = vmatmul.mubr.f32.gmra.mxu0 %v2969
      %v3176 = vpop.f32.mrf.mxu0
      %v3177 = vadd.f32 0.0, %v3176
      %v3178 = vpop.f32.mrf.mxu0
      %3179 = vmatprep.mubr.f32.mxu0 0.0
      %3180 = vmatmul.mubr.f32.gmra.mxu0 %v2972
      %v3181 = vpop.f32.mrf.mxu0
      %v3182 = vadd.f32 0.0, %v3181
      %v3183 = vpop.f32.mrf.mxu0
      %3184 = vmatprep.mubr.f32.mxu0 0.0
      %3185 = vmatmul.mubr.f32.gmra.mxu0 %v2975
      %v3186 = vpop.f32.mrf.mxu0
      %v3187 = vadd.f32 0.0, %v3186
      %v3188 = vpop.f32.mrf.mxu0
      %3189 = vmatprep.mubr.f32.mxu0 0.0
      %3190 = vmatmul.mubr.f32.gmra.mxu0 %v2978
      %v3191 = vpop.f32.mrf.mxu0
      %v3192 = vadd.f32 0.0, %v3191
      %v3193 = vpop.f32.mrf.mxu0
      %3194 = vmatprep.mubr.f32.mxu0 0.0
      %3195 = vmatmul.mubr.f32.gmra.mxu0 %v2981
      %v3196 = vpop.f32.mrf.mxu0
      %v3197 = vadd.f32 0.0, %v3196
      %v3198 = vpop.f32.mrf.mxu0
      %3199 = vmatprep.mubr.f32.mxu0 0.0
      %3200 = vmatmul.mubr.f32.gmra.mxu0 %v2984
      %v3201 = vpop.f32.mrf.mxu0
      %v3202 = vadd.f32 0.0, %v3201
      %v3203 = vpop.f32.mrf.mxu0
      %3204 = vmatprep.mubr.f32.mxu0 0.0
      %3205 = vmatmul.mubr.f32.gmra.mxu0 %v2987
      %v3206 = vpop.f32.mrf.mxu0
      %v3207 = vadd.f32 0.0, %v3206
      %v3208 = vpop.f32.mrf.mxu0
      %3209 = vmatprep.mubr.f32.mxu0 0.0
      %3210 = vmatmul.mubr.f32.gmra.mxu0 %v2990
      %v3211 = vpop.f32.mrf.mxu0
      %v3212 = vadd.f32 0.0, %v3211
      %v3213 = vpop.f32.mrf.mxu0
      %3214 = vmatprep.mubr.f32.mxu0 0.0
      %3215 = vmatmul.mubr.f32.gmra.mxu0 %v2993
      %v3216 = vpop.f32.mrf.mxu0
      %v3217 = vadd.f32 0.0, %v3216
      %v3218 = vpop.f32.mrf.mxu0
      %3219 = vdwg.mxu0
      %v3220 = vld [vmem:[%s17] sm:$0xff]
      %v3221 = vld [vmem:[%s17 + $0x8] sm:$0xff]
      %v3222 = vld [vmem:[%s17 + $0x10] sm:$0xff]
      %v3223 = vld [vmem:[%s17 + $0x18] sm:$0xff]
      %3224 = vmatprep.subr.mxu0 0.0
      %3225 = vmatpush1.msra.mxu0 0.0
      %3226 = vmatprep.subr.mxu0 0.0
      %3227 = vmatpush1.msra.mxu0 0.0
      %3228 = vmatprep.subr.mxu0 0.0
      %3229 = vmatpush1.msra.mxu0 0.0
      %3230 = vmatprep.subr.mxu0 0.0
      %3231 = vmatpush1.msra.mxu0 0.0
      %3232 = vmatprep.subr.mxu0 0.0
      %3233 = vmatpush1.msra.mxu0 0.0
      %3234 = vmatprep.subr.mxu0 0.0
      %3235 = vmatpush1.msra.mxu0 0.0
      %3236 = vmatprep.subr.mxu0 0.0
      %3237 = vmatpush1.msra.mxu0 0.0
      %3238 = vmatprep.subr.mxu0 0.0
      %3239 = vmatpush1.msra.mxu0 0.0
      %3240 = vmatprep.subr.mxu0 0.0
      %3241 = vmatpush1.msra.mxu0 0.0
      %3242 = vmatprep.subr.mxu0 0.0
      %3243 = vmatpush1.msra.mxu0 0.0
      %3244 = vmatprep.subr.mxu0 0.0
      %3245 = vmatpush1.msra.mxu0 0.0
      %3246 = vmatprep.subr.mxu0 0.0
      %3247 = vmatpush1.msra.mxu0 0.0
      %3248 = vmatprep.subr.mxu0 0.0
      %3249 = vmatpush1.msra.mxu0 %v3223
      %3250 = vmatprep.subr.mxu0 0.0
      %3251 = vmatpush1.msra.mxu0 %v3222
      %3252 = vmatprep.subr.mxu0 0.0
      %3253 = vmatpush1.msra.mxu0 %v3221
      %3254 = vmatprep.subr.mxu0 0.0
      %3255 = vmatpush1.msra.mxu0 %v3220
      %3256 = vmatprep.subr.mxu0 0.0
      %3257 = vmatpush2.msra.mxu0 0.0
      %3258 = vmatprep.subr.mxu0 0.0
      %3259 = vmatpush2.msra.mxu0 0.0
      %3260 = vmatprep.subr.mxu0 0.0
      %3261 = vmatpush2.msra.mxu0 0.0
      %3262 = vmatprep.subr.mxu0 0.0
      %3263 = vmatpush2.msra.mxu0 0.0
      %3264 = vmatprep.subr.mxu0 0.0
      %3265 = vmatpush2.msra.mxu0 0.0
      %3266 = vmatprep.subr.mxu0 0.0
      %3267 = vmatpush2.msra.mxu0 0.0
      %3268 = vmatprep.subr.mxu0 0.0
      %3269 = vmatpush2.msra.mxu0 0.0
      %3270 = vmatprep.subr.mxu0 0.0
      %3271 = vmatpush2.msra.mxu0 0.0
      %3272 = vmatprep.subr.mxu0 0.0
      %3273 = vmatpush2.msra.mxu0 0.0
      %3274 = vmatprep.subr.mxu0 0.0
      %3275 = vmatpush2.msra.mxu0 0.0
      %3276 = vmatprep.subr.mxu0 0.0
      %3277 = vmatpush2.msra.mxu0 0.0
      %3278 = vmatprep.subr.mxu0 0.0
      %3279 = vmatpush2.msra.mxu0 0.0
      %3280 = vmatprep.subr.mxu0 0.0
      %3281 = vmatpush2.msra.mxu0 0.0
      %3282 = vmatprep.subr.mxu0 0.0
      %3283 = vmatpush2.msra.mxu0 0.0
      %3284 = vmatprep.subr.mxu0 0.0
      %3285 = vmatpush2.msra.mxu0 0.0
      %3286 = vmatprep.subr.mxu0 0.0
      %3287 = vmatpush2.msra.mxu0 0.0
      %3288 = vmatprep.mubr.f32.mxu0 0.0
      %3289 = vmatmul.mubr.f32.gmra.mxu0 %v2900
      %v3290 = vpop.f32.mrf.mxu0
      %v3291 = vadd.f32 0.0, %v3290
      %v3292 = vpop.f32.mrf.mxu0
      %3293 = vmatprep.mubr.f32.mxu0 0.0
      %3294 = vmatmul.mubr.f32.gmra.mxu0 %v2903
      %v3295 = vpop.f32.mrf.mxu0
      %v3296 = vadd.f32 0.0, %v3295
      %v3297 = vpop.f32.mrf.mxu0
      %3298 = vmatprep.mubr.f32.mxu0 0.0
      %3299 = vmatmul.mubr.f32.gmra.mxu0 %v2906
      %v3300 = vpop.f32.mrf.mxu0
      %v3301 = vadd.f32 0.0, %v3300
      %v3302 = vpop.f32.mrf.mxu0
      %3303 = vmatprep.mubr.f32.mxu0 0.0
      %3304 = vmatmul.mubr.f32.gmra.mxu0 %v2909
      %v3305 = vpop.f32.mrf.mxu0
      %v3306 = vadd.f32 0.0, %v3305
      %v3307 = vpop.f32.mrf.mxu0
      %3308 = vmatprep.mubr.f32.mxu0 0.0
      %3309 = vmatmul.mubr.f32.gmra.mxu0 %v2912
      %v3310 = vpop.f32.mrf.mxu0
      %v3311 = vadd.f32 0.0, %v3310
      %v3312 = vpop.f32.mrf.mxu0
      %3313 = vmatprep.mubr.f32.mxu0 0.0
      %3314 = vmatmul.mubr.f32.gmra.mxu0 %v2915
      %v3315 = vpop.f32.mrf.mxu0
      %v3316 = vadd.f32 0.0, %v3315
      %v3317 = vpop.f32.mrf.mxu0
      %3318 = vmatprep.mubr.f32.mxu0 0.0
      %3319 = vmatmul.mubr.f32.gmra.mxu0 %v2918
      %v3320 = vpop.f32.mrf.mxu0
      %v3321 = vadd.f32 0.0, %v3320
      %v3322 = vpop.f32.mrf.mxu0
      %3323 = vmatprep.mubr.f32.mxu0 0.0
      %3324 = vmatmul.mubr.f32.gmra.mxu0 %v2921
      %v3325 = vpop.f32.mrf.mxu0
      %v3326 = vadd.f32 0.0, %v3325
      %v3327 = vpop.f32.mrf.mxu0
      %3328 = vmatprep.mubr.f32.mxu0 0.0
      %3329 = vmatmul.mubr.f32.gmra.mxu0 %v2924
      %v3330 = vpop.f32.mrf.mxu0
      %v3331 = vadd.f32 0.0, %v3330
      %v3332 = vpop.f32.mrf.mxu0
      %3333 = vmatprep.mubr.f32.mxu0 0.0
      %3334 = vmatmul.mubr.f32.gmra.mxu0 %v2927
      %v3335 = vpop.f32.mrf.mxu0
      %v3336 = vadd.f32 0.0, %v3335
      %v3337 = vpop.f32.mrf.mxu0
      %3338 = vmatprep.mubr.f32.mxu0 0.0
      %3339 = vmatmul.mubr.f32.gmra.mxu0 %v2930
      %v3340 = vpop.f32.mrf.mxu0
      %v3341 = vadd.f32 0.0, %v3340
      %v3342 = vpop.f32.mrf.mxu0
      %3343 = vmatprep.mubr.f32.mxu0 0.0
      %3344 = vmatmul.mubr.f32.gmra.mxu0 %v2933
      %v3345 = vpop.f32.mrf.mxu0
      %v3346 = vadd.f32 0.0, %v3345
      %v3347 = vpop.f32.mrf.mxu0
      %3348 = vmatprep.mubr.f32.mxu0 0.0
      %3349 = vmatmul.mubr.f32.gmra.mxu0 %v2936
      %v3350 = vpop.f32.mrf.mxu0
      %v3351 = vadd.f32 0.0, %v3350
      %v3352 = vpop.f32.mrf.mxu0
      %3353 = vmatprep.mubr.f32.mxu0 0.0
      %3354 = vmatmul.mubr.f32.gmra.mxu0 %v2939
      %v3355 = vpop.f32.mrf.mxu0
      %v3356 = vadd.f32 0.0, %v3355
      %v3357 = vpop.f32.mrf.mxu0
      %3358 = vmatprep.mubr.f32.mxu0 0.0
      %3359 = vmatmul.mubr.f32.gmra.mxu0 %v2942
      %v3360 = vpop.f32.mrf.mxu0
      %v3361 = vadd.f32 0.0, %v3360
      %v3362 = vpop.f32.mrf.mxu0
      %3363 = vmatprep.mubr.f32.mxu0 0.0
      %3364 = vmatmul.mubr.f32.gmra.mxu0 %v2945
      %v3365 = vpop.f32.mrf.mxu0
      %v3366 = vadd.f32 0.0, %v3365
      %v3367 = vpop.f32.mrf.mxu0
      %3368 = vmatprep.mubr.f32.mxu0 0.0
      %3369 = vmatmul.mubr.f32.gmra.mxu0 %v2948
      %v3370 = vpop.f32.mrf.mxu0
      %v3371 = vadd.f32 0.0, %v3370
      %v3372 = vpop.f32.mrf.mxu0
      %3373 = vmatprep.mubr.f32.mxu0 0.0
      %3374 = vmatmul.mubr.f32.gmra.mxu0 %v2951
      %v3375 = vpop.f32.mrf.mxu0
      %v3376 = vadd.f32 0.0, %v3375
      %v3377 = vpop.f32.mrf.mxu0
      %3378 = vmatprep.mubr.f32.mxu0 0.0
      %3379 = vmatmul.mubr.f32.gmra.mxu0 %v2954
      %v3380 = vpop.f32.mrf.mxu0
      %v3381 = vadd.f32 0.0, %v3380
      %v3382 = vpop.f32.mrf.mxu0
      %3383 = vmatprep.mubr.f32.mxu0 0.0
      %3384 = vmatmul.mubr.f32.gmra.mxu0 %v2957
      %v3385 = vpop.f32.mrf.mxu0
      %v3386 = vadd.f32 0.0, %v3385
      %v3387 = vpop.f32.mrf.mxu0
      %3388 = vmatprep.mubr.f32.mxu0 0.0
      %3389 = vmatmul.mubr.f32.gmra.mxu0 %v2960
      %v3390 = vpop.f32.mrf.mxu0
      %v3391 = vadd.f32 0.0, %v3390
      %v3392 = vpop.f32.mrf.mxu0
      %3393 = vmatprep.mubr.f32.mxu0 0.0
      %3394 = vmatmul.mubr.f32.gmra.mxu0 %v2963
      %v3395 = vpop.f32.mrf.mxu0
      %v3396 = vadd.f32 0.0, %v3395
      %v3397 = vpop.f32.mrf.mxu0
      %3398 = vmatprep.mubr.f32.mxu0 0.0
      %3399 = vmatmul.mubr.f32.gmra.mxu0 %v2966
      %v3400 = vpop.f32.mrf.mxu0
      %v3401 = vadd.f32 0.0, %v3400
      %v3402 = vpop.f32.mrf.mxu0
      %3403 = vmatprep.mubr.f32.mxu0 0.0
      %3404 = vmatmul.mubr.f32.gmra.mxu0 %v2969
      %v3405 = vpop.f32.mrf.mxu0
      %v3406 = vadd.f32 0.0, %v3405
      %v3407 = vpop.f32.mrf.mxu0
      %3408 = vmatprep.mubr.f32.mxu0 0.0
      %3409 = vmatmul.mubr.f32.gmra.mxu0 %v2972
      %v3410 = vpop.f32.mrf.mxu0
      %v3411 = vadd.f32 0.0, %v3410
      %v3412 = vpop.f32.mrf.mxu0
      %3413 = vmatprep.mubr.f32.mxu0 0.0
      %3414 = vmatmul.mubr.f32.gmra.mxu0 %v2975
      %v3415 = vpop.f32.mrf.mxu0
      %v3416 = vadd.f32 0.0, %v3415
      %v3417 = vpop.f32.mrf.mxu0
      %3418 = vmatprep.mubr.f32.mxu0 0.0
      %3419 = vmatmul.mubr.f32.gmra.mxu0 %v2978
      %v3420 = vpop.f32.mrf.mxu0
      %v3421 = vadd.f32 0.0, %v3420
      %v3422 = vpop.f32.mrf.mxu0
      %3423 = vmatprep.mubr.f32.mxu0 0.0
      %3424 = vmatmul.mubr.f32.gmra.mxu0 %v2981
      %v3425 = vpop.f32.mrf.mxu0
      %v3426 = vadd.f32 0.0, %v3425
      %v3427 = vpop.f32.mrf.mxu0
      %3428 = vmatprep.mubr.f32.mxu0 0.0
      %3429 = vmatmul.mubr.f32.gmra.mxu0 %v2984
      %v3430 = vpop.f32.mrf.mxu0
      %v3431 = vadd.f32 0.0, %v3430
      %v3432 = vpop.f32.mrf.mxu0
      %3433 = vmatprep.mubr.f32.mxu0 0.0
      %3434 = vmatmul.mubr.f32.gmra.mxu0 %v2987
      %v3435 = vpop.f32.mrf.mxu0
      %v3436 = vadd.f32 0.0, %v3435
      %v3437 = vpop.f32.mrf.mxu0
      %3438 = vmatprep.mubr.f32.mxu0 0.0
      %3439 = vmatmul.mubr.f32.gmra.mxu0 %v2990
      %v3440 = vpop.f32.mrf.mxu0
      %v3441 = vadd.f32 0.0, %v3440
      %v3442 = vpop.f32.mrf.mxu0
      %3443 = vmatprep.mubr.f32.mxu0 0.0
      %3444 = vmatmul.mubr.f32.gmra.mxu0 %v2993
      %v3445 = vpop.f32.mrf.mxu0
      %v3446 = vadd.f32 0.0, %v3445
      %v3447 = vpop.f32.mrf.mxu0
      %3448 = vdwg.mxu0
      %v3449 = vmul.f32 %v2857, %v3062
      %v3450 = vmul.f32 %v2862, %v3067
      %v3451 = vmul.f32 %v2867, %v3072
      %v3452 = vmul.f32 %v2872, %v3077
      %v3453 = vmul.f32 %v2877, %v3082
      %v3454 = vmul.f32 %v2882, %v3087
      %v3455 = vmul.f32 %v2887, %v3092
      %v3456 = vmul.f32 %v2892, %v3097
      %v3457 = vmul.f32 %v2857, %v3102
      %v3458 = vmul.f32 %v2862, %v3107
      %v3459 = vmul.f32 %v2867, %v3112
      %v3460 = vmul.f32 %v2872, %v3117
      %v3461 = vmul.f32 %v2877, %v3122
      %v3462 = vmul.f32 %v2882, %v3127
      %v3463 = vmul.f32 %v2887, %v3132
      %v3464 = vmul.f32 %v2892, %v3137
      %v3465 = vmul.f32 %v2857, %v3142
      %v3466 = vmul.f32 %v2862, %v3147
      %v3467 = vmul.f32 %v2867, %v3152
      %v3468 = vmul.f32 %v2872, %v3157
      %v3469 = vmul.f32 %v2877, %v3162
      %v3470 = vmul.f32 %v2882, %v3167
      %v3471 = vmul.f32 %v2887, %v3172
      %v3472 = vmul.f32 %v2892, %v3177
      %v3473 = vmul.f32 %v2857, %v3182
      %v3474 = vmul.f32 %v2862, %v3187
      %v3475 = vmul.f32 %v2867, %v3192
      %v3476 = vmul.f32 %v2872, %v3197
      %v3477 = vmul.f32 %v2877, %v3202
      %v3478 = vmul.f32 %v2882, %v3207
      %v3479 = vmul.f32 %v2887, %v3212
      %v3480 = vmul.f32 %v2892, %v3217
      %v3481 = vsel %vm1634, %v3449, 0.0
      %3482 = vadd.xlane.f32.xlu0 %v3481
      %v3483 = vpop.xlane.xlu0 %3482
      %v3484 = vsel %vm1634, %v3450, 0.0
      %3485 = vadd.xlane.f32.xlu0 %v3484
      %v3486 = vpop.xlane.xlu0 %3485
      %v3487 = vsel %vm1634, %v3451, 0.0
      %3488 = vadd.xlane.f32.xlu0 %v3487
      %v3489 = vpop.xlane.xlu0 %3488
      %v3490 = vsel %vm1634, %v3452, 0.0
      %3491 = vadd.xlane.f32.xlu0 %v3490
      %v3492 = vpop.xlane.xlu0 %3491
      %v3493 = vsel %vm1634, %v3453, 0.0
      %3494 = vadd.xlane.f32.xlu0 %v3493
      %v3495 = vpop.xlane.xlu0 %3494
      %v3496 = vsel %vm1634, %v3454, 0.0
      %3497 = vadd.xlane.f32.xlu0 %v3496
      %v3498 = vpop.xlane.xlu0 %3497
      %v3499 = vsel %vm1634, %v3455, 0.0
      %3500 = vadd.xlane.f32.xlu0 %v3499
      %v3501 = vpop.xlane.xlu0 %3500
      %v3502 = vsel %vm1634, %v3456, 0.0
      %3503 = vadd.xlane.f32.xlu0 %v3502
      %v3504 = vpop.xlane.xlu0 %3503
      %v3505 = vsel %vm1634, %v3457, 0.0
      %3506 = vadd.xlane.f32.xlu0 %v3505
      %v3507 = vpop.xlane.xlu0 %3506
      %v3508 = vsel %vm1634, %v3458, 0.0
      %3509 = vadd.xlane.f32.xlu0 %v3508
      %v3510 = vpop.xlane.xlu0 %3509
      %v3511 = vsel %vm1634, %v3459, 0.0
      %3512 = vadd.xlane.f32.xlu0 %v3511
      %v3513 = vpop.xlane.xlu0 %3512
      %v3514 = vsel %vm1634, %v3460, 0.0
      %3515 = vadd.xlane.f32.xlu0 %v3514
      %v3516 = vpop.xlane.xlu0 %3515
      %v3517 = vsel %vm1634, %v3461, 0.0
      %3518 = vadd.xlane.f32.xlu0 %v3517
      %v3519 = vpop.xlane.xlu0 %3518
      %v3520 = vsel %vm1634, %v3462, 0.0
      %3521 = vadd.xlane.f32.xlu0 %v3520
      %v3522 = vpop.xlane.xlu0 %3521
      %v3523 = vsel %vm1634, %v3463, 0.0
      %3524 = vadd.xlane.f32.xlu0 %v3523
      %v3525 = vpop.xlane.xlu0 %3524
      %v3526 = vsel %vm1634, %v3464, 0.0
      %3527 = vadd.xlane.f32.xlu0 %v3526
      %v3528 = vpop.xlane.xlu0 %3527
      %v3529 = vsel %vm1634, %v3465, 0.0
      %3530 = vadd.xlane.f32.xlu0 %v3529
      %v3531 = vpop.xlane.xlu0 %3530
      %v3532 = vsel %vm1634, %v3466, 0.0
      %3533 = vadd.xlane.f32.xlu0 %v3532
      %v3534 = vpop.xlane.xlu0 %3533
      %v3535 = vsel %vm1634, %v3467, 0.0
      %3536 = vadd.xlane.f32.xlu0 %v3535
      %v3537 = vpop.xlane.xlu0 %3536
      %v3538 = vsel %vm1634, %v3468, 0.0
      %3539 = vadd.xlane.f32.xlu0 %v3538
      %v3540 = vpop.xlane.xlu0 %3539
      %v3541 = vsel %vm1634, %v3469, 0.0
      %3542 = vadd.xlane.f32.xlu0 %v3541
      %v3543 = vpop.xlane.xlu0 %3542
      %v3544 = vsel %vm1634, %v3470, 0.0
      %3545 = vadd.xlane.f32.xlu0 %v3544
      %v3546 = vpop.xlane.xlu0 %3545
      %v3547 = vsel %vm1634, %v3471, 0.0
      %3548 = vadd.xlane.f32.xlu0 %v3547
      %v3549 = vpop.xlane.xlu0 %3548
      %v3550 = vsel %vm1634, %v3472, 0.0
      %3551 = vadd.xlane.f32.xlu0 %v3550
      %v3552 = vpop.xlane.xlu0 %3551
      %v3553 = vsel %vm1634, %v3473, 0.0
      %3554 = vadd.xlane.f32.xlu0 %v3553
      %v3555 = vpop.xlane.xlu0 %3554
      %v3556 = vsel %vm1634, %v3474, 0.0
      %3557 = vadd.xlane.f32.xlu0 %v3556
      %v3558 = vpop.xlane.xlu0 %3557
      %v3559 = vsel %vm1634, %v3475, 0.0
      %3560 = vadd.xlane.f32.xlu0 %v3559
      %v3561 = vpop.xlane.xlu0 %3560
      %v3562 = vsel %vm1634, %v3476, 0.0
      %3563 = vadd.xlane.f32.xlu0 %v3562
      %v3564 = vpop.xlane.xlu0 %3563
      %v3565 = vsel %vm1634, %v3477, 0.0
      %3566 = vadd.xlane.f32.xlu0 %v3565
      %v3567 = vpop.xlane.xlu0 %3566
      %v3568 = vsel %vm1634, %v3478, 0.0
      %3569 = vadd.xlane.f32.xlu0 %v3568
      %v3570 = vpop.xlane.xlu0 %3569
      %v3571 = vsel %vm1634, %v3479, 0.0
      %3572 = vadd.xlane.f32.xlu0 %v3571
      %v3573 = vpop.xlane.xlu0 %3572
      %v3574 = vsel %vm1634, %v3480, 0.0
      %3575 = vadd.xlane.f32.xlu0 %v3574
      %v3576 = vpop.xlane.xlu0 %3575
      %v3577 = vmul.f32 %v3483, 0.25
      %v3578 = vmul.f32 %v3486, 0.25
      %v3579 = vmul.f32 %v3489, 0.25
      %v3580 = vmul.f32 %v3492, 0.25
      %v3581 = vmul.f32 %v3495, 0.25
      %v3582 = vmul.f32 %v3498, 0.25
      %v3583 = vmul.f32 %v3501, 0.25
      %v3584 = vmul.f32 %v3504, 0.25
      %v3585 = vmul.f32 %v3507, 0.25
      %v3586 = vmul.f32 %v3510, 0.25
      %v3587 = vmul.f32 %v3513, 0.25
      %v3588 = vmul.f32 %v3516, 0.25
      %v3589 = vmul.f32 %v3519, 0.25
      %v3590 = vmul.f32 %v3522, 0.25
      %v3591 = vmul.f32 %v3525, 0.25
      %v3592 = vmul.f32 %v3528, 0.25
      %v3593 = vmul.f32 %v3531, 0.25
      %v3594 = vmul.f32 %v3534, 0.25
      %v3595 = vmul.f32 %v3537, 0.25
      %v3596 = vmul.f32 %v3540, 0.25
      %v3597 = vmul.f32 %v3543, 0.25
      %v3598 = vmul.f32 %v3546, 0.25
      %v3599 = vmul.f32 %v3549, 0.25
      %v3600 = vmul.f32 %v3552, 0.25
      %v3601 = vmul.f32 %v3555, 0.25
      %v3602 = vmul.f32 %v3558, 0.25
      %v3603 = vmul.f32 %v3561, 0.25
      %v3604 = vmul.f32 %v3564, 0.25
      %v3605 = vmul.f32 %v3567, 0.25
      %v3606 = vmul.f32 %v3570, 0.25
      %v3607 = vmul.f32 %v3573, 0.25
      %v3608 = vmul.f32 %v3576, 0.25
      %v3609 = vmax.f32 %v3577, %v3585
      %v3610 = vmax.f32 %v3609, %v3593
      %v3611 = vmax.f32 %v3610, %v3601
      %v3612 = vmax.f32 %v3578, %v3586
      %v3613 = vmax.f32 %v3612, %v3594
      %v3614 = vmax.f32 %v3613, %v3602
      %v3615 = vmax.f32 %v3579, %v3587
      %v3616 = vmax.f32 %v3615, %v3595
      %v3617 = vmax.f32 %v3616, %v3603
      %v3618 = vmax.f32 %v3580, %v3588
      %v3619 = vmax.f32 %v3618, %v3596
      %v3620 = vmax.f32 %v3619, %v3604
      %v3621 = vmax.f32 %v3581, %v3589
      %v3622 = vmax.f32 %v3621, %v3597
      %v3623 = vmax.f32 %v3622, %v3605
      %v3624 = vmax.f32 %v3582, %v3590
      %v3625 = vmax.f32 %v3624, %v3598
      %v3626 = vmax.f32 %v3625, %v3606
      %v3627 = vmax.f32 %v3583, %v3591
      %v3628 = vmax.f32 %v3627, %v3599
      %v3629 = vmax.f32 %v3628, %v3607
      %v3630 = vmax.f32 %v3584, %v3592
      %v3631 = vmax.f32 %v3630, %v3600
      %v3632 = vmax.f32 %v3631, %v3608
      %v3633 = vsub.f32 %v3577, %v3611
      %v3634 = vsub.f32 %v3578, %v3614
      %v3635 = vsub.f32 %v3579, %v3617
      %v3636 = vsub.f32 %v3580, %v3620
      %v3637 = vsub.f32 %v3581, %v3623
      %v3638 = vsub.f32 %v3582, %v3626
      %v3639 = vsub.f32 %v3583, %v3629
      %v3640 = vsub.f32 %v3584, %v3632
      %v3641 = vsub.f32 %v3585, %v3611
      %v3642 = vsub.f32 %v3586, %v3614
      %v3643 = vsub.f32 %v3587, %v3617
      %v3644 = vsub.f32 %v3588, %v3620
      %v3645 = vsub.f32 %v3589, %v3623
      %v3646 = vsub.f32 %v3590, %v3626
      %v3647 = vsub.f32 %v3591, %v3629
      %v3648 = vsub.f32 %v3592, %v3632
      %v3649 = vsub.f32 %v3593, %v3611
      %v3650 = vsub.f32 %v3594, %v3614
      %v3651 = vsub.f32 %v3595, %v3617
      %v3652 = vsub.f32 %v3596, %v3620
      %v3653 = vsub.f32 %v3597, %v3623
      %v3654 = vsub.f32 %v3598, %v3626
      %v3655 = vsub.f32 %v3599, %v3629
      %v3656 = vsub.f32 %v3600, %v3632
      %v3657 = vsub.f32 %v3601, %v3611
      %v3658 = vsub.f32 %v3602, %v3614
      %v3659 = vsub.f32 %v3603, %v3617
      %v3660 = vsub.f32 %v3604, %v3620
      %v3661 = vsub.f32 %v3605, %v3623
      %v3662 = vsub.f32 %v3606, %v3626
      %v3663 = vsub.f32 %v3607, %v3629
      %v3664 = vsub.f32 %v3608, %v3632
      %v3665 = vmul.f32 %v3633, 1.442695
      %v3666 = vpow.pop %v3665
      %v3667 = vmul.f32 %v3634, 1.442695
      %v3668 = vpow.pop %v3667
      %v3669 = vmul.f32 %v3635, 1.442695
      %v3670 = vpow.pop %v3669
      %v3671 = vmul.f32 %v3636, 1.442695
      %v3672 = vpow.pop %v3671
      %v3673 = vmul.f32 %v3637, 1.442695
      %v3674 = vpow.pop %v3673
      %v3675 = vmul.f32 %v3638, 1.442695
      %v3676 = vpow.pop %v3675
      %v3677 = vmul.f32 %v3639, 1.442695
      %v3678 = vpow.pop %v3677
      %v3679 = vmul.f32 %v3640, 1.442695
      %v3680 = vpow.pop %v3679
      %v3681 = vmul.f32 %v3641, 1.442695
      %v3682 = vpow.pop %v3681
      %v3683 = vmul.f32 %v3642, 1.442695
      %v3684 = vpow.pop %v3683
      %v3685 = vmul.f32 %v3643, 1.442695
      %v3686 = vpow.pop %v3685
      %v3687 = vmul.f32 %v3644, 1.442695
      %v3688 = vpow.pop %v3687
      %v3689 = vmul.f32 %v3645, 1.442695
      %v3690 = vpow.pop %v3689
      %v3691 = vmul.f32 %v3646, 1.442695
      %v3692 = vpow.pop %v3691
      %v3693 = vmul.f32 %v3647, 1.442695
      %v3694 = vpow.pop %v3693
      %v3695 = vmul.f32 %v3648, 1.442695
      %v3696 = vpow.pop %v3695
      %v3697 = vmul.f32 %v3649, 1.442695
      %v3698 = vpow.pop %v3697
      %v3699 = vmul.f32 %v3650, 1.442695
      %v3700 = vpow.pop %v3699
      %v3701 = vmul.f32 %v3651, 1.442695
      %v3702 = vpow.pop %v3701
      %v3703 = vmul.f32 %v3652, 1.442695
      %v3704 = vpow.pop %v3703
      %v3705 = vmul.f32 %v3653, 1.442695
      %v3706 = vpow.pop %v3705
      %v3707 = vmul.f32 %v3654, 1.442695
      %v3708 = vpow.pop %v3707
      %v3709 = vmul.f32 %v3655, 1.442695
      %v3710 = vpow.pop %v3709
      %v3711 = vmul.f32 %v3656, 1.442695
      %v3712 = vpow.pop %v3711
      %v3713 = vmul.f32 %v3657, 1.442695
      %v3714 = vpow.pop %v3713
      %v3715 = vmul.f32 %v3658, 1.442695
      %v3716 = vpow.pop %v3715
      %v3717 = vmul.f32 %v3659, 1.442695
      %v3718 = vpow.pop %v3717
      %v3719 = vmul.f32 %v3660, 1.442695
      %v3720 = vpow.pop %v3719
      %v3721 = vmul.f32 %v3661, 1.442695
      %v3722 = vpow.pop %v3721
      %v3723 = vmul.f32 %v3662, 1.442695
      %v3724 = vpow.pop %v3723
      %v3725 = vmul.f32 %v3663, 1.442695
      %v3726 = vpow.pop %v3725
      %v3727 = vmul.f32 %v3664, 1.442695
      %v3728 = vpow.pop %v3727
      %v3729 = vadd.f32 %v3666, %v3682
      %v3730 = vadd.f32 %v3729, %v3698
      %v3731 = vadd.f32 %v3730, %v3714
      %v3732 = vadd.f32 %v3668, %v3684
      %v3733 = vadd.f32 %v3732, %v3700
      %v3734 = vadd.f32 %v3733, %v3716
      %v3735 = vadd.f32 %v3670, %v3686
      %v3736 = vadd.f32 %v3735, %v3702
      %v3737 = vadd.f32 %v3736, %v3718
      %v3738 = vadd.f32 %v3672, %v3688
      %v3739 = vadd.f32 %v3738, %v3704
      %v3740 = vadd.f32 %v3739, %v3720
      %v3741 = vadd.f32 %v3674, %v3690
      %v3742 = vadd.f32 %v3741, %v3706
      %v3743 = vadd.f32 %v3742, %v3722
      %v3744 = vadd.f32 %v3676, %v3692
      %v3745 = vadd.f32 %v3744, %v3708
      %v3746 = vadd.f32 %v3745, %v3724
      %v3747 = vadd.f32 %v3678, %v3694
      %v3748 = vadd.f32 %v3747, %v3710
      %v3749 = vadd.f32 %v3748, %v3726
      %v3750 = vadd.f32 %v3680, %v3696
      %v3751 = vadd.f32 %v3750, %v3712
      %v3752 = vadd.f32 %v3751, %v3728
      %v3753 = vrcp.pop %v3731
      %v3754 = vrcp.pop %v3734
      %v3755 = vrcp.pop %v3737
      %v3756 = vrcp.pop %v3740
      %v3757 = vrcp.pop %v3743
      %v3758 = vrcp.pop %v3746
      %v3759 = vrcp.pop %v3749
      %v3760 = vrcp.pop %v3752
      %v3761 = vmul.f32 %v3666, %v3753
      %v3762 = vmul.f32 %v3668, %v3754
      %v3763 = vmul.f32 %v3670, %v3755
      %v3764 = vmul.f32 %v3672, %v3756
      %v3765 = vmul.f32 %v3674, %v3757
      %v3766 = vmul.f32 %v3676, %v3758
      %v3767 = vmul.f32 %v3678, %v3759
      %v3768 = vmul.f32 %v3680, %v3760
      %v3769 = vmul.f32 %v3682, %v3753
      %v3770 = vmul.f32 %v3684, %v3754
      %v3771 = vmul.f32 %v3686, %v3755
      %v3772 = vmul.f32 %v3688, %v3756
      %v3773 = vmul.f32 %v3690, %v3757
      %v3774 = vmul.f32 %v3692, %v3758
      %v3775 = vmul.f32 %v3694, %v3759
      %v3776 = vmul.f32 %v3696, %v3760
      %v3777 = vmul.f32 %v3698, %v3753
      %v3778 = vmul.f32 %v3700, %v3754
      %v3779 = vmul.f32 %v3702, %v3755
      %v3780 = vmul.f32 %v3704, %v3756
      %v3781 = vmul.f32 %v3706, %v3757
      %v3782 = vmul.f32 %v3708, %v3758
      %v3783 = vmul.f32 %v3710, %v3759
      %v3784 = vmul.f32 %v3712, %v3760
      %v3785 = vmul.f32 %v3714, %v3753
      %v3786 = vmul.f32 %v3716, %v3754
      %v3787 = vmul.f32 %v3718, %v3755
      %v3788 = vmul.f32 %v3720, %v3756
      %v3789 = vmul.f32 %v3722, %v3757
      %v3790 = vmul.f32 %v3724, %v3758
      %v3791 = vmul.f32 %v3726, %v3759
      %v3792 = vmul.f32 %v3728, %v3760
      %v3793 = vmul.f32 %v3761, %v3291
      %v3794 = vmul.f32 %v3762, %v3296
      %v3795 = vmul.f32 %v3763, %v3301
      %v3796 = vmul.f32 %v3764, %v3306
      %v3797 = vmul.f32 %v3765, %v3311
      %v3798 = vmul.f32 %v3766, %v3316
      %v3799 = vmul.f32 %v3767, %v3321
      %v3800 = vmul.f32 %v3768, %v3326
      %v3801 = vmul.f32 %v3769, %v3331
      %v3802 = vmul.f32 %v3770, %v3336
      %v3803 = vmul.f32 %v3771, %v3341
      %v3804 = vmul.f32 %v3772, %v3346
      %v3805 = vmul.f32 %v3773, %v3351
      %v3806 = vmul.f32 %v3774, %v3356
      %v3807 = vmul.f32 %v3775, %v3361
      %v3808 = vmul.f32 %v3776, %v3366
      %v3809 = vmul.f32 %v3777, %v3371
      %v3810 = vmul.f32 %v3778, %v3376
      %v3811 = vmul.f32 %v3779, %v3381
      %v3812 = vmul.f32 %v3780, %v3386
      %v3813 = vmul.f32 %v3781, %v3391
      %v3814 = vmul.f32 %v3782, %v3396
      %v3815 = vmul.f32 %v3783, %v3401
      %v3816 = vmul.f32 %v3784, %v3406
      %v3817 = vmul.f32 %v3785, %v3411
      %v3818 = vmul.f32 %v3786, %v3416
      %v3819 = vmul.f32 %v3787, %v3421
      %v3820 = vmul.f32 %v3788, %v3426
      %v3821 = vmul.f32 %v3789, %v3431
      %v3822 = vmul.f32 %v3790, %v3436
      %v3823 = vmul.f32 %v3791, %v3441
      %v3824 = vmul.f32 %v3792, %v3446
      %v3825 = vsel %vm1634, %v3793, 0.0
      %v3826 = vsel %vm1634, %v3801, 0.0
      %v3827 = vadd.f32 %v3825, %v3826
      %v3828 = vsel %vm1634, %v3809, 0.0
      %v3829 = vadd.f32 %v3827, %v3828
      %v3830 = vsel %vm1634, %v3817, 0.0
      %v3831 = vadd.f32 %v3829, %v3830
      %v3832 = vsel %vm1634, %v3794, 0.0
      %v3833 = vsel %vm1634, %v3802, 0.0
      %v3834 = vadd.f32 %v3832, %v3833
      %v3835 = vsel %vm1634, %v3810, 0.0
      %v3836 = vadd.f32 %v3834, %v3835
      %v3837 = vsel %vm1634, %v3818, 0.0
      %v3838 = vadd.f32 %v3836, %v3837
      %v3839 = vsel %vm1634, %v3795, 0.0
      %v3840 = vsel %vm1634, %v3803, 0.0
      %v3841 = vadd.f32 %v3839, %v3840
      %v3842 = vsel %vm1634, %v3811, 0.0
      %v3843 = vadd.f32 %v3841, %v3842
      %v3844 = vsel %vm1634, %v3819, 0.0
      %v3845 = vadd.f32 %v3843, %v3844
      %v3846 = vsel %vm1634, %v3796, 0.0
      %v3847 = vsel %vm1634, %v3804, 0.0
      %v3848 = vadd.f32 %v3846, %v3847
      %v3849 = vsel %vm1634, %v3812, 0.0
      %v3850 = vadd.f32 %v3848, %v3849
      %v3851 = vsel %vm1634, %v3820, 0.0
      %v3852 = vadd.f32 %v3850, %v3851
      %v3853 = vsel %vm1634, %v3797, 0.0
      %v3854 = vsel %vm1634, %v3805, 0.0
      %v3855 = vadd.f32 %v3853, %v3854
      %v3856 = vsel %vm1634, %v3813, 0.0
      %v3857 = vadd.f32 %v3855, %v3856
      %v3858 = vsel %vm1634, %v3821, 0.0
      %v3859 = vadd.f32 %v3857, %v3858
      %v3860 = vsel %vm1634, %v3798, 0.0
      %v3861 = vsel %vm1634, %v3806, 0.0
      %v3862 = vadd.f32 %v3860, %v3861
      %v3863 = vsel %vm1634, %v3814, 0.0
      %v3864 = vadd.f32 %v3862, %v3863
      %v3865 = vsel %vm1634, %v3822, 0.0
      %v3866 = vadd.f32 %v3864, %v3865
      %v3867 = vsel %vm1634, %v3799, 0.0
      %v3868 = vsel %vm1634, %v3807, 0.0
      %v3869 = vadd.f32 %v3867, %v3868
      %v3870 = vsel %vm1634, %v3815, 0.0
      %v3871 = vadd.f32 %v3869, %v3870
      %v3872 = vsel %vm1634, %v3823, 0.0
      %v3873 = vadd.f32 %v3871, %v3872
      %v3874 = vsel %vm1634, %v3800, 0.0
      %v3875 = vsel %vm1634, %v3808, 0.0
      %v3876 = vadd.f32 %v3874, %v3875
      %v3877 = vsel %vm1634, %v3816, 0.0
      %v3878 = vadd.f32 %v3876, %v3877
      %v3879 = vsel %vm1634, %v3824, 0.0
      %v3880 = vadd.f32 %v3878, %v3879
      %3913 = vrot.lane.b32.xlu0 %v3449, 112
      %v3914 = vpop.permute.xlu0 %3913
      %3915 = vrot.lane.b32.xlu0 %v3450, 112
      %v3916 = vpop.permute.xlu0 %3915
      %3917 = vrot.lane.b32.xlu0 %v3451, 112
      %v3918 = vpop.permute.xlu0 %3917
      %3919 = vrot.lane.b32.xlu0 %v3452, 112
      %v3920 = vpop.permute.xlu0 %3919
      %3921 = vrot.lane.b32.xlu0 %v3453, 112
      %v3922 = vpop.permute.xlu0 %3921
      %3923 = vrot.lane.b32.xlu0 %v3454, 112
      %v3924 = vpop.permute.xlu0 %3923
      %3925 = vrot.lane.b32.xlu0 %v3455, 112
      %v3926 = vpop.permute.xlu0 %3925
      %3927 = vrot.lane.b32.xlu0 %v3456, 112
      %v3928 = vpop.permute.xlu0 %3927
      %3929 = vrot.lane.b32.xlu0 %v3457, 112
      %v3930 = vpop.permute.xlu0 %3929
      %3931 = vrot.lane.b32.xlu0 %v3458, 112
      %v3932 = vpop.permute.xlu0 %3931
      %3933 = vrot.lane.b32.xlu0 %v3459, 112
      %v3934 = vpop.permute.xlu0 %3933
      %3935 = vrot.lane.b32.xlu0 %v3460, 112
      %v3936 = vpop.permute.xlu0 %3935
      %3937 = vrot.lane.b32.xlu0 %v3461, 112
      %v3938 = vpop.permute.xlu0 %3937
      %3939 = vrot.lane.b32.xlu0 %v3462, 112
      %v3940 = vpop.permute.xlu0 %3939
      %3941 = vrot.lane.b32.xlu0 %v3463, 112
      %v3942 = vpop.permute.xlu0 %3941
      %3943 = vrot.lane.b32.xlu0 %v3464, 112
      %v3944 = vpop.permute.xlu0 %3943
      %3945 = vrot.lane.b32.xlu0 %v3465, 112
      %v3946 = vpop.permute.xlu0 %3945
      %3947 = vrot.lane.b32.xlu0 %v3466, 112
      %v3948 = vpop.permute.xlu0 %3947
      %3949 = vrot.lane.b32.xlu0 %v3467, 112
      %v3950 = vpop.permute.xlu0 %3949
      %3951 = vrot.lane.b32.xlu0 %v3468, 112
      %v3952 = vpop.permute.xlu0 %3951
      %3953 = vrot.lane.b32.xlu0 %v3469, 112
      %v3954 = vpop.permute.xlu0 %3953
      %3955 = vrot.lane.b32.xlu0 %v3470, 112
      %v3956 = vpop.permute.xlu0 %3955
      %3957 = vrot.lane.b32.xlu0 %v3471, 112
      %v3958 = vpop.permute.xlu0 %3957
      %3959 = vrot.lane.b32.xlu0 %v3472, 112
      %v3960 = vpop.permute.xlu0 %3959
      %3961 = vrot.lane.b32.xlu0 %v3473, 112
      %v3962 = vpop.permute.xlu0 %3961
      %3963 = vrot.lane.b32.xlu0 %v3474, 112
      %v3964 = vpop.permute.xlu0 %3963
      %3965 = vrot.lane.b32.xlu0 %v3475, 112
      %v3966 = vpop.permute.xlu0 %3965
      %3967 = vrot.lane.b32.xlu0 %v3476, 112
      %v3968 = vpop.permute.xlu0 %3967
      %3969 = vrot.lane.b32.xlu0 %v3477, 112
      %v3970 = vpop.permute.xlu0 %3969
      %3971 = vrot.lane.b32.xlu0 %v3478, 112
      %v3972 = vpop.permute.xlu0 %3971
      %3973 = vrot.lane.b32.xlu0 %v3479, 112
      %v3974 = vpop.permute.xlu0 %3973
      %3975 = vrot.lane.b32.xlu0 %v3480, 112
      %v3976 = vpop.permute.xlu0 %3975
      %v4009 = vsel %vm1634, %v3914, 0.0
      %4010 = vadd.xlane.f32.xlu0 %v4009
      %v4011 = vpop.xlane.xlu0 %4010
      %v4012 = vsel %vm1634, %v3916, 0.0
      %4013 = vadd.xlane.f32.xlu0 %v4012
      %v4014 = vpop.xlane.xlu0 %4013
      %v4015 = vsel %vm1634, %v3918, 0.0
      %4016 = vadd.xlane.f32.xlu0 %v4015
      %v4017 = vpop.xlane.xlu0 %4016
      %v4018 = vsel %vm1634, %v3920, 0.0
      %4019 = vadd.xlane.f32.xlu0 %v4018
      %v4020 = vpop.xlane.xlu0 %4019
      %v4021 = vsel %vm1634, %v3922, 0.0
      %4022 = vadd.xlane.f32.xlu0 %v4021
      %v4023 = vpop.xlane.xlu0 %4022
      %v4024 = vsel %vm1634, %v3924, 0.0
      %4025 = vadd.xlane.f32.xlu0 %v4024
      %v4026 = vpop.xlane.xlu0 %4025
      %v4027 = vsel %vm1634, %v3926, 0.0
      %4028 = vadd.xlane.f32.xlu0 %v4027
      %v4029 = vpop.xlane.xlu0 %4028
      %v4030 = vsel %vm1634, %v3928, 0.0
      %4031 = vadd.xlane.f32.xlu0 %v4030
      %v4032 = vpop.xlane.xlu0 %4031
      %v4033 = vsel %vm1634, %v3930, 0.0
      %4034 = vadd.xlane.f32.xlu0 %v4033
      %v4035 = vpop.xlane.xlu0 %4034
      %v4036 = vsel %vm1634, %v3932, 0.0
      %4037 = vadd.xlane.f32.xlu0 %v4036
      %v4038 = vpop.xlane.xlu0 %4037
      %v4039 = vsel %vm1634, %v3934, 0.0
      %4040 = vadd.xlane.f32.xlu0 %v4039
      %v4041 = vpop.xlane.xlu0 %4040
      %v4042 = vsel %vm1634, %v3936, 0.0
      %4043 = vadd.xlane.f32.xlu0 %v4042
      %v4044 = vpop.xlane.xlu0 %4043
      %v4045 = vsel %vm1634, %v3938, 0.0
      %4046 = vadd.xlane.f32.xlu0 %v4045
      %v4047 = vpop.xlane.xlu0 %4046
      %v4048 = vsel %vm1634, %v3940, 0.0
      %4049 = vadd.xlane.f32.xlu0 %v4048
      %v4050 = vpop.xlane.xlu0 %4049
      %v4051 = vsel %vm1634, %v3942, 0.0
      %4052 = vadd.xlane.f32.xlu0 %v4051
      %v4053 = vpop.xlane.xlu0 %4052
      %v4054 = vsel %vm1634, %v3944, 0.0
      %4055 = vadd.xlane.f32.xlu0 %v4054
      %v4056 = vpop.xlane.xlu0 %4055
      %v4057 = vsel %vm1634, %v3946, 0.0
      %4058 = vadd.xlane.f32.xlu0 %v4057
      %v4059 = vpop.xlane.xlu0 %4058
      %v4060 = vsel %vm1634, %v3948, 0.0
      %4061 = vadd.xlane.f32.xlu0 %v4060
      %v4062 = vpop.xlane.xlu0 %4061
      %v4063 = vsel %vm1634, %v3950, 0.0
      %4064 = vadd.xlane.f32.xlu0 %v4063
      %v4065 = vpop.xlane.xlu0 %4064
      %v4066 = vsel %vm1634, %v3952, 0.0
      %4067 = vadd.xlane.f32.xlu0 %v4066
      %v4068 = vpop.xlane.xlu0 %4067
      %v4069 = vsel %vm1634, %v3954, 0.0
      %4070 = vadd.xlane.f32.xlu0 %v4069
      %v4071 = vpop.xlane.xlu0 %4070
      %v4072 = vsel %vm1634, %v3956, 0.0
      %4073 = vadd.xlane.f32.xlu0 %v4072
      %v4074 = vpop.xlane.xlu0 %4073
      %v4075 = vsel %vm1634, %v3958, 0.0
      %4076 = vadd.xlane.f32.xlu0 %v4075
      %v4077 = vpop.xlane.xlu0 %4076
      %v4078 = vsel %vm1634, %v3960, 0.0
      %4079 = vadd.xlane.f32.xlu0 %v4078
      %v4080 = vpop.xlane.xlu0 %4079
      %v4081 = vsel %vm1634, %v3962, 0.0
      %4082 = vadd.xlane.f32.xlu0 %v4081
      %v4083 = vpop.xlane.xlu0 %4082
      %v4084 = vsel %vm1634, %v3964, 0.0
      %4085 = vadd.xlane.f32.xlu0 %v4084
      %v4086 = vpop.xlane.xlu0 %4085
      %v4087 = vsel %vm1634, %v3966, 0.0
      %4088 = vadd.xlane.f32.xlu0 %v4087
      %v4089 = vpop.xlane.xlu0 %4088
      %v4090 = vsel %vm1634, %v3968, 0.0
      %4091 = vadd.xlane.f32.xlu0 %v4090
      %v4092 = vpop.xlane.xlu0 %4091
      %v4093 = vsel %vm1634, %v3970, 0.0
      %4094 = vadd.xlane.f32.xlu0 %v4093
      %v4095 = vpop.xlane.xlu0 %4094
      %v4096 = vsel %vm1634, %v3972, 0.0
      %4097 = vadd.xlane.f32.xlu0 %v4096
      %v4098 = vpop.xlane.xlu0 %4097
      %v4099 = vsel %vm1634, %v3974, 0.0
      %4100 = vadd.xlane.f32.xlu0 %v4099
      %v4101 = vpop.xlane.xlu0 %4100
      %v4102 = vsel %vm1634, %v3976, 0.0
      %4103 = vadd.xlane.f32.xlu0 %v4102
      %v4104 = vpop.xlane.xlu0 %4103
      %v4105 = vmul.f32 %v4011, 0.25
      %v4106 = vmul.f32 %v4014, 0.25
      %v4107 = vmul.f32 %v4017, 0.25
      %v4108 = vmul.f32 %v4020, 0.25
      %v4109 = vmul.f32 %v4023, 0.25
      %v4110 = vmul.f32 %v4026, 0.25
      %v4111 = vmul.f32 %v4029, 0.25
      %v4112 = vmul.f32 %v4032, 0.25
      %v4113 = vmul.f32 %v4035, 0.25
      %v4114 = vmul.f32 %v4038, 0.25
      %v4115 = vmul.f32 %v4041, 0.25
      %v4116 = vmul.f32 %v4044, 0.25
      %v4117 = vmul.f32 %v4047, 0.25
      %v4118 = vmul.f32 %v4050, 0.25
      %v4119 = vmul.f32 %v4053, 0.25
      %v4120 = vmul.f32 %v4056, 0.25
      %v4121 = vmul.f32 %v4059, 0.25
      %v4122 = vmul.f32 %v4062, 0.25
      %v4123 = vmul.f32 %v4065, 0.25
      %v4124 = vmul.f32 %v4068, 0.25
      %v4125 = vmul.f32 %v4071, 0.25
      %v4126 = vmul.f32 %v4074, 0.25
      %v4127 = vmul.f32 %v4077, 0.25
      %v4128 = vmul.f32 %v4080, 0.25
      %v4129 = vmul.f32 %v4083, 0.25
      %v4130 = vmul.f32 %v4086, 0.25
      %v4131 = vmul.f32 %v4089, 0.25
      %v4132 = vmul.f32 %v4092, 0.25
      %v4133 = vmul.f32 %v4095, 0.25
      %v4134 = vmul.f32 %v4098, 0.25
      %v4135 = vmul.f32 %v4101, 0.25
      %v4136 = vmul.f32 %v4104, 0.25
      %v4137 = vmax.f32 %v4105, %v4113
      %v4138 = vmax.f32 %v4137, %v4121
      %v4139 = vmax.f32 %v4138, %v4129
      %v4140 = vmax.f32 %v4106, %v4114
      %v4141 = vmax.f32 %v4140, %v4122
      %v4142 = vmax.f32 %v4141, %v4130
      %v4143 = vmax.f32 %v4107, %v4115
      %v4144 = vmax.f32 %v4143, %v4123
      %v4145 = vmax.f32 %v4144, %v4131
      %v4146 = vmax.f32 %v4108, %v4116
      %v4147 = vmax.f32 %v4146, %v4124
      %v4148 = vmax.f32 %v4147, %v4132
      %v4149 = vmax.f32 %v4109, %v4117
      %v4150 = vmax.f32 %v4149, %v4125
      %v4151 = vmax.f32 %v4150, %v4133
      %v4152 = vmax.f32 %v4110, %v4118
      %v4153 = vmax.f32 %v4152, %v4126
      %v4154 = vmax.f32 %v4153, %v4134
      %v4155 = vmax.f32 %v4111, %v4119
      %v4156 = vmax.f32 %v4155, %v4127
      %v4157 = vmax.f32 %v4156, %v4135
      %v4158 = vmax.f32 %v4112, %v4120
      %v4159 = vmax.f32 %v4158, %v4128
      %v4160 = vmax.f32 %v4159, %v4136
      %v4161 = vsub.f32 %v4105, %v4139
      %v4162 = vsub.f32 %v4106, %v4142
      %v4163 = vsub.f32 %v4107, %v4145
      %v4164 = vsub.f32 %v4108, %v4148
      %v4165 = vsub.f32 %v4109, %v4151
      %v4166 = vsub.f32 %v4110, %v4154
      %v4167 = vsub.f32 %v4111, %v4157
      %v4168 = vsub.f32 %v4112, %v4160
      %v4169 = vsub.f32 %v4113, %v4139
      %v4170 = vsub.f32 %v4114, %v4142
      %v4171 = vsub.f32 %v4115, %v4145
      %v4172 = vsub.f32 %v4116, %v4148
      %v4173 = vsub.f32 %v4117, %v4151
      %v4174 = vsub.f32 %v4118, %v4154
      %v4175 = vsub.f32 %v4119, %v4157
      %v4176 = vsub.f32 %v4120, %v4160
      %v4177 = vsub.f32 %v4121, %v4139
      %v4178 = vsub.f32 %v4122, %v4142
      %v4179 = vsub.f32 %v4123, %v4145
      %v4180 = vsub.f32 %v4124, %v4148
      %v4181 = vsub.f32 %v4125, %v4151
      %v4182 = vsub.f32 %v4126, %v4154
      %v4183 = vsub.f32 %v4127, %v4157
      %v4184 = vsub.f32 %v4128, %v4160
      %v4185 = vsub.f32 %v4129, %v4139
      %v4186 = vsub.f32 %v4130, %v4142
      %v4187 = vsub.f32 %v4131, %v4145
      %v4188 = vsub.f32 %v4132, %v4148
      %v4189 = vsub.f32 %v4133, %v4151
      %v4190 = vsub.f32 %v4134, %v4154
      %v4191 = vsub.f32 %v4135, %v4157
      %v4192 = vsub.f32 %v4136, %v4160
      %v4193 = vmul.f32 %v4161, 1.442695
      %v4194 = vpow.pop %v4193
      %v4195 = vmul.f32 %v4162, 1.442695
      %v4196 = vpow.pop %v4195
      %v4197 = vmul.f32 %v4163, 1.442695
      %v4198 = vpow.pop %v4197
      %v4199 = vmul.f32 %v4164, 1.442695
      %v4200 = vpow.pop %v4199
      %v4201 = vmul.f32 %v4165, 1.442695
      %v4202 = vpow.pop %v4201
      %v4203 = vmul.f32 %v4166, 1.442695
      %v4204 = vpow.pop %v4203
      %v4205 = vmul.f32 %v4167, 1.442695
      %v4206 = vpow.pop %v4205
      %v4207 = vmul.f32 %v4168, 1.442695
      %v4208 = vpow.pop %v4207
      %v4209 = vmul.f32 %v4169, 1.442695
      %v4210 = vpow.pop %v4209
      %v4211 = vmul.f32 %v4170, 1.442695
      %v4212 = vpow.pop %v4211
      %v4213 = vmul.f32 %v4171, 1.442695
      %v4214 = vpow.pop %v4213
      %v4215 = vmul.f32 %v4172, 1.442695
      %v4216 = vpow.pop %v4215
      %v4217 = vmul.f32 %v4173, 1.442695
      %v4218 = vpow.pop %v4217
      %v4219 = vmul.f32 %v4174, 1.442695
      %v4220 = vpow.pop %v4219
      %v4221 = vmul.f32 %v4175, 1.442695
      %v4222 = vpow.pop %v4221
      %v4223 = vmul.f32 %v4176, 1.442695
      %v4224 = vpow.pop %v4223
      %v4225 = vmul.f32 %v4177, 1.442695
      %v4226 = vpow.pop %v4225
      %v4227 = vmul.f32 %v4178, 1.442695
      %v4228 = vpow.pop %v4227
      %v4229 = vmul.f32 %v4179, 1.442695
      %v4230 = vpow.pop %v4229
      %v4231 = vmul.f32 %v4180, 1.442695
      %v4232 = vpow.pop %v4231
      %v4233 = vmul.f32 %v4181, 1.442695
      %v4234 = vpow.pop %v4233
      %v4235 = vmul.f32 %v4182, 1.442695
      %v4236 = vpow.pop %v4235
      %v4237 = vmul.f32 %v4183, 1.442695
      %v4238 = vpow.pop %v4237
      %v4239 = vmul.f32 %v4184, 1.442695
      %v4240 = vpow.pop %v4239
      %v4241 = vmul.f32 %v4185, 1.442695
      %v4242 = vpow.pop %v4241
      %v4243 = vmul.f32 %v4186, 1.442695
      %v4244 = vpow.pop %v4243
      %v4245 = vmul.f32 %v4187, 1.442695
      %v4246 = vpow.pop %v4245
      %v4247 = vmul.f32 %v4188, 1.442695
      %v4248 = vpow.pop %v4247
      %v4249 = vmul.f32 %v4189, 1.442695
      %v4250 = vpow.pop %v4249
      %v4251 = vmul.f32 %v4190, 1.442695
      %v4252 = vpow.pop %v4251
      %v4253 = vmul.f32 %v4191, 1.442695
      %v4254 = vpow.pop %v4253
      %v4255 = vmul.f32 %v4192, 1.442695
      %v4256 = vpow.pop %v4255
      %v4257 = vadd.f32 %v4194, %v4210
      %v4258 = vadd.f32 %v4257, %v4226
      %v4259 = vadd.f32 %v4258, %v4242
      %v4260 = vadd.f32 %v4196, %v4212
      %v4261 = vadd.f32 %v4260, %v4228
      %v4262 = vadd.f32 %v4261, %v4244
      %v4263 = vadd.f32 %v4198, %v4214
      %v4264 = vadd.f32 %v4263, %v4230
      %v4265 = vadd.f32 %v4264, %v4246
      %v4266 = vadd.f32 %v4200, %v4216
      %v4267 = vadd.f32 %v4266, %v4232
      %v4268 = vadd.f32 %v4267, %v4248
      %v4269 = vadd.f32 %v4202, %v4218
      %v4270 = vadd.f32 %v4269, %v4234
      %v4271 = vadd.f32 %v4270, %v4250
      %v4272 = vadd.f32 %v4204, %v4220
      %v4273 = vadd.f32 %v4272, %v4236
      %v4274 = vadd.f32 %v4273, %v4252
      %v4275 = vadd.f32 %v4206, %v4222
      %v4276 = vadd.f32 %v4275, %v4238
      %v4277 = vadd.f32 %v4276, %v4254
      %v4278 = vadd.f32 %v4208, %v4224
      %v4279 = vadd.f32 %v4278, %v4240
      %v4280 = vadd.f32 %v4279, %v4256
      %v4281 = vrcp.pop %v4259
      %v4282 = vrcp.pop %v4262
      %v4283 = vrcp.pop %v4265
      %v4284 = vrcp.pop %v4268
      %v4285 = vrcp.pop %v4271
      %v4286 = vrcp.pop %v4274
      %v4287 = vrcp.pop %v4277
      %v4288 = vrcp.pop %v4280
      %v4289 = vmul.f32 %v4194, %v4281
      %v4290 = vmul.f32 %v4196, %v4282
      %v4291 = vmul.f32 %v4198, %v4283
      %v4292 = vmul.f32 %v4200, %v4284
      %v4293 = vmul.f32 %v4202, %v4285
      %v4294 = vmul.f32 %v4204, %v4286
      %v4295 = vmul.f32 %v4206, %v4287
      %v4296 = vmul.f32 %v4208, %v4288
      %v4297 = vmul.f32 %v4210, %v4281
      %v4298 = vmul.f32 %v4212, %v4282
      %v4299 = vmul.f32 %v4214, %v4283
      %v4300 = vmul.f32 %v4216, %v4284
      %v4301 = vmul.f32 %v4218, %v4285
      %v4302 = vmul.f32 %v4220, %v4286
      %v4303 = vmul.f32 %v4222, %v4287
      %v4304 = vmul.f32 %v4224, %v4288
      %v4305 = vmul.f32 %v4226, %v4281
      %v4306 = vmul.f32 %v4228, %v4282
      %v4307 = vmul.f32 %v4230, %v4283
      %v4308 = vmul.f32 %v4232, %v4284
      %v4309 = vmul.f32 %v4234, %v4285
      %v4310 = vmul.f32 %v4236, %v4286
      %v4311 = vmul.f32 %v4238, %v4287
      %v4312 = vmul.f32 %v4240, %v4288
      %v4313 = vmul.f32 %v4242, %v4281
      %v4314 = vmul.f32 %v4244, %v4282
      %v4315 = vmul.f32 %v4246, %v4283
      %v4316 = vmul.f32 %v4248, %v4284
      %v4317 = vmul.f32 %v4250, %v4285
      %v4318 = vmul.f32 %v4252, %v4286
      %v4319 = vmul.f32 %v4254, %v4287
      %v4320 = vmul.f32 %v4256, %v4288
      %v4321 = vmul.f32 %v4289, %v3291
      %v4322 = vmul.f32 %v4290, %v3296
      %v4323 = vmul.f32 %v4291, %v3301
      %v4324 = vmul.f32 %v4292, %v3306
      %v4325 = vmul.f32 %v4293, %v3311
      %v4326 = vmul.f32 %v4294, %v3316
      %v4327 = vmul.f32 %v4295, %v3321
      %v4328 = vmul.f32 %v4296, %v3326
      %v4329 = vmul.f32 %v4297, %v3331
      %v4330 = vmul.f32 %v4298, %v3336
      %v4331 = vmul.f32 %v4299, %v3341
      %v4332 = vmul.f32 %v4300, %v3346
      %v4333 = vmul.f32 %v4301, %v3351
      %v4334 = vmul.f32 %v4302, %v3356
      %v4335 = vmul.f32 %v4303, %v3361
      %v4336 = vmul.f32 %v4304, %v3366
      %v4337 = vmul.f32 %v4305, %v3371
      %v4338 = vmul.f32 %v4306, %v3376
      %v4339 = vmul.f32 %v4307, %v3381
      %v4340 = vmul.f32 %v4308, %v3386
      %v4341 = vmul.f32 %v4309, %v3391
      %v4342 = vmul.f32 %v4310, %v3396
      %v4343 = vmul.f32 %v4311, %v3401
      %v4344 = vmul.f32 %v4312, %v3406
      %v4345 = vmul.f32 %v4313, %v3411
      %v4346 = vmul.f32 %v4314, %v3416
      %v4347 = vmul.f32 %v4315, %v3421
      %v4348 = vmul.f32 %v4316, %v3426
      %v4349 = vmul.f32 %v4317, %v3431
      %v4350 = vmul.f32 %v4318, %v3436
      %v4351 = vmul.f32 %v4319, %v3441
      %v4352 = vmul.f32 %v4320, %v3446
      %vm4353 = vcmask 261248
      %v4354 = vsel %vm4353, %v4321, 0.0
      %v4355 = vsel %vm4353, %v4329, 0.0
      %v4356 = vadd.f32 %v4354, %v4355
      %v4357 = vsel %vm4353, %v4337, 0.0
      %v4358 = vadd.f32 %v4356, %v4357
      %v4359 = vsel %vm4353, %v4345, 0.0
      %v4360 = vadd.f32 %v4358, %v4359
      %v4361 = vsel %vm4353, %v4322, 0.0
      %v4362 = vsel %vm4353, %v4330, 0.0
      %v4363 = vadd.f32 %v4361, %v4362
      %v4364 = vsel %vm4353, %v4338, 0.0
      %v4365 = vadd.f32 %v4363, %v4364
      %v4366 = vsel %vm4353, %v4346, 0.0
      %v4367 = vadd.f32 %v4365, %v4366
      %v4368 = vsel %vm4353, %v4323, 0.0
      %v4369 = vsel %vm4353, %v4331, 0.0
      %v4370 = vadd.f32 %v4368, %v4369
      %v4371 = vsel %vm4353, %v4339, 0.0
      %v4372 = vadd.f32 %v4370, %v4371
      %v4373 = vsel %vm4353, %v4347, 0.0
      %v4374 = vadd.f32 %v4372, %v4373
      %v4375 = vsel %vm4353, %v4324, 0.0
      %v4376 = vsel %vm4353, %v4332, 0.0
      %v4377 = vadd.f32 %v4375, %v4376
      %v4378 = vsel %vm4353, %v4340, 0.0
      %v4379 = vadd.f32 %v4377, %v4378
      %v4380 = vsel %vm4353, %v4348, 0.0
      %v4381 = vadd.f32 %v4379, %v4380
      %v4382 = vsel %vm4353, %v4325, 0.0
      %v4383 = vsel %vm4353, %v4333, 0.0
      %v4384 = vadd.f32 %v4382, %v4383
      %v4385 = vsel %vm4353, %v4341, 0.0
      %v4386 = vadd.f32 %v4384, %v4385
      %v4387 = vsel %vm4353, %v4349, 0.0
      %v4388 = vadd.f32 %v4386, %v4387
      %v4389 = vsel %vm4353, %v4326, 0.0
      %v4390 = vsel %vm4353, %v4334, 0.0
      %v4391 = vadd.f32 %v4389, %v4390
      %v4392 = vsel %vm4353, %v4342, 0.0
      %v4393 = vadd.f32 %v4391, %v4392
      %v4394 = vsel %vm4353, %v4350, 0.0
      %v4395 = vadd.f32 %v4393, %v4394
      %v4396 = vsel %vm4353, %v4327, 0.0
      %v4397 = vsel %vm4353, %v4335, 0.0
      %v4398 = vadd.f32 %v4396, %v4397
      %v4399 = vsel %vm4353, %v4343, 0.0
      %v4400 = vadd.f32 %v4398, %v4399
      %v4401 = vsel %vm4353, %v4351, 0.0
      %v4402 = vadd.f32 %v4400, %v4401
      %v4403 = vsel %vm4353, %v4328, 0.0
      %v4404 = vsel %vm4353, %v4336, 0.0
      %v4405 = vadd.f32 %v4403, %v4404
      %v4406 = vsel %vm4353, %v4344, 0.0
      %v4407 = vadd.f32 %v4405, %v4406
      %v4408 = vsel %vm4353, %v4352, 0.0
      %v4409 = vadd.f32 %v4407, %v4408
      %v4410 = vsel %vm1634, %v3831, %v4360
      %v4411 = vsel %vm1634, %v3838, %v4367
      %v4412 = vsel %vm1634, %v3845, %v4374
      %v4413 = vsel %vm1634, %v3852, %v4381
      %v4414 = vsel %vm1634, %v3859, %v4388
      %v4415 = vsel %vm1634, %v3866, %v4395
      %v4416 = vsel %vm1634, %v3873, %v4402
      %v4417 = vsel %vm1634, %v3880, %v4409
      %v4418 = vld [vmem:[%s18] sm:$0xff]
      %v4419 = vld [vmem:[%s18 + $0x8] sm:$0xff]
      %v4420 = vld [vmem:[%s18 + $0x10] sm:$0xff]
      %v4421 = vld [vmem:[%s18 + $0x18] sm:$0xff]
      %v4422 = vld [vmem:[%s19] sm:$0x1]
      %v4424 = vlaneseq
      %v4425 = vshrl.u32 %v4424, 7
      %v4426 = vsub.s32 0, %v4425
      %v4427 = vrot.slane %v4422, %v4426
      %v4430 = vsel %vm874, %v4410, 0
      %v4433 = vsel %vm874, %v4411, 0
      %v4436 = vsel %vm874, %v4412, 0
      %v4439 = vsel %vm874, %v4413, 0
      %v4442 = vsel %vm874, %v4414, 0
      %v4445 = vsel %vm874, %v4415, 0
      %v4448 = vsel %vm874, %v4416, 0
      %v4451 = vsel %vm874, %v4417, 0
      %4453 = vmatprep.subr.mxu0 0.0
      %4454 = vmatpush1.msra.mxu0 0.0
      %4455 = vmatprep.subr.mxu0 0.0
      %4456 = vmatpush1.msra.mxu0 0.0
      %4457 = vmatprep.subr.mxu0 0.0
      %4458 = vmatpush1.msra.mxu0 0.0
      %4459 = vmatprep.subr.mxu0 0.0
      %4460 = vmatpush1.msra.mxu0 0.0
      %4461 = vmatprep.subr.mxu0 0.0
      %4462 = vmatpush1.msra.mxu0 0.0
      %4463 = vmatprep.subr.mxu0 0.0
      %4464 = vmatpush1.msra.mxu0 0.0
      %4465 = vmatprep.subr.mxu0 0.0
      %4466 = vmatpush1.msra.mxu0 0.0
      %4467 = vmatprep.subr.mxu0 0.0
      %4468 = vmatpush1.msra.mxu0 0.0
      %4469 = vmatprep.subr.mxu0 0.0
      %4470 = vmatpush1.msra.mxu0 0.0
      %4471 = vmatprep.subr.mxu0 0.0
      %4472 = vmatpush1.msra.mxu0 0.0
      %4473 = vmatprep.subr.mxu0 0.0
      %4474 = vmatpush1.msra.mxu0 0.0
      %4475 = vmatprep.subr.mxu0 0.0
      %4476 = vmatpush1.msra.mxu0 0.0
      %4477 = vmatprep.subr.mxu0 0.0
      %4478 = vmatpush1.msra.mxu0 %v4421
      %4479 = vmatprep.subr.mxu0 0.0
      %4480 = vmatpush1.msra.mxu0 %v4420
      %4481 = vmatprep.subr.mxu0 0.0
      %4482 = vmatpush1.msra.mxu0 %v4419
      %4483 = vmatprep.subr.mxu0 0.0
      %4484 = vmatpush1.msra.mxu0 %v4418
      %4485 = vmatprep.subr.mxu0 0.0
      %4486 = vmatpush2.msra.mxu0 0.0
      %4487 = vmatprep.subr.mxu0 0.0
      %4488 = vmatpush2.msra.mxu0 0.0
      %4489 = vmatprep.subr.mxu0 0.0
      %4490 = vmatpush2.msra.mxu0 0.0
      %4491 = vmatprep.subr.mxu0 0.0
      %4492 = vmatpush2.msra.mxu0 0.0
      %4493 = vmatprep.subr.mxu0 0.0
      %4494 = vmatpush2.msra.mxu0 0.0
      %4495 = vmatprep.subr.mxu0 0.0
      %4496 = vmatpush2.msra.mxu0 0.0
      %4497 = vmatprep.subr.mxu0 0.0
      %4498 = vmatpush2.msra.mxu0 0.0
      %4499 = vmatprep.subr.mxu0 0.0
      %4500 = vmatpush2.msra.mxu0 0.0
      %4501 = vmatprep.subr.mxu0 0.0
      %4502 = vmatpush2.msra.mxu0 0.0
      %4503 = vmatprep.subr.mxu0 0.0
      %4504 = vmatpush2.msra.mxu0 0.0
      %4505 = vmatprep.subr.mxu0 0.0
      %4506 = vmatpush2.msra.mxu0 0.0
      %4507 = vmatprep.subr.mxu0 0.0
      %4508 = vmatpush2.msra.mxu0 0.0
      %4509 = vmatprep.subr.mxu0 0.0
      %4510 = vmatpush2.msra.mxu0 0.0
      %4511 = vmatprep.subr.mxu0 0.0
      %4512 = vmatpush2.msra.mxu0 0.0
      %4513 = vmatprep.subr.mxu0 0.0
      %4514 = vmatpush2.msra.mxu0 0.0
      %4515 = vmatprep.subr.mxu0 0.0
      %4516 = vmatpush2.msra.mxu0 0.0
      %4517 = vmatprep.mubr.f32.mxu0 0.0
      %4518 = vmatmul.mubr.f32.gmra.mxu0 %v4430
      %v4519 = vpop.f32.mrf.mxu0
      %v4520 = vadd.f32 %v4427, %v4519
      %v4521 = vpop.f32.mrf.mxu0
      %4522 = vmatprep.mubr.f32.mxu0 0.0
      %4523 = vmatmul.mubr.f32.gmra.mxu0 %v4433
      %v4524 = vpop.f32.mrf.mxu0
      %v4525 = vadd.f32 %v4427, %v4524
      %v4526 = vpop.f32.mrf.mxu0
      %4527 = vmatprep.mubr.f32.mxu0 0.0
      %4528 = vmatmul.mubr.f32.gmra.mxu0 %v4436
      %v4529 = vpop.f32.mrf.mxu0
      %v4530 = vadd.f32 %v4427, %v4529
      %v4531 = vpop.f32.mrf.mxu0
      %4532 = vmatprep.mubr.f32.mxu0 0.0
      %4533 = vmatmul.mubr.f32.gmra.mxu0 %v4439
      %v4534 = vpop.f32.mrf.mxu0
      %v4535 = vadd.f32 %v4427, %v4534
      %v4536 = vpop.f32.mrf.mxu0
      %4537 = vmatprep.mubr.f32.mxu0 0.0
      %4538 = vmatmul.mubr.f32.gmra.mxu0 %v4442
      %v4539 = vpop.f32.mrf.mxu0
      %v4540 = vadd.f32 %v4427, %v4539
      %v4541 = vpop.f32.mrf.mxu0
      %4542 = vmatprep.mubr.f32.mxu0 0.0
      %4543 = vmatmul.mubr.f32.gmra.mxu0 %v4445
      %v4544 = vpop.f32.mrf.mxu0
      %v4545 = vadd.f32 %v4427, %v4544
      %v4546 = vpop.f32.mrf.mxu0
      %4547 = vmatprep.mubr.f32.mxu0 0.0
      %4548 = vmatmul.mubr.f32.gmra.mxu0 %v4448
      %v4549 = vpop.f32.mrf.mxu0
      %v4550 = vadd.f32 %v4427, %v4549
      %v4551 = vpop.f32.mrf.mxu0
      %4552 = vmatprep.mubr.f32.mxu0 0.0
      %4553 = vmatmul.mubr.f32.gmra.mxu0 %v4451
      %v4554 = vpop.f32.mrf.mxu0
      %v4555 = vadd.f32 %v4427, %v4554
      %v4556 = vpop.f32.mrf.mxu0
      %4557 = vdwg.mxu0
      %v4558 = vadd.f32 %v4520, %v2620
      %v4559 = vadd.f32 %v4525, %v2621
      %v4560 = vadd.f32 %v4530, %v2622
      %v4561 = vadd.f32 %v4535, %v2623
      %v4562 = vadd.f32 %v4540, %v2624
      %v4563 = vadd.f32 %v4545, %v2625
      %v4564 = vadd.f32 %v4550, %v2626
      %v4565 = vadd.f32 %v4555, %v2627
      %v4566 = vld [vmem:[%s20] sm:$0x1]
      %v4567 = vld [vmem:[%s21] sm:$0x1]
      %v4568 = vsel %vm874, %v4558, 0.0
      %4569 = vadd.xlane.f32.xlu0 %v4568
      %v4570 = vpop.xlane.xlu0 %4569
      %v4571 = vsel %vm874, %v4559, 0.0
      %4572 = vadd.xlane.f32.xlu0 %v4571
      %v4573 = vpop.xlane.xlu0 %4572
      %v4574 = vsel %vm874, %v4560, 0.0
      %4575 = vadd.xlane.f32.xlu0 %v4574
      %v4576 = vpop.xlane.xlu0 %4575
      %v4577 = vsel %vm874, %v4561, 0.0
      %4578 = vadd.xlane.f32.xlu0 %v4577
      %v4579 = vpop.xlane.xlu0 %4578
      %v4580 = vsel %vm874, %v4562, 0.0
      %4581 = vadd.xlane.f32.xlu0 %v4580
      %v4582 = vpop.xlane.xlu0 %4581
      %v4583 = vsel %vm874, %v4563, 0.0
      %4584 = vadd.xlane.f32.xlu0 %v4583
      %v4585 = vpop.xlane.xlu0 %4584
      %v4586 = vsel %vm874, %v4564, 0.0
      %4587 = vadd.xlane.f32.xlu0 %v4586
      %v4588 = vpop.xlane.xlu0 %4587
      %v4589 = vsel %vm874, %v4565, 0.0
      %4590 = vadd.xlane.f32.xlu0 %v4589
      %v4591 = vpop.xlane.xlu0 %4590
      %v4592 = vmul.f32 %v4570, %v1174
      %v4593 = vmul.f32 %v4573, %v1174
      %v4594 = vmul.f32 %v4576, %v1174
      %v4595 = vmul.f32 %v4579, %v1174
      %v4596 = vmul.f32 %v4582, %v1174
      %v4597 = vmul.f32 %v4585, %v1174
      %v4598 = vmul.f32 %v4588, %v1174
      %v4599 = vmul.f32 %v4591, %v1174
      %v4600 = vsub.f32 %v4558, %v4592
      %v4601 = vsub.f32 %v4559, %v4593
      %v4602 = vsub.f32 %v4560, %v4594
      %v4603 = vsub.f32 %v4561, %v4595
      %v4604 = vsub.f32 %v4562, %v4596
      %v4605 = vsub.f32 %v4563, %v4597
      %v4606 = vsub.f32 %v4564, %v4598
      %v4607 = vsub.f32 %v4565, %v4599
      %v4608 = vmul.f32 %v4600, %v4600
      %v4609 = vmul.f32 %v4601, %v4601
      %v4610 = vmul.f32 %v4602, %v4602
      %v4611 = vmul.f32 %v4603, %v4603
      %v4612 = vmul.f32 %v4604, %v4604
      %v4613 = vmul.f32 %v4605, %v4605
      %v4614 = vmul.f32 %v4606, %v4606
      %v4615 = vmul.f32 %v4607, %v4607
      %v4616 = vsel %vm874, %v4608, 0.0
      %4617 = vadd.xlane.f32.xlu0 %v4616
      %v4618 = vpop.xlane.xlu0 %4617
      %v4619 = vsel %vm874, %v4609, 0.0
      %4620 = vadd.xlane.f32.xlu0 %v4619
      %v4621 = vpop.xlane.xlu0 %4620
      %v4622 = vsel %vm874, %v4610, 0.0
      %4623 = vadd.xlane.f32.xlu0 %v4622
      %v4624 = vpop.xlane.xlu0 %4623
      %v4625 = vsel %vm874, %v4611, 0.0
      %4626 = vadd.xlane.f32.xlu0 %v4625
      %v4627 = vpop.xlane.xlu0 %4626
      %v4628 = vsel %vm874, %v4612, 0.0
      %4629 = vadd.xlane.f32.xlu0 %v4628
      %v4630 = vpop.xlane.xlu0 %4629
      %v4631 = vsel %vm874, %v4613, 0.0
      %4632 = vadd.xlane.f32.xlu0 %v4631
      %v4633 = vpop.xlane.xlu0 %4632
      %v4634 = vsel %vm874, %v4614, 0.0
      %4635 = vadd.xlane.f32.xlu0 %v4634
      %v4636 = vpop.xlane.xlu0 %4635
      %v4637 = vsel %vm874, %v4615, 0.0
      %4638 = vadd.xlane.f32.xlu0 %v4637
      %v4639 = vpop.xlane.xlu0 %4638
      %v4640 = vmul.f32 %v4618, %v1174
      %v4641 = vmul.f32 %v4621, %v1174
      %v4642 = vmul.f32 %v4624, %v1174
      %v4643 = vmul.f32 %v4627, %v1174
      %v4644 = vmul.f32 %v4630, %v1174
      %v4645 = vmul.f32 %v4633, %v1174
      %v4646 = vmul.f32 %v4636, %v1174
      %v4647 = vmul.f32 %v4639, %v1174
      %v4648 = vadd.f32 %v4640, 1e-05
      %v4649 = vadd.f32 %v4641, 1e-05
      %v4650 = vadd.f32 %v4642, 1e-05
      %v4651 = vadd.f32 %v4643, 1e-05
      %v4652 = vadd.f32 %v4644, 1e-05
      %v4653 = vadd.f32 %v4645, 1e-05
      %v4654 = vadd.f32 %v4646, 1e-05
      %v4655 = vadd.f32 %v4647, 1e-05
      %v4656 = vrsqrt.pop %v4648
      %v4657 = vrsqrt.pop %v4649
      %v4658 = vrsqrt.pop %v4650
      %v4659 = vrsqrt.pop %v4651
      %v4660 = vrsqrt.pop %v4652
      %v4661 = vrsqrt.pop %v4653
      %v4662 = vrsqrt.pop %v4654
      %v4663 = vrsqrt.pop %v4655
      %v4664 = vmul.f32 %v4600, %v4656
      %v4665 = vmul.f32 %v4601, %v4657
      %v4666 = vmul.f32 %v4602, %v4658
      %v4667 = vmul.f32 %v4603, %v4659
      %v4668 = vmul.f32 %v4604, %v4660
      %v4669 = vmul.f32 %v4605, %v4661
      %v4670 = vmul.f32 %v4606, %v4662
      %v4671 = vmul.f32 %v4607, %v4663
      %v4673 = vlaneseq
      %v4674 = vshrl.u32 %v4673, 7
      %v4675 = vsub.s32 0, %v4674
      %v4676 = vrot.slane %v4566, %v4675
      %v4678 = vmul.f32 %v4664, %v4676
      %v4679 = vmul.f32 %v4665, %v4676
      %v4680 = vmul.f32 %v4666, %v4676
      %v4681 = vmul.f32 %v4667, %v4676
      %v4682 = vmul.f32 %v4668, %v4676
      %v4683 = vmul.f32 %v4669, %v4676
      %v4684 = vmul.f32 %v4670, %v4676
      %v4685 = vmul.f32 %v4671, %v4676
      %v4687 = vlaneseq
      %v4688 = vshrl.u32 %v4687, 7
      %v4689 = vsub.s32 0, %v4688
      %v4690 = vrot.slane %v4567, %v4689
      %v4692 = vadd.f32 %v4678, %v4690
      %v4693 = vadd.f32 %v4679, %v4690
      %v4694 = vadd.f32 %v4680, %v4690
      %v4695 = vadd.f32 %v4681, %v4690
      %v4696 = vadd.f32 %v4682, %v4690
      %v4697 = vadd.f32 %v4683, %v4690
      %v4698 = vadd.f32 %v4684, %v4690
      %v4699 = vadd.f32 %v4685, %v4690
      %v4700 = vld [vmem:[%s22] sm:$0xff]
      %v4701 = vld [vmem:[%s22 + $0x8] sm:$0xff]
      %v4702 = vld [vmem:[%s22 + $0x10] sm:$0xff]
      %v4703 = vld [vmem:[%s22 + $0x18] sm:$0xff]
      %v4704 = vld [vmem:[%s22 + $0x20] sm:$0xff]
      %v4705 = vld [vmem:[%s22 + $0x28] sm:$0xff]
      %v4706 = vld [vmem:[%s22 + $0x30] sm:$0xff]
      %v4707 = vld [vmem:[%s22 + $0x38] sm:$0xff]
      %v4708 = vld [vmem:[%s23] sm:$0x3]
      %v4710 = vlaneseq
      %v4711 = vshrl.u32 %v4710, 7
      %v4712 = vsub.s32 0, %v4711
      %v4713 = vrot.slane %v4708, %v4712
      %v4714 = vlaneseq
      %v4715 = vshrl.u32 %v4714, 7
      %v4716 = vsub.s32 1, %v4715
      %v4717 = vrot.slane %v4708, %v4716
      %v4721 = vsel %vm874, %v4692, 0
      %v4724 = vsel %vm874, %v4693, 0
      %v4727 = vsel %vm874, %v4694, 0
      %v4730 = vsel %vm874, %v4695, 0
      %v4733 = vsel %vm874, %v4696, 0
      %v4736 = vsel %vm874, %v4697, 0
      %v4739 = vsel %vm874, %v4698, 0
      %v4742 = vsel %vm874, %v4699, 0
      %4744 = vmatprep.subr.mxu0 0.0
      %4745 = vmatpush1.msra.mxu0 0.0
      %4746 = vmatprep.subr.mxu0 0.0
      %4747 = vmatpush1.msra.mxu0 0.0
      %4748 = vmatprep.subr.mxu0 0.0
      %4749 = vmatpush1.msra.mxu0 0.0
      %4750 = vmatprep.subr.mxu0 0.0
      %4751 = vmatpush1.msra.mxu0 0.0
      %4752 = vmatprep.subr.mxu0 0.0
      %4753 = vmatpush1.msra.mxu0 0.0
      %4754 = vmatprep.subr.mxu0 0.0
      %4755 = vmatpush1.msra.mxu0 0.0
      %4756 = vmatprep.subr.mxu0 0.0
      %4757 = vmatpush1.msra.mxu0 0.0
      %4758 = vmatprep.subr.mxu0 0.0
      %4759 = vmatpush1.msra.mxu0 0.0
      %4760 = vmatprep.subr.mxu0 0.0
      %4761 = vmatpush1.msra.mxu0 0.0
      %4762 = vmatprep.subr.mxu0 0.0
      %4763 = vmatpush1.msra.mxu0 0.0
      %4764 = vmatprep.subr.mxu0 0.0
      %4765 = vmatpush1.msra.mxu0 0.0
      %4766 = vmatprep.subr.mxu0 0.0
      %4767 = vmatpush1.msra.mxu0 0.0
      %4768 = vmatprep.subr.mxu0 %v4707
      %4769 = vmatpush1.msra.mxu0 %v4706
      %4770 = vmatprep.subr.mxu0 %v4705
      %4771 = vmatpush1.msra.mxu0 %v4704
      %4772 = vmatprep.subr.mxu0 %v4703
      %4773 = vmatpush1.msra.mxu0 %v4702
      %4774 = vmatprep.subr.mxu0 %v4701
      %4775 = vmatpush1.msra.mxu0 %v4700
      %4776 = vmatprep.subr.mxu0 0.0
      %4777 = vmatpush2.msra.mxu0 0.0
      %4778 = vmatprep.subr.mxu0 0.0
      %4779 = vmatpush2.msra.mxu0 0.0
      %4780 = vmatprep.subr.mxu0 0.0
      %4781 = vmatpush2.msra.mxu0 0.0
      %4782 = vmatprep.subr.mxu0 0.0
      %4783 = vmatpush2.msra.mxu0 0.0
      %4784 = vmatprep.subr.mxu0 0.0
      %4785 = vmatpush2.msra.mxu0 0.0
      %4786 = vmatprep.subr.mxu0 0.0
      %4787 = vmatpush2.msra.mxu0 0.0
      %4788 = vmatprep.subr.mxu0 0.0
      %4789 = vmatpush2.msra.mxu0 0.0
      %4790 = vmatprep.subr.mxu0 0.0
      %4791 = vmatpush2.msra.mxu0 0.0
      %4792 = vmatprep.subr.mxu0 0.0
      %4793 = vmatpush2.msra.mxu0 0.0
      %4794 = vmatprep.subr.mxu0 0.0
      %4795 = vmatpush2.msra.mxu0 0.0
      %4796 = vmatprep.subr.mxu0 0.0
      %4797 = vmatpush2.msra.mxu0 0.0
      %4798 = vmatprep.subr.mxu0 0.0
      %4799 = vmatpush2.msra.mxu0 0.0
      %4800 = vmatprep.subr.mxu0 0.0
      %4801 = vmatpush2.msra.mxu0 0.0
      %4802 = vmatprep.subr.mxu0 0.0
      %4803 = vmatpush2.msra.mxu0 0.0
      %4804 = vmatprep.subr.mxu0 0.0
      %4805 = vmatpush2.msra.mxu0 0.0
      %4806 = vmatprep.subr.mxu0 0.0
      %4807 = vmatpush2.msra.mxu0 0.0
      %4808 = vmatprep.mubr.f32.mxu0 0.0
      %4809 = vmatmul.mubr.f32.gmra.mxu0 %v4721
      %v4810 = vpop.f32.mrf.mxu0
      %v4811 = vadd.f32 %v4713, %v4810
      %v4812 = vpop.f32.mrf.mxu0
      %v4813 = vadd.f32 %v4717, %v4812
      %4814 = vmatprep.mubr.f32.mxu0 0.0
      %4815 = vmatmul.mubr.f32.gmra.mxu0 %v4724
      %v4816 = vpop.f32.mrf.mxu0
      %v4817 = vadd.f32 %v4713, %v4816
      %v4818 = vpop.f32.mrf.mxu0
      %v4819 = vadd.f32 %v4717, %v4818
      %4820 = vmatprep.mubr.f32.mxu0 0.0
      %4821 = vmatmul.mubr.f32.gmra.mxu0 %v4727
      %v4822 = vpop.f32.mrf.mxu0
      %v4823 = vadd.f32 %v4713, %v4822
      %v4824 = vpop.f32.mrf.mxu0
      %v4825 = vadd.f32 %v4717, %v4824
      %4826 = vmatprep.mubr.f32.mxu0 0.0
      %4827 = vmatmul.mubr.f32.gmra.mxu0 %v4730
      %v4828 = vpop.f32.mrf.mxu0
      %v4829 = vadd.f32 %v4713, %v4828
      %v4830 = vpop.f32.mrf.mxu0
      %v4831 = vadd.f32 %v4717, %v4830
      %4832 = vmatprep.mubr.f32.mxu0 0.0
      %4833 = vmatmul.mubr.f32.gmra.mxu0 %v4733
      %v4834 = vpop.f32.mrf.mxu0
      %v4835 = vadd.f32 %v4713, %v4834
      %v4836 = vpop.f32.mrf.mxu0
      %v4837 = vadd.f32 %v4717, %v4836
      %4838 = vmatprep.mubr.f32.mxu0 0.0
      %4839 = vmatmul.mubr.f32.gmra.mxu0 %v4736
      %v4840 = vpop.f32.mrf.mxu0
      %v4841 = vadd.f32 %v4713, %v4840
      %v4842 = vpop.f32.mrf.mxu0
      %v4843 = vadd.f32 %v4717, %v4842
      %4844 = vmatprep.mubr.f32.mxu0 0.0
      %4845 = vmatmul.mubr.f32.gmra.mxu0 %v4739
      %v4846 = vpop.f32.mrf.mxu0
      %v4847 = vadd.f32 %v4713, %v4846
      %v4848 = vpop.f32.mrf.mxu0
      %v4849 = vadd.f32 %v4717, %v4848
      %4850 = vmatprep.mubr.f32.mxu0 0.0
      %4851 = vmatmul.mubr.f32.gmra.mxu0 %v4742
      %v4852 = vpop.f32.mrf.mxu0
      %v4853 = vadd.f32 %v4713, %v4852
      %v4854 = vpop.f32.mrf.mxu0
      %v4855 = vadd.f32 %v4717, %v4854
      %4856 = vdwg.mxu0
      %v4857 = vmul.f32 %v4813, 0.5
      %v4858 = vmul.f32 %v4819, 0.5
      %v4859 = vmul.f32 %v4825, 0.5
      %v4860 = vmul.f32 %v4831, 0.5
      %v4861 = vmul.f32 %v4837, 0.5
      %v4862 = vmul.f32 %v4843, 0.5
      %v4863 = vmul.f32 %v4849, 0.5
      %v4864 = vmul.f32 %v4855, 0.5
      %v4865 = vmul.f32 %v4813, 0.044715
      %v4866 = vmul.f32 %v4819, 0.044715
      %v4867 = vmul.f32 %v4825, 0.044715
      %v4868 = vmul.f32 %v4831, 0.044715
      %v4869 = vmul.f32 %v4837, 0.044715
      %v4870 = vmul.f32 %v4843, 0.044715
      %v4871 = vmul.f32 %v4849, 0.044715
      %v4872 = vmul.f32 %v4855, 0.044715
      %v4873 = vmul.f32 %v4865, %v4813
      %v4874 = vmul.f32 %v4866, %v4819
      %v4875 = vmul.f32 %v4867, %v4825
      %v4876 = vmul.f32 %v4868, %v4831
      %v4877 = vmul.f32 %v4869, %v4837
      %v4878 = vmul.f32 %v4870, %v4843
      %v4879 = vmul.f32 %v4871, %v4849
      %v4880 = vmul.f32 %v4872, %v4855
      %v4881 = vmul.f32 %v4873, %v4813
      %v4882 = vmul.f32 %v4874, %v4819
      %v4883 = vmul.f32 %v4875, %v4825
      %v4884 = vmul.f32 %v4876, %v4831
      %v4885 = vmul.f32 %v4877, %v4837
      %v4886 = vmul.f32 %v4878, %v4843
      %v4887 = vmul.f32 %v4879, %v4849
      %v4888 = vmul.f32 %v4880, %v4855
      %v4889 = vadd.f32 %v4813, %v4881
      %v4890 = vadd.f32 %v4819, %v4882
      %v4891 = vadd.f32 %v4825, %v4883
      %v4892 = vadd.f32 %v4831, %v4884
      %v4893 = vadd.f32 %v4837, %v4885
      %v4894 = vadd.f32 %v4843, %v4886
      %v4895 = vadd.f32 %v4849, %v4887
      %v4896 = vadd.f32 %v4855, %v4888
      %v4897 = vmul.f32 %v4889, 0.7978846
      %v4898 = vmul.f32 %v4890, 0.7978846
      %v4899 = vmul.f32 %v4891, 0.7978846
      %v4900 = vmul.f32 %v4892, 0.7978846
      %v4901 = vmul.f32 %v4893, 0.7978846
      %v4902 = vmul.f32 %v4894, 0.7978846
      %v4903 = vmul.f32 %v4895, 0.7978846
      %v4904 = vmul.f32 %v4896, 0.7978846
      %v4905 = vtanh.pop %v4897
      %v4906 = vtanh.pop %v4898
      %v4907 = vtanh.pop %v4899
      %v4908 = vtanh.pop %v4900
      %v4909 = vtanh.pop %v4901
      %v4910 = vtanh.pop %v4902
      %v4911 = vtanh.pop %v4903
      %v4912 = vtanh.pop %v4904
      %v4913 = vadd.f32 %v4905, 1.0
      %v4914 = vadd.f32 %v4906, 1.0
      %v4915 = vadd.f32 %v4907, 1.0
      %v4916 = vadd.f32 %v4908, 1.0
      %v4917 = vadd.f32 %v4909, 1.0
      %v4918 = vadd.f32 %v4910, 1.0
      %v4919 = vadd.f32 %v4911, 1.0
      %v4920 = vadd.f32 %v4912, 1.0
      %v4921 = vmul.f32 %v4857, %v4913
      %v4922 = vmul.f32 %v4858, %v4914
      %v4923 = vmul.f32 %v4859, %v4915
      %v4924 = vmul.f32 %v4860, %v4916
      %v4925 = vmul.f32 %v4861, %v4917
      %v4926 = vmul.f32 %v4862, %v4918
      %v4927 = vmul.f32 %v4863, %v4919
      %v4928 = vmul.f32 %v4864, %v4920
      %v4929 = vmul.f32 %v4811, %v4921
      %v4930 = vmul.f32 %v4817, %v4922
      %v4931 = vmul.f32 %v4823, %v4923
      %v4932 = vmul.f32 %v4829, %v4924
      %v4933 = vmul.f32 %v4835, %v4925
      %v4934 = vmul.f32 %v4841, %v4926
      %v4935 = vmul.f32 %v4847, %v4927
      %v4936 = vmul.f32 %v4853, %v4928
      %v4937 = vld [vmem:[%s24] sm:$0xff]
      %v4938 = vld [vmem:[%s24 + $0x8] sm:$0xff]
      %v4939 = vld [vmem:[%s24 + $0x10] sm:$0xff]
      %v4940 = vld [vmem:[%s24 + $0x18] sm:$0xff]
      %v4941 = vld [vmem:[%s24 + $0x20] sm:$0xff]
      %v4942 = vld [vmem:[%s24 + $0x28] sm:$0xff]
      %v4943 = vld [vmem:[%s24 + $0x30] sm:$0xff]
      %v4944 = vld [vmem:[%s24 + $0x38] sm:$0xff]
      %v4945 = vld [vmem:[%s24 + $0x40] sm:$0xff]
      %v4946 = vld [vmem:[%s24 + $0x48] sm:$0xff]
      %v4947 = vld [vmem:[%s24 + $0x50] sm:$0xff]
      %v4948 = vld [vmem:[%s24 + $0x58] sm:$0xff]
      %v4949 = vld [vmem:[%s24 + $0x60] sm:$0xff]
      %v4950 = vld [vmem:[%s24 + $0x68] sm:$0xff]
      %v4951 = vld [vmem:[%s24 + $0x70] sm:$0xff]
      %v4952 = vld [vmem:[%s24 + $0x78] sm:$0xff]
      %v4953 = vld [vmem:[%s25] sm:$0x1]
      %v4955 = vlaneseq
      %v4956 = vshrl.u32 %v4955, 7
      %v4957 = vsub.s32 0, %v4956
      %v4958 = vrot.slane %v4953, %v4957
      %4960 = vmatprep.subr.mxu0 0.0
      %4961 = vmatpush1.msra.mxu0 %v4952
      %4962 = vmatprep.subr.mxu0 0.0
      %4963 = vmatpush1.msra.mxu0 %v4951
      %4964 = vmatprep.subr.mxu0 0.0
      %4965 = vmatpush1.msra.mxu0 %v4950
      %4966 = vmatprep.subr.mxu0 0.0
      %4967 = vmatpush1.msra.mxu0 %v4949
      %4968 = vmatprep.subr.mxu0 0.0
      %4969 = vmatpush1.msra.mxu0 %v4948
      %4970 = vmatprep.subr.mxu0 0.0
      %4971 = vmatpush1.msra.mxu0 %v4947
      %4972 = vmatprep.subr.mxu0 0.0
      %4973 = vmatpush1.msra.mxu0 %v4946
      %4974 = vmatprep.subr.mxu0 0.0
      %4975 = vmatpush1.msra.mxu0 %v4945
      %4976 = vmatprep.subr.mxu0 0.0
      %4977 = vmatpush1.msra.mxu0 %v4944
      %4978 = vmatprep.subr.mxu0 0.0
      %4979 = vmatpush1.msra.mxu0 %v4943
      %4980 = vmatprep.subr.mxu0 0.0
      %4981 = vmatpush1.msra.mxu0 %v4942
      %4982 = vmatprep.subr.mxu0 0.0
      %4983 = vmatpush1.msra.mxu0 %v4941
      %4984 = vmatprep.subr.mxu0 0.0
      %4985 = vmatpush1.msra.mxu0 %v4940
      %4986 = vmatprep.subr.mxu0 0.0
      %4987 = vmatpush1.msra.mxu0 %v4939
      %4988 = vmatprep.subr.mxu0 0.0
      %4989 = vmatpush1.msra.mxu0 %v4938
      %4990 = vmatprep.subr.mxu0 0.0
      %4991 = vmatpush1.msra.mxu0 %v4937
      %4992 = vmatprep.subr.mxu0 0.0
      %4993 = vmatpush2.msra.mxu0 0.0
      %4994 = vmatprep.subr.mxu0 0.0
      %4995 = vmatpush2.msra.mxu0 0.0
      %4996 = vmatprep.subr.mxu0 0.0
      %4997 = vmatpush2.msra.mxu0 0.0
      %4998 = vmatprep.subr.mxu0 0.0
      %4999 = vmatpush2.msra.mxu0 0.0
      %5000 = vmatprep.subr.mxu0 0.0
      %5001 = vmatpush2.msra.mxu0 0.0
      %5002 = vmatprep.subr.mxu0 0.0
      %5003 = vmatpush2.msra.mxu0 0.0
      %5004 = vmatprep.subr.mxu0 0.0
      %5005 = vmatpush2.msra.mxu0 0.0
      %5006 = vmatprep.subr.mxu0 0.0
      %5007 = vmatpush2.msra.mxu0 0.0
      %5008 = vmatprep.subr.mxu0 0.0
      %5009 = vmatpush2.msra.mxu0 0.0
      %5010 = vmatprep.subr.mxu0 0.0
      %5011 = vmatpush2.msra.mxu0 0.0
      %5012 = vmatprep.subr.mxu0 0.0
      %5013 = vmatpush2.msra.mxu0 0.0
      %5014 = vmatprep.subr.mxu0 0.0
      %5015 = vmatpush2.msra.mxu0 0.0
      %5016 = vmatprep.subr.mxu0 0.0
      %5017 = vmatpush2.msra.mxu0 0.0
      %5018 = vmatprep.subr.mxu0 0.0
      %5019 = vmatpush2.msra.mxu0 0.0
      %5020 = vmatprep.subr.mxu0 0.0
      %5021 = vmatpush2.msra.mxu0 0.0
      %5022 = vmatprep.subr.mxu0 0.0
      %5023 = vmatpush2.msra.mxu0 0.0
      %5024 = vmatprep.mubr.f32.mxu0 0.0
      %5025 = vmatmul.mubr.f32.gmra.mxu0 %v4929
      %v5026 = vpop.f32.mrf.mxu0
      %v5027 = vadd.f32 %v4958, %v5026
      %v5028 = vpop.f32.mrf.mxu0
      %5029 = vmatprep.mubr.f32.mxu0 0.0
      %5030 = vmatmul.mubr.f32.gmra.mxu0 %v4930
      %v5031 = vpop.f32.mrf.mxu0
      %v5032 = vadd.f32 %v4958, %v5031
      %v5033 = vpop.f32.mrf.mxu0
      %5034 = vmatprep.mubr.f32.mxu0 0.0
      %5035 = vmatmul.mubr.f32.gmra.mxu0 %v4931
      %v5036 = vpop.f32.mrf.mxu0
      %v5037 = vadd.f32 %v4958, %v5036
      %v5038 = vpop.f32.mrf.mxu0
      %5039 = vmatprep.mubr.f32.mxu0 0.0
      %5040 = vmatmul.mubr.f32.gmra.mxu0 %v4932
      %v5041 = vpop.f32.mrf.mxu0
      %v5042 = vadd.f32 %v4958, %v5041
      %v5043 = vpop.f32.mrf.mxu0
      %5044 = vmatprep.mubr.f32.mxu0 0.0
      %5045 = vmatmul.mubr.f32.gmra.mxu0 %v4933
      %v5046 = vpop.f32.mrf.mxu0
      %v5047 = vadd.f32 %v4958, %v5046
      %v5048 = vpop.f32.mrf.mxu0
      %5049 = vmatprep.mubr.f32.mxu0 0.0
      %5050 = vmatmul.mubr.f32.gmra.mxu0 %v4934
      %v5051 = vpop.f32.mrf.mxu0
      %v5052 = vadd.f32 %v4958, %v5051
      %v5053 = vpop.f32.mrf.mxu0
      %5054 = vmatprep.mubr.f32.mxu0 0.0
      %5055 = vmatmul.mubr.f32.gmra.mxu0 %v4935
      %v5056 = vpop.f32.mrf.mxu0
      %v5057 = vadd.f32 %v4958, %v5056
      %v5058 = vpop.f32.mrf.mxu0
      %5059 = vmatprep.mubr.f32.mxu0 0.0
      %5060 = vmatmul.mubr.f32.gmra.mxu0 %v4936
      %v5061 = vpop.f32.mrf.mxu0
      %v5062 = vadd.f32 %v4958, %v5061
      %v5063 = vpop.f32.mrf.mxu0
      %5064 = vdwg.mxu0
      %v5065 = vadd.f32 %v5027, %v4558
      %v5066 = vadd.f32 %v5032, %v4559
      %v5067 = vadd.f32 %v5037, %v4560
      %v5068 = vadd.f32 %v5042, %v4561
      %v5069 = vadd.f32 %v5047, %v4562
      %v5070 = vadd.f32 %v5052, %v4563
      %v5071 = vadd.f32 %v5057, %v4564
      %v5072 = vadd.f32 %v5062, %v4565
      %v5073 = vld [vmem:[%s26] sm:$0xff]
      %v5074 = vld [vmem:[%s26 + $0x8] sm:$0xff]
      %v5075 = vld [vmem:[%s26 + $0x10] sm:$0xff]
      %v5076 = vld [vmem:[%s26 + $0x18] sm:$0xff]
      %v5077 = vld [vmem:[%s27] sm:$0x1]
      %v5079 = vlaneseq
      %v5080 = vshrl.u32 %v5079, 7
      %v5081 = vsub.s32 0, %v5080
      %v5082 = vrot.slane %v5077, %v5081
      %v5085 = vsel %vm874, %v5065, 0
      %v5088 = vsel %vm874, %v5066, 0
      %v5091 = vsel %vm874, %v5067, 0
      %v5094 = vsel %vm874, %v5068, 0
      %v5097 = vsel %vm874, %v5069, 0
      %v5100 = vsel %vm874, %v5070, 0
      %v5103 = vsel %vm874, %v5071, 0
      %v5106 = vsel %vm874, %v5072, 0
      %5108 = vmatprep.subr.mxu0 0.0
      %5109 = vmatpush1.msra.mxu0 0.0
      %5110 = vmatprep.subr.mxu0 0.0
      %5111 = vmatpush1.msra.mxu0 0.0
      %5112 = vmatprep.subr.mxu0 0.0
      %5113 = vmatpush1.msra.mxu0 0.0
      %5114 = vmatprep.subr.mxu0 0.0
      %5115 = vmatpush1.msra.mxu0 0.0
      %5116 = vmatprep.subr.mxu0 0.0
      %5117 = vmatpush1.msra.mxu0 0.0
      %5118 = vmatprep.subr.mxu0 0.0
      %5119 = vmatpush1.msra.mxu0 0.0
      %5120 = vmatprep.subr.mxu0 0.0
      %5121 = vmatpush1.msra.mxu0 0.0
      %5122 = vmatprep.subr.mxu0 0.0
      %5123 = vmatpush1.msra.mxu0 0.0
      %5124 = vmatprep.subr.mxu0 0.0
      %5125 = vmatpush1.msra.mxu0 0.0
      %5126 = vmatprep.subr.mxu0 0.0
      %5127 = vmatpush1.msra.mxu0 0.0
      %5128 = vmatprep.subr.mxu0 0.0
      %5129 = vmatpush1.msra.mxu0 0.0
      %5130 = vmatprep.subr.mxu0 0.0
      %5131 = vmatpush1.msra.mxu0 0.0
      %5132 = vmatprep.subr.mxu0 0.0
      %5133 = vmatpush1.msra.mxu0 %v5076
      %5134 = vmatprep.subr.mxu0 0.0
      %5135 = vmatpush1.msra.mxu0 %v5075
      %5136 = vmatprep.subr.mxu0 0.0
      %5137 = vmatpush1.msra.mxu0 %v5074
      %5138 = vmatprep.subr.mxu0 0.0
      %5139 = vmatpush1.msra.mxu0 %v5073
      %5140 = vmatprep.subr.mxu0 0.0
      %5141 = vmatpush2.msra.mxu0 0.0
      %5142 = vmatprep.subr.mxu0 0.0
      %5143 = vmatpush2.msra.mxu0 0.0
      %5144 = vmatprep.subr.mxu0 0.0
      %5145 = vmatpush2.msra.mxu0 0.0
      %5146 = vmatprep.subr.mxu0 0.0
      %5147 = vmatpush2.msra.mxu0 0.0
      %5148 = vmatprep.subr.mxu0 0.0
      %5149 = vmatpush2.msra.mxu0 0.0
      %5150 = vmatprep.subr.mxu0 0.0
      %5151 = vmatpush2.msra.mxu0 0.0
      %5152 = vmatprep.subr.mxu0 0.0
      %5153 = vmatpush2.msra.mxu0 0.0
      %5154 = vmatprep.subr.mxu0 0.0
      %5155 = vmatpush2.msra.mxu0 0.0
      %5156 = vmatprep.subr.mxu0 0.0
      %5157 = vmatpush2.msra.mxu0 0.0
      %5158 = vmatprep.subr.mxu0 0.0
      %5159 = vmatpush2.msra.mxu0 0.0
      %5160 = vmatprep.subr.mxu0 0.0
      %5161 = vmatpush2.msra.mxu0 0.0
      %5162 = vmatprep.subr.mxu0 0.0
      %5163 = vmatpush2.msra.mxu0 0.0
      %5164 = vmatprep.subr.mxu0 0.0
      %5165 = vmatpush2.msra.mxu0 0.0
      %5166 = vmatprep.subr.mxu0 0.0
      %5167 = vmatpush2.msra.mxu0 0.0
      %5168 = vmatprep.subr.mxu0 0.0
      %5169 = vmatpush2.msra.mxu0 0.0
      %5170 = vmatprep.subr.mxu0 0.0
      %5171 = vmatpush2.msra.mxu0 0.0
      %5172 = vmatprep.mubr.f32.mxu0 0.0
      %5173 = vmatmul.mubr.f32.gmra.mxu0 %v5085
      %v5174 = vpop.f32.mrf.mxu0
      %v5175 = vadd.f32 %v5082, %v5174
      %v5176 = vpop.f32.mrf.mxu0
      %5177 = vmatprep.mubr.f32.mxu0 0.0
      %5178 = vmatmul.mubr.f32.gmra.mxu0 %v5088
      %v5179 = vpop.f32.mrf.mxu0
      %v5180 = vadd.f32 %v5082, %v5179
      %v5181 = vpop.f32.mrf.mxu0
      %5182 = vmatprep.mubr.f32.mxu0 0.0
      %5183 = vmatmul.mubr.f32.gmra.mxu0 %v5091
      %v5184 = vpop.f32.mrf.mxu0
      %v5185 = vadd.f32 %v5082, %v5184
      %v5186 = vpop.f32.mrf.mxu0
      %5187 = vmatprep.mubr.f32.mxu0 0.0
      %5188 = vmatmul.mubr.f32.gmra.mxu0 %v5094
      %v5189 = vpop.f32.mrf.mxu0
      %v5190 = vadd.f32 %v5082, %v5189
      %v5191 = vpop.f32.mrf.mxu0
      %5192 = vmatprep.mubr.f32.mxu0 0.0
      %5193 = vmatmul.mubr.f32.gmra.mxu0 %v5097
      %v5194 = vpop.f32.mrf.mxu0
      %v5195 = vadd.f32 %v5082, %v5194
      %v5196 = vpop.f32.mrf.mxu0
      %5197 = vmatprep.mubr.f32.mxu0 0.0
      %5198 = vmatmul.mubr.f32.gmra.mxu0 %v5100
      %v5199 = vpop.f32.mrf.mxu0
      %v5200 = vadd.f32 %v5082, %v5199
      %v5201 = vpop.f32.mrf.mxu0
      %5202 = vmatprep.mubr.f32.mxu0 0.0
      %5203 = vmatmul.mubr.f32.gmra.mxu0 %v5103
      %v5204 = vpop.f32.mrf.mxu0
      %v5205 = vadd.f32 %v5082, %v5204
      %v5206 = vpop.f32.mrf.mxu0
      %5207 = vmatprep.mubr.f32.mxu0 0.0
      %5208 = vmatmul.mubr.f32.gmra.mxu0 %v5106
      %v5209 = vpop.f32.mrf.mxu0
      %v5210 = vadd.f32 %v5082, %v5209
      %v5211 = vpop.f32.mrf.mxu0
      %5212 = vdwg.mxu0
      %v5213 = vadd.f32 %v5175, %v866
      %v5214 = vadd.f32 %v5180, %v867
      %v5215 = vadd.f32 %v5185, %v868
      %v5216 = vadd.f32 %v5190, %v869
      %v5217 = vadd.f32 %v5195, %v870
      %v5218 = vadd.f32 %v5200, %v871
      %v5219 = vadd.f32 %v5205, %v872
      %v5220 = vadd.f32 %v5210, %v873
      %5221 = vst.msk [vmem:[%s865] sm:$0xff] %vm874, %v5213
      %5222 = vst.msk [vmem:[%s865 + $0x8] sm:$0xff] %vm874, %v5214
      %5223 = vst.msk [vmem:[%s865 + $0x10] sm:$0xff] %vm874, %v5215
      %5224 = vst.msk [vmem:[%s865 + $0x18] sm:$0xff] %vm874, %v5216
      %5225 = vst.msk [vmem:[%s865 + $0x20] sm:$0xff] %vm874, %v5217
      %5226 = vst.msk [vmem:[%s865 + $0x28] sm:$0xff] %vm874, %v5218
      %5227 = vst.msk [vmem:[%s865 + $0x30] sm:$0xff] %vm874, %v5219
      %5228 = vst.msk [vmem:[%s865 + $0x38] sm:$0xff] %vm874, %v5220
      %p5229 = scmp.lt.s32.totalorder %s39, 1
      %s5230 = scalar_select %p5229, %s39, 1
      %s5231 = smul.addr %s5230, 8
      %s5232 = smul.addr %s5231, 8
      %s5233 = scalar_lea.vmem %s28, %s5232
      // Predicated region
      $region133: #{tpu_custom_call.1} parent=131 // pred_check
        %p5234 = pneg %p655
      $region134: #{tpu_custom_call.1} parent=131 // pred_check_branch
        %5236 = sbr.rel (%p5234) target = $region136
      $region135: #{tpu_custom_call.1} parent=131 // pred_region
        _
      $region136: #{tpu_custom_call.1} parent=131 // pred_fallthru
        _
    $region132: #{tpu_custom_call.1} parent=5 // pred_fallthru
      _
    %p5237 = scmp.le.s32.totalorder 2, %s34
    // Predicated region
    $region137: #{tpu_custom_call.1} parent=5 // pred_check
      %p5238 = pneg %p5237
    $region138: #{tpu_custom_call.1} parent=5 // pred_check_branch
      %5240 = sbr.rel (%p5238) target = $region140
    $region139: #{tpu_custom_call.1} parent=5 // pred_region
      %s5241 = ssub.s32 %s34, 2
      // Predicated region
      $region141: #{tpu_custom_call.1} parent=139 // pred_check
        %p5242 = pneg %p661
      $region142: #{tpu_custom_call.1} parent=139 // pred_check_branch
        %5244 = sbr.rel (%p5242) target = $region144
      $region143: #{tpu_custom_call.1} parent=139 // pred_region
        %p5245 = scmp.lt.s32.totalorder %s40, 1
        %s5246 = scalar_select %p5245, %s40, 1
        %s5247 = smul.addr %s5246, 8
        %s5248 = smul.addr %s5247, 8
        %s5249 = scalar_lea.vmem %s28, %s5248
      $region144: #{tpu_custom_call.1} parent=139 // pred_fallthru
        _
    $region140: #{tpu_custom_call.1} parent=5 // pred_fallthru
      _
  $region6: #{tpu_custom_call.1} parent=0 // loop_footer
    %s38 = sadd.s32 1, %s34
  $region7: #{tpu_custom_call.1} parent=0 // loop_footer_branch
    %33 = sbr.rel target = $region3
  $region8: #{tpu_custom_call.1} parent=0 // loop_exit
    _

</llo_original>
